<compile_context>
chip_gen: v6e
topology: v6e:2x2x1
jax: 0.10.0
libtpu: 0.0.40
codegen_flags: <defaults>
</compile_context>

<pallas_src>
import jax
import jax.numpy as jnp
from jax import lax
from jax.experimental import pallas as pl
from jax.experimental.pallas import tpu as pltpu


def _round_up(x, m):
    return (x + m - 1) // m * m


# ----------------------------------------------------------------------------
# Kernel: M-tiled, lane-dense conv-as-matmul (im2col patches @ weight + bias)
# ----------------------------------------------------------------------------
def _conv_matmul_kernel(p_ref, w_ref, b_ref, o_ref):
    # p_ref: (tm, Kp)  w_ref: (Kp, Cp)  b_ref: (1, Cp)  o_ref: (tm, Cp)
    o_ref[...] = (
        jnp.dot(p_ref[...], w_ref[...], preferred_element_type=jnp.float32)
        + b_ref[...]
    ).astype(o_ref.dtype)


def conv2d_pallas(x, w, b, *, padding=1, tm=256):
    """Conv2d(stride=1, padding=padding) on NCHW input via a tiled Pallas matmul."""
    N, C_in, H, W = x.shape
    C_out, _, K, _ = w.shape
    Kdim = C_in * K * K

    # im2col built directly in lane-dense NHWC / (kk*C_in + c) column order:
    # one small input transpose, zero transposes of the expanded patch array.
    x_nhwc = jnp.transpose(x, (0, 2, 3, 1))                       # (N, H, W, C_in)
    xp = jnp.pad(x_nhwc, ((0, 0), (padding, padding), (padding, padding), (0, 0)))
    cols = [xp[:, di:di + H, dj:dj + W, :] for di in range(K) for dj in range(K)]
    patches = jnp.concatenate(cols, axis=-1).reshape(N * H * W, Kdim)

    # Pad M to the tile size, contraction and output-channel dims to 128
    # (zero columns are mathematically inert; lane-dense stores + full MXU
    # contraction tiles).  For much larger C_in*K*K one would add an
    # "arbitrary" contraction grid axis with a VMEM accumulator instead.
    M = N * H * W
    tm = min(tm, _round_up(M, 8))
    Mp = _round_up(M, tm)
    Kp = _round_up(Kdim, 128)
    Cp = _round_up(C_out, 128)
    assert Kp * Cp * 4 <= 4 * 1024 * 1024, "add a contraction grid axis for this size"

    patches = jnp.pad(patches, ((0, Mp - M), (0, Kp - Kdim)))
    # weight rows ordered (di, dj, c) to match the patch columns above
    wmat = jnp.pad(
        w.transpose(2, 3, 1, 0).reshape(Kdim, C_out),
        ((0, Kp - Kdim), (0, Cp - C_out)),
    )
    bmat = jnp.pad(b.reshape(1, C_out), ((0, 0), (0, Cp - C_out)))

    out = pl.pallas_call(
        _conv_matmul_kernel,
        out_shape=jax.ShapeDtypeStruct((Mp, Cp), jnp.float32),
        grid=(Mp // tm,),
        in_specs=[
            pl.BlockSpec((tm, Kp), lambda i: (i, 0)),   # patches: tiled over M
            pl.BlockSpec((Kp, Cp), lambda i: (0, 0)),   # weight: resident
            pl.BlockSpec((1, Cp), lambda i: (0, 0)),    # bias: resident
        ],
        out_specs=pl.BlockSpec((tm, Cp), lambda i: (i, 0)),  # lane-dense (tm, 128)
        compiler_params=pltpu.CompilerParams(
            dimension_semantics=("parallel",),          # shards M across TCs on v7x
            vmem_limit_bytes=32 * 1024 * 1024,
        ),
    )(patches, wmat, bmat)

    # Slice padded rows/channels off BEFORE reshaping back to NCHW.
    out = out[:M, :C_out].reshape(N, H, W, C_out)
    return jnp.transpose(out, (0, 3, 1, 2))


# ----------------------------------------------------------------------------
# save_outputs_hook equivalent: per-channel batch-mean of matrix_rank.
# Kept in plain jnp on purpose (perf review): the tolerance/count/mean is ~one
# vreg of work, far below pallas_call dispatch overhead, and XLA fuses it with
# the SVD epilogue.
# ----------------------------------------------------------------------------
def rank_hook(feat):
    if feat.ndim == 3:                    # mirror `output.unsqueeze(-1)`
        feat = feat[..., None]
    N, C, H, W = feat.shape
    # TODO(synk): torch.matrix_rank is SVD-based; SVD has no Pallas equivalent,
    # so singular values come from jnp.linalg.svd (a Gram-eigenvalue variant
    # would be faster but is not bit-identical to matrix_rank's tolerance rule).
    s = jnp.linalg.svd(feat.astype(jnp.float32), compute_uv=False)  # (N, C, min(H,W))
    eps = jnp.finfo(jnp.float32).eps
    tol = jnp.max(s, axis=-1, keepdims=True) * (max(H, W) * eps)    # torch default tol
    ranks = jnp.sum((s > tol).astype(jnp.float32), axis=-1)         # (N, C)
    return jnp.sum(ranks, axis=0) / N                               # (C,)


# ----------------------------------------------------------------------------
# RankExtractor forward: run the hooked "model" (one conv layer), fire both
# hooks (rank save + shape print), return model output and the rank dict.
# ----------------------------------------------------------------------------
@jax.jit
def _forward_impl(x, w, b):
    feat = conv2d_pallas(x, w, b)
    return feat, rank_hook(feat)


def rank_extractor_forward(x, params, layer_id="conv1"):
    feat, rank_vec = _forward_impl(x, params["w"], params["b"])
    print(f"{layer_id}: {feat.shape}")                  # print_outputs_hook
    return feat, {layer_id: rank_vec}                   # save_outputs_hook result


if __name__ == "__main__":
    key = jax.random.PRNGKey(0)
    k1, k2, k3 = jax.random.split(key, 3)

    N, C_in, H, W = 2, 4, 16, 16
    C_out, K = 8, 3

    x = jax.random.normal(k1, (N, C_in, H, W), dtype=jnp.float32)
    params = {
        "w": 0.1 * jax.random.normal(k2, (C_out, C_in, K, K), dtype=jnp.float32),
        "b": 0.1 * jax.random.normal(k3, (C_out,), dtype=jnp.float32),
    }

    output, rank = rank_extractor_forward(x, params)
    jax.block_until_ready((output, rank["conv1"]))

    # Sanity check against XLA's conv (loose tolerance: MXU bf16-pass numerics).
    ref = lax.conv_general_dilated(
        x, params["w"], window_strides=(1, 1), padding=((1, 1), (1, 1)),
        dimension_numbers=("NCHW", "OIHW", "NCHW"),
        precision=lax.Precision.HIGHEST,
    ) + params["b"][None, :, None, None]

    assert output.shape == (N, C_out, H, W)
    assert rank["conv1"].shape == (C_out,)
    assert float(jnp.max(jnp.abs(output - ref))) < 5e-2
    assert bool(jnp.all(jnp.isfinite(rank["conv1"])))
    print("KERNEL_OK")
</pallas_src>

<mosaic_0001>
module attributes {stable_mosaic.version = 11 : i64} {
  func.func @_conv_matmul_kernel(%arg0: i32, %arg1: memref<256x128xf32, #tpu.memory_space<vmem>>, %arg2: memref<128x128xf32, #tpu.memory_space<vmem>>, %arg3: memref<1x128xf32, #tpu.memory_space<vmem>>, %arg4: memref<256x128xf32, #tpu.memory_space<vmem>>) attributes {dimension_semantics = [#tpu.dimension_semantics<parallel>], iteration_bounds = array<i64: 2>, scalar_prefetch = 0 : i64, scratch_operands = 0 : i64, tpu.core_type = #tpu.core_type<tc>, window_params = [{transform_indices = @transform_0, window_bounds = array<i64: 256, 128>}, {pipeline_mode = #tpu.pipeline_mode<synchronous>, transform_indices = @transform_1, window_bounds = array<i64: 128, 128>}, {pipeline_mode = #tpu.pipeline_mode<synchronous>, transform_indices = @transform_2, window_bounds = array<i64: 1, 128>}, {transform_indices = @transform_3, window_bounds = array<i64: 256, 128>}]} {
    %c0 = arith.constant 0 : index
    %c0_0 = arith.constant 0 : index
    %0 = vector.load %arg1[%c0, %c0_0] : memref<256x128xf32, #tpu.memory_space<vmem>>, vector<256x128xf32>
    %c0_1 = arith.constant 0 : index
    %c0_2 = arith.constant 0 : index
    %1 = vector.load %arg2[%c0_1, %c0_2] : memref<128x128xf32, #tpu.memory_space<vmem>>, vector<128x128xf32>
    %cst = arith.constant dense<0.000000e+00> : vector<256x128xf32>
    %2 = tpu.matmul %0, %1, %cst {dimension_numbers = #tpu.dot_dimension_numbers<[1], [0], [0], [1], [0, 0, 1, 1], [], []>} : vector<256x128xf32>, vector<128x128xf32>, vector<256x128xf32> -> vector<256x128xf32>
    %c0_3 = arith.constant 0 : index
    %c0_4 = arith.constant 0 : index
    %3 = vector.load %arg3[%c0_3, %c0_4] : memref<1x128xf32, #tpu.memory_space<vmem>>, vector<1x128xf32>
    %4 = vector.broadcast %3 : vector<1x128xf32> to vector<256x128xf32>
    %5 = arith.addf %2, %4 : vector<256x128xf32>
    %c0_5 = arith.constant 0 : index
    %c0_6 = arith.constant 0 : index
    %6 = vector.load %arg4[%c0_5, %c0_6] : memref<256x128xf32, #tpu.memory_space<vmem>>, vector<256x128xf32>
    tpu.vector_store %arg4[%c0_5, %c0_6], %5 {strides = array<i32>} : memref<256x128xf32, #tpu.memory_space<vmem>>, vector<256x128xf32>,
    return
  }
  func.func @transform_0(%arg0: i32) -> (i32, i32) {
    %c0_i32 = arith.constant 0 : i32
    %c0_i32_0 = arith.constant 0 : i32
    return %arg0, %c0_i32 : i32, i32
  }
  func.func @transform_1(%arg0: i32) -> (i32, i32) {
    %c0_i32 = arith.constant 0 : i32
    %c0_i32_0 = arith.constant 0 : i32
    %c0_i32_1 = arith.constant 0 : i32
    return %c0_i32, %c0_i32_0 : i32, i32
  }
  func.func @transform_2(%arg0: i32) -> (i32, i32) {
    %c0_i32 = arith.constant 0 : i32
    %c0_i32_0 = arith.constant 0 : i32
    %c0_i32_1 = arith.constant 0 : i32
    return %c0_i32, %c0_i32_0 : i32, i32
  }
  func.func @transform_3(%arg0: i32) -> (i32, i32) {
    %c0_i32 = arith.constant 0 : i32
    %c0_i32_0 = arith.constant 0 : i32
    return %arg0, %c0_i32 : i32, i32
  }
}

</mosaic_0001>

<llo_original>
// kernel: custom-call.47
$region0: #{custom-call.47}
  %s0 = inlined_call_operand.vmem [shape: f32[2,8,32,16], index: 0, kind: input, shape index: {}]
  %s1 = inlined_call_operand.vmem [shape: f32[2,8,32,16], index: 1, kind: output, shape index: {0}]
  %s2 = inlined_call_operand.vmem [shape: f32[2,8,16], index: 2, kind: output, shape index: {1}]
  %3 = xla_tuple %s1, %s2
  $region1: #{custom-call.47} parent=0
    #allocation0 [shape = 'u8[32768]{0}', space=vmem, size = 0x8000, scoped, tag = 'operand span for operand 0']
    #allocation1 [shape = 'u8[32768]{0}', space=vmem, size = 0x8000, scoped, tag = 'operand span for operand 1']
    #allocation2 [shape = 'u8[8192]{0}', space=vmem, size = 0x2000, scoped, tag = 'operand span for operand 2']
    loop: start=0, step=1, limit=18
    $region2: #{custom-call.47} parent=1 // loop_pre_header
      _
    $region3: #{custom-call.47} parent=1 // loop_header
      %s5 = sphi 0, %s9
      %p6 = scmp.ge.s32.totalorder %s5, 18
      %s12 = sphi 0, %s38
      %s13 = sphi 0, %s34
      %s14 = sphi 0, %s30
      %s15 = sphi 0, %s26
      %s16 = sphi 0, %s12
      %s17 = sphi 0, %s13
      %s18 = sphi 0, %s14
      %s19 = sphi 0, %s15
      %s20 = sphi 0, %s16
      %s21 = sphi 0, %s17
      %s22 = sphi 0, %s18
      %s23 = sphi 0, %s19
      %s55 = sphi 0, %s57
      %s58 = sphi 0, %s55
      %s59 = sphi 0, %s58
      %s75 = sphi 0, %s59
    $region4: #{custom-call.47} parent=1 // loop_header_branch
      %8 = sbr.rel (%p6) target = $region8
    $region5: #{custom-call.47} parent=1 // loop_body
      %s10 = ssub.s32 %s5, 1
      %s11 = ssub.s32 %s5, 2
      %s24 = sadd.s32 1, %s15
      %p25 = scmp.ge.s32.totalorder %s24, 1
      %s26 = scalar_select %p25, 0, %s24
      %s27 = sadd.s32 1, %s14
      %s28 = scalar_select %p25, %s27, %s14
      %p29 = scmp.ge.s32.totalorder %s28, 1
      %s30 = scalar_select %p29, 0, %s28
      %s31 = sadd.s32 1, %s13
      %s32 = scalar_select %p29, %s31, %s13
      %p33 = scmp.ge.s32.totalorder %s32, 8
      %s34 = scalar_select %p33, 0, %s32
      %s35 = sadd.s32 1, %s12
      %s36 = scalar_select %p33, %s35, %s12
      %p37 = scmp.ge.s32.totalorder %s36, 2
      %s38 = scalar_select %p37, 0, %s36
      %p39 = scmp.lt.s32.totalorder %s13, 0
      %s40 = ssub.s32 0, %s13
      %s41 = scalar_select %p39, %s40, %s13
      %s42 = sshrl.u32 %s41, 3
      %s43 = ssub.s32 0, %s42
      %s44 = scalar_select %p39, %s43, %s42
      %p45 = scmp.lt.s32.totalorder %s34, 0
      %s46 = ssub.s32 0, %s34
      %s47 = scalar_select %p45, %s46, %s34
      %s48 = sshrl.u32 %s47, 3
      %s49 = ssub.s32 0, %s48
      %s50 = scalar_select %p45, %s49, %s48
      %s51 = ssub.s32 %s12, %s38
      %s52 = ssub.s32 %s44, %s50
      %s53 = sor.u32 %s51, %s52
      %p54 = scmp.eq.s32.totalorder %s53, 0
      %s56 = sadd.s32 %s55, 1
      %s57 = scalar_select %p54, %s55, %s56
      %p60 = pneg %p54
      %p61 = scmp.eq.s32.totalorder %s5, 15
      %p62 = por %p60, %p61
      %p63 = scmp.ne.s32.totalorder %s55, %s58
      %p64 = scmp.eq.s32.totalorder %s5, 0
      %p65 = por %p63, %p64
      %p66 = scmp.ne.s32.totalorder %s55, %s58
      %p67 = scmp.eq.s32.totalorder %s10, 15
      %p68 = por %p66, %p67
      %p69 = scmp.ne.s32.totalorder %s58, %s59
      %p70 = scmp.eq.s32.totalorder %s10, 0
      %p71 = por %p69, %p70
      %p72 = scmp.ne.s32.totalorder %s58, %s59
      %p73 = scmp.eq.s32.totalorder %s11, 15
      %p74 = por %p72, %p73
      %p76 = scmp.ne.s32.totalorder %s59, %s75
      %p77 = scmp.eq.s32.totalorder %s11, 0
      %p78 = por %p76, %p77
      %p79 = scmp.le.s32.totalorder 1, %s5
      %p80 = scmp.lt.s32.totalorder %s5, 17
      %p81 = pnand %p79, %p80
      %p82 = pneg %p81
      // Predicated region
      $region9: #{custom-call.47} parent=5 // pred_check
        _
      $region10: #{custom-call.47} parent=5 // pred_check_branch
        %84 = sbr.rel (%p81) target = $region12
      $region11: #{custom-call.47} parent=5 // pred_region
        %s85 = ssub.s32 %s5, 1
      $region12: #{custom-call.47} parent=5 // pred_fallthru
        _
      %p86 = scmp.lt.s32.totalorder %s5, 16
      // Predicated region
      $region13: #{custom-call.47} parent=5 // pred_check
        %p87 = pneg %p86
      $region14: #{custom-call.47} parent=5 // pred_check_branch
        %89 = sbr.rel (%p87) target = $region16
      $region15: #{custom-call.47} parent=5 // pred_region
        %s90 = sand.u32 %s5, 1
        %s91 = sand.u32 %s5, 1
        %s92 = smul.addr %s91, 32
        %s93 = scalar_lea.vmem [#allocation0], %s92
        %s94 = smul.u32 4, %s14
        %s95 = sadd.s32 %s15, %s94
        %s96 = smul.addr %s13, 4
        %s97 = sadd.s32 %s95, %s96
        %s98 = smul.addr %s12, 32
        %s99 = sadd.s32 %s97, %s98
        %s100 = smul.addr %s99, 8
        %s101 = scalar_lea.vmem %s0, %s100
        // Predicated region
        $region17: #{custom-call.47} parent=15 // pred_check
          _
        $region18: #{custom-call.47} parent=15 // pred_check_branch
          %103 = sbr.rel (0) target = $region20
        $region19: #{custom-call.47} parent=15 // pred_region
          // Predicated region
          $region21: #{custom-call.47} parent=19 // pred_check
            _
          $region22: #{custom-call.47} parent=19 // pred_check_branch
            %105 = sbr.rel (0) target = $region24
          $region23: #{custom-call.47} parent=19 // pred_region
            // Predicated region
            $region36: #{custom-call.47} parent=23 // pred_check
              _
            $region37: #{custom-call.47} parent=23 // pred_check_branch
              %127 = sbr.rel (0) target = $region39
            $region38: #{custom-call.47} parent=23 // pred_region
              loop: start=0, step=1, limit=1
              $region40: #{custom-call.47} parent=38 // loop_pre_header
                _
              $region41: #{custom-call.47} parent=38 // loop_header
                %s129 = sphi 0, %s133
                %p130 = scmp.ge.s32.totalorder %s129, 1
                %s134 = sphi %s101, %s101
                %s135 = sphi %s93, %s93
              $region42: #{custom-call.47} parent=38 // loop_header_branch
                %132 = sbr.rel (%p130) target = $region46
              $region43: #{custom-call.47} parent=38 // loop_body
                %v136 = vld [vmem:[%s134] sm:$0xff]
                %137 = vst [vmem:[%s135] sm:$0xff] %v136
                %v138 = vld [vmem:[%s134 + $0x8] sm:$0xff]
                %139 = vst [vmem:[%s135 + $0x8] sm:$0xff] %v138
                %v140 = vld [vmem:[%s134 + $0x10] sm:$0xff]
                %141 = vst [vmem:[%s135 + $0x10] sm:$0xff] %v140
                %v142 = vld [vmem:[%s134 + $0x18] sm:$0xff]
                %143 = vst [vmem:[%s135 + $0x18] sm:$0xff] %v142
              $region44: #{custom-call.47} parent=38 // loop_footer
                %s133 = sadd.s32 1, %s129
              $region45: #{custom-call.47} parent=38 // loop_footer_branch
                %128 = sbr.rel target = $region41
              $region46: #{custom-call.47} parent=38 // loop_exit
                _
            $region39: #{custom-call.47} parent=23 // pred_fallthru
              _
            // Predicated region
            $region47: #{custom-call.47} parent=23 // pred_check
              _
            $region48: #{custom-call.47} parent=23 // pred_check_branch
              %145 = sbr.rel target = $region50
            $region49: #{custom-call.47} parent=23 // pred_region
              _
            $region50: #{custom-call.47} parent=23 // pred_fallthru
              _
          $region24: #{custom-call.47} parent=19 // pred_fallthru
            _
          // Predicated region
          $region25: #{custom-call.47} parent=19 // pred_check
            _
          $region26: #{custom-call.47} parent=19 // pred_check_branch
            %107 = sbr.rel target = $region28
          $region27: #{custom-call.47} parent=19 // pred_region
            %s109 = ssub.s32 256, 1
            loop: start=0, step=1, limit=1
            $region29: #{custom-call.47} parent=27 // loop_pre_header
              _
            $region30: #{custom-call.47} parent=27 // loop_header
              %s111 = sphi 0, %s115
              %p112 = scmp.ge.s32.totalorder %s111, 1
              %s116 = sphi %s101, %s101
              %s117 = sphi %s93, %s93
            $region31: #{custom-call.47} parent=27 // loop_header_branch
              %114 = sbr.rel (%p112) target = $region35
            $region32: #{custom-call.47} parent=27 // loop_body
              %v118 = vld [vmem:[%s116] sm:%s109]
              %119 = vst [vmem:[%s117] sm:%s109] %v118
              %v120 = vld [vmem:[%s116 + $0x8] sm:%s109]
              %121 = vst [vmem:[%s117 + $0x8] sm:%s109] %v120
              %v122 = vld [vmem:[%s116 + $0x10] sm:%s109]
              %123 = vst [vmem:[%s117 + $0x10] sm:%s109] %v122
              %v124 = vld [vmem:[%s116 + $0x18] sm:%s109]
              %125 = vst [vmem:[%s117 + $0x18] sm:%s109] %v124
            $region33: #{custom-call.47} parent=27 // loop_footer
              %s115 = sadd.s32 1, %s111
            $region34: #{custom-call.47} parent=27 // loop_footer_branch
              %110 = sbr.rel target = $region30
            $region35: #{custom-call.47} parent=27 // loop_exit
              _
          $region28: #{custom-call.47} parent=19 // pred_fallthru
            _
        $region20: #{custom-call.47} parent=15 // pred_fallthru
          _
        %146 = vnop
      $region16: #{custom-call.47} parent=5 // pred_fallthru
        _
      %p147 = scmp.le.s32.totalorder 1, %s5
      %p148 = scmp.lt.s32.totalorder %s5, 17
      %p149 = pnand %p147, %p148
      %p150 = pneg %p149
      // Predicated region
      $region51: #{custom-call.47} parent=5 // pred_check
        _
      $region52: #{custom-call.47} parent=5 // pred_check_branch
        %152 = sbr.rel (%p149) target = $region54
      $region53: #{custom-call.47} parent=5 // pred_region
        #allocation3 [shape = 'f32[32,128]{1,0}', space=vmem, size = 0x4000, scoped, tag = 'scratch for Householder reflectors']
        %s153 = ssub.s32 %s5, 1
        %s154 = sand.u32 %s10, 1
        %s155 = sand.u32 %s10, 1
        %s156 = smul.addr %s155, 32
        %s157 = scalar_lea.vmem [#allocation0], %s156
        %s158 = sand.u32 %s10, 1
        %s159 = sand.u32 %s10, 1
        %s160 = smul.addr %s159, 32
        %s161 = scalar_lea.vmem [#allocation0], %s160
        %s162 = sand.u32 %s10, 1
        %s163 = sand.u32 %s10, 1
        %s164 = smul.addr %s163, 32
        %s165 = scalar_lea.vmem [#allocation1], %s164
        %p166 = pneg %p71
        %p167 = pneg %p68
        %s168 = sand.u32 %s58, 1
        %s169 = sand.u32 %s58, 1
        %s170 = smul.addr %s169, 8
        %s171 = scalar_lea.vmem [#allocation2], %s170
        %s172 = smul.u32 4, %s18
        %s173 = smul.u32 4, %s18
        %p174 = scmp.lt.s32.totalorder %s17, 0
        %s175 = ssub.s32 0, %s17
        %s176 = scalar_select %p174, %s175, %s17
        %s177 = sshrl.u32 %s176, 3
        %s178 = ssub.s32 0, %s177
        %s179 = scalar_select %p174, %s178, %s177
        %s180 = sand.u32 %s17, 7
        %s181 = scalar_lea.vmem %s171, %s180 [#allocation2]
        %v182 = vld [vmem:[%s157] sm:$0xff]
        %183 = vst [vmem:[%s165] sm:$0xff] %v182
        %s184 = scalar_lea.vmem %s165, 8 [#allocation1]
        %s185 = scalar_lea.vmem %s157, 8 [#allocation0]
        %v186 = vld [vmem:[%s185] sm:$0xff]
        %187 = vst [vmem:[%s184] sm:$0xff] %v186
        %s188 = scalar_lea.vmem %s165, 16 [#allocation1]
        %s189 = scalar_lea.vmem %s157, 16 [#allocation0]
        %v190 = vld [vmem:[%s189] sm:$0xff]
        %191 = vst [vmem:[%s188] sm:$0xff] %v190
        %s192 = scalar_lea.vmem %s165, 24 [#allocation1]
        %s193 = scalar_lea.vmem %s157, 24 [#allocation0]
        %v194 = vld [vmem:[%s193] sm:$0xff]
        %195 = vst [vmem:[%s192] sm:$0xff] %v194
        %196 = vst [vmem:[%s181] sm:$0x1] 0.0
        loop: start=0, step=1, limit=16
        $region55: #{custom-call.47} parent=53 // loop_pre_header
          _
        $region56: #{custom-call.47} parent=53 // loop_header
          %s198 = sphi 0, %s202
          %p199 = scmp.ge.s32.totalorder %s198, 16
        $region57: #{custom-call.47} parent=53 // loop_header_branch
          %201 = sbr.rel (%p199) target = $region61
        $region58: #{custom-call.47} parent=53 // loop_body
          %v203 = vld [vmem:[%s165] sm:$0xff]
          %v204 = vlaneseq
          %v205 = vshrl.u32 %v204, 7
          %v207 = vstv %s198
          %vm208 = vcmp.gt.s32.totalorder %v205, %v207
          %v209 = vsel %vm208, %v203, 0.0
          %v210 = vmul.f32 %v209, %v209
          %s211 = scalar_lea.vmem %s165, 8 [#allocation1]
          %v212 = vld [vmem:[%s211] sm:$0xff]
          %v213 = vlaneseq
          %v214 = vshrl.u32 %v213, 7
          %v215 = vadd.s32 %v214, 8
          %v216 = vstv %s198
          %vm217 = vcmp.gt.s32.totalorder %v215, %v216
          %v218 = vsel %vm217, %v212, 0.0
          %v219 = vmul.f32 %v218, %v218
          %v220 = vadd.f32 %v210, %v219
          %s221 = scalar_lea.vmem %s165, 16 [#allocation1]
          %v222 = vld [vmem:[%s221] sm:$0xff]
          %v223 = vlaneseq
          %v224 = vshrl.u32 %v223, 7
          %v225 = vadd.s32 %v224, 16
          %v226 = vstv %s198
          %vm227 = vcmp.gt.s32.totalorder %v225, %v226
          %v228 = vsel %vm227, %v222, 0.0
          %v229 = vmul.f32 %v228, %v228
          %v230 = vadd.f32 %v220, %v229
          %s231 = scalar_lea.vmem %s165, 24 [#allocation1]
          %v232 = vld [vmem:[%s231] sm:$0xff]
          %v233 = vlaneseq
          %v234 = vshrl.u32 %v233, 7
          %v235 = vadd.s32 %v234, 24
          %v236 = vstv %s198
          %vm237 = vcmp.gt.s32.totalorder %v235, %v236
          %vm238 = vcmp.lt.s32.totalorder %v235, 32
          %vm239 = vmand %vm237, %vm238
          %v240 = vsel %vm239, %v232, 0.0
          %v241 = vmul.f32 %v240, %v240
          %v242 = vadd.f32 %v230, %v241
          %v243 = vrot.slane %v242, 4
          %v244 = vadd.f32 %v242, %v243
          %v245 = vrot.slane %v244, 2
          %v246 = vadd.f32 %v244, %v245
          %v247 = vrot.slane %v246, 1
          %v248 = vadd.f32 %v246, %v247
          %v249 = vrsqrt.pop %v248
          %v250 = vmul.f32 %v248, %v249
          %vm251 = vcmp.eq.f32.partialorder %v248, inf
          %v252 = vsel %vm251, %v248, %v250
          %vm253 = vcmp.eq.f32.partialorder %v248, 0.0
          %v254 = vand.u32 %v248, 2147483648
          %v255 = vsel %vm253, %v254, %v252
          %vm256 = vcmp.eq.f32.partialorder %v248, 0.0
          %s257 = sshrl.u32 %s198, 3
          %s258 = sand.u32 %s198, 7
          %s259 = smul.addr %s257, 8
          %s260 = sadd.s32 %s258, %s259
          %s261 = scalar_lea.vmem %s165, %s260 [#allocation1]
          %v262 = vld [vmem:[%s261] ss:$0 sm:$0xff]
          %v263 = vand.u32 2147483647, %v262
          %v264 = vmax.f32 %v263, 0.0
          %v265 = vand.u32 2147483647, %v255
          %v266 = vmax.f32 %v264, %v265
          %v267 = vrcp.pop %v266
          %v268 = vmul.f32 %v263, %v267
          %v269 = vmul.f32 %v268, %v268
          %v270 = vrcp.pop %v266
          %v271 = vmul.f32 0.0, %v270
          %v272 = vmul.f32 %v271, %v271
          %v273 = vadd.f32 %v269, %v272
          %v274 = vrcp.pop %v266
          %v275 = vmul.f32 %v265, %v274
          %v276 = vmul.f32 %v275, %v275
          %v277 = vadd.f32 %v273, %v276
          %vm278 = vcmp.eq.f32.partialorder %v266, 0.0
          %v279 = vrsqrt.pop %v277
          %v280 = vmul.f32 %v277, %v279
          %vm281 = vcmp.eq.f32.partialorder %v277, inf
          %v282 = vsel %vm281, %v277, %v280
          %vm283 = vcmp.eq.f32.partialorder %v277, 0.0
          %v284 = vand.u32 %v277, 2147483648
          %v285 = vsel %vm283, %v284, %v282
          %v286 = vmul.f32 %v266, %v285
          %v287 = vsel %vm278, 0.0, %v286
          %vm288 = vcmp.lt.f32.partialorder %v262, 0.0
          %v289 = vxor.u32 %v287, 2147483648
          %v290 = vsel %vm288, %v287, %v289
          %v291 = vsub.f32 %v290, %v262
          %v292 = vrcp.pop %v290
          %v293 = vmul.f32 %v291, %v292
          %v294 = vsel %vm256, %v262, %v290
          %v295 = vsel %vm256, 0.0, %v293
          %v296 = vsub.f32 %v262, %v294
          %s297 = smov %s165
          %v298 = vlaneseq
          %v299 = vshrl.u32 %v298, 7
          %v300 = vmov %v299
          %v301 = vld [vmem:[%s297] sm:$0xff]
          %v303 = vstv %s198
          %vm304 = vcmp.gt.s32.totalorder %v300, %v303
          %v305 = vsel %vm304, %v301, 0.0
          %v306 = vrcp.pop %v296
          %v307 = vmul.f32 %v305, %v306
          %v308 = vsel %vm256, 0.0, %v307
          %v309 = vstv %s198
          %v310 = vlaneseq
          %v311 = vand.u32 %v310, 127
          %vm312 = vcmp.eq.s32.totalorder %v311, %v309
          %v313 = vsel %vm312, %v308, 0.0
          %314 = vadd.xlane.f32.xlu0 %v313
          %v315 = vpop.xlane.xlu0 %314
          %316 = vst [vmem:[#allocation3] sm:$0xff] %v315
          %s317 = scalar_lea.vmem %s297, 8
          %v318 = vld [vmem:[%s317] sm:$0xff]
          %v319 = vadd.s32 %v300, 8
          %v320 = vstv %s198
          %vm321 = vcmp.gt.s32.totalorder %v319, %v320
          %v322 = vsel %vm321, %v318, 0.0
          %v323 = vrcp.pop %v296
          %v324 = vmul.f32 %v322, %v323
          %v325 = vsel %vm256, 0.0, %v324
          %v326 = vstv %s198
          %v327 = vlaneseq
          %v328 = vand.u32 %v327, 127
          %vm329 = vcmp.eq.s32.totalorder %v328, %v326
          %v330 = vsel %vm329, %v325, 0.0
          %331 = vadd.xlane.f32.xlu0 %v330
          %v332 = vpop.xlane.xlu0 %331
          %s333 = scalar_lea.vmem [#allocation3], 8
          %334 = vst [vmem:[%s333] sm:$0xff] %v332
          %s335 = scalar_lea.vmem %s297, 16
          %v336 = vld [vmem:[%s335] sm:$0xff]
          %v337 = vadd.s32 %v300, 16
          %v338 = vstv %s198
          %vm339 = vcmp.gt.s32.totalorder %v337, %v338
          %v340 = vsel %vm339, %v336, 0.0
          %v341 = vrcp.pop %v296
          %v342 = vmul.f32 %v340, %v341
          %v343 = vsel %vm256, 0.0, %v342
          %v344 = vstv %s198
          %v345 = vlaneseq
          %v346 = vand.u32 %v345, 127
          %vm347 = vcmp.eq.s32.totalorder %v346, %v344
          %v348 = vsel %vm347, %v343, 0.0
          %349 = vadd.xlane.f32.xlu0 %v348
          %v350 = vpop.xlane.xlu0 %349
          %s351 = scalar_lea.vmem [#allocation3], 16
          %352 = vst [vmem:[%s351] sm:$0xff] %v350
          %s353 = scalar_lea.vmem %s297, 24
          %v354 = vld [vmem:[%s353] sm:$0xff]
          %v355 = vadd.s32 %v300, 24
          %v356 = vstv %s198
          %vm357 = vcmp.gt.s32.totalorder %v355, %v356
          %vm358 = vcmp.lt.s32.totalorder %v355, 32
          %vm359 = vmand %vm357, %vm358
          %v360 = vsel %vm359, %v354, 0.0
          %v361 = vrcp.pop %v296
          %v362 = vmul.f32 %v360, %v361
          %v363 = vsel %vm256, 0.0, %v362
          %v364 = vstv %s198
          %v365 = vlaneseq
          %v366 = vand.u32 %v365, 127
          %vm367 = vcmp.eq.s32.totalorder %v366, %v364
          %v368 = vsel %vm367, %v363, 0.0
          %369 = vadd.xlane.f32.xlu0 %v368
          %v370 = vpop.xlane.xlu0 %369
          %s371 = scalar_lea.vmem [#allocation3], 24
          %372 = vst [vmem:[%s371] sm:$0xff] %v370
          %s373 = scalar_lea.vmem [#allocation3], %s198
          %374 = vst [vmem:[%s373] sm:$0x1] 1.0
          %v375 = vstv %s198
          %v376 = vlaneseq
          %v377 = vand.u32 %v376, 127
          %vm378 = vcmp.eq.s32.totalorder %v377, %v375
          %v379 = vsel %vm378, %v295, 0.0
          %380 = vadd.xlane.f32.xlu0 %v379
          %v381 = vpop.xlane.xlu0 %380
          %v382 = vstv %s198
          %v383 = vlaneseq
          %v384 = vand.u32 %v383, 127
          %vm385 = vcmp.eq.s32.totalorder %v384, %v382
          %v386 = vld [vmem:[%s181] ss:$0 sm:$0xff]
          %v387 = vsel %vm385, %v381, %v386
          %388 = vst [vmem:[%s181] sm:$0x1] %v387
          %s389 = smov %s165
          %s390 = smov [#allocation3]
          %v391 = vlaneseq
          %v392 = vshrl.u32 %v391, 7
          %v393 = vmov %v392
          %v395 = vld [vmem:[%s390] sm:$0xff]
          %v396 = vld [vmem:[%s389] sm:$0xff]
          %v397 = vmul.f32 %v395, %v396
          %v398 = vadd.s32 %v393, 8
          %s399 = scalar_lea.vmem %s390, 8
          %v400 = vld [vmem:[%s399] sm:$0xff]
          %s401 = scalar_lea.vmem %s389, 8
          %v402 = vld [vmem:[%s401] sm:$0xff]
          %v403 = vmul.f32 %v400, %v402
          %v404 = vadd.f32 %v397, %v403
          %v405 = vadd.s32 %v393, 16
          %s406 = scalar_lea.vmem %s390, 16
          %v407 = vld [vmem:[%s406] sm:$0xff]
          %s408 = scalar_lea.vmem %s389, 16
          %v409 = vld [vmem:[%s408] sm:$0xff]
          %v410 = vmul.f32 %v407, %v409
          %v411 = vadd.f32 %v404, %v410
          %v412 = vadd.s32 %v393, 24
          %s413 = scalar_lea.vmem %s390, 24
          %v414 = vld [vmem:[%s413] sm:$0xff]
          %s415 = scalar_lea.vmem %s389, 24
          %v416 = vld [vmem:[%s415] sm:$0xff]
          %v417 = vmul.f32 %v414, %v416
          %vm418 = vcmp.lt.s32.totalorder %v412, 32
          %v419 = vsel %vm418, %v417, 0.0
          %v420 = vadd.f32 %v411, %v419
          %v421 = vrot.slane %v420, 4
          %v422 = vadd.f32 %v420, %v421
          %v423 = vrot.slane %v422, 2
          %v424 = vadd.f32 %v422, %v423
          %v425 = vrot.slane %v424, 1
          %v426 = vadd.f32 %v424, %v425
          %s427 = smov %s389
          %s428 = smov %s390
          %v429 = vlaneseq
          %v430 = vshrl.u32 %v429, 7
          %v431 = vmov %v430
          %v432 = vmul.f32 %v426, %v381
          %v434 = vlaneseq
          %v435 = vand.u32 %v434, 127
          %v436 = vld [vmem:[%s428] sm:$0xff]
          %v437 = vmul.f32 %v436, %v432
          %v438 = vld [vmem:[%s427] sm:$0xff]
          %v439 = vstv %s198
          %vm440 = vcmp.gt.s32.totalorder %v435, %v439
          %v441 = vsub.f32 %v438, %v437
          %v442 = vsel %vm440, %v441, %v438
          %v443 = vstv %s198
          %v444 = vlaneseq
          %v445 = vand.u32 %v444, 127
          %vm446 = vcmp.eq.s32.totalorder %v445, %v443
          %v447 = vstv %s198
          %vm448 = vcmp.ge.s32.totalorder %v431, %v447
          %vm449 = vmand %vm446, %vm448
          %v450 = vsel %vm449, %v436, %v442
          %451 = vst [vmem:[%s427] sm:$0xff] %v450
          %v452 = vadd.s32 %v431, 8
          %v453 = vlaneseq
          %v454 = vand.u32 %v453, 127
          %s455 = scalar_lea.vmem %s428, 8
          %v456 = vld [vmem:[%s455] sm:$0xff]
          %v457 = vmul.f32 %v456, %v432
          %s458 = scalar_lea.vmem %s427, 8
          %v459 = vld [vmem:[%s458] sm:$0xff]
          %v460 = vstv %s198
          %vm461 = vcmp.gt.s32.totalorder %v454, %v460
          %v462 = vsub.f32 %v459, %v457
          %v463 = vsel %vm461, %v462, %v459
          %v464 = vstv %s198
          %v465 = vlaneseq
          %v466 = vand.u32 %v465, 127
          %vm467 = vcmp.eq.s32.totalorder %v466, %v464
          %v468 = vstv %s198
          %vm469 = vcmp.ge.s32.totalorder %v452, %v468
          %vm470 = vmand %vm467, %vm469
          %v471 = vsel %vm470, %v456, %v463
          %472 = vst [vmem:[%s458] sm:$0xff] %v471
          %v473 = vadd.s32 %v431, 16
          %v474 = vlaneseq
          %v475 = vand.u32 %v474, 127
          %s476 = scalar_lea.vmem %s428, 16
          %v477 = vld [vmem:[%s476] sm:$0xff]
          %v478 = vmul.f32 %v477, %v432
          %s479 = scalar_lea.vmem %s427, 16
          %v480 = vld [vmem:[%s479] sm:$0xff]
          %v481 = vstv %s198
          %vm482 = vcmp.gt.s32.totalorder %v475, %v481
          %v483 = vsub.f32 %v480, %v478
          %v484 = vsel %vm482, %v483, %v480
          %v485 = vstv %s198
          %v486 = vlaneseq
          %v487 = vand.u32 %v486, 127
          %vm488 = vcmp.eq.s32.totalorder %v487, %v485
          %v489 = vstv %s198
          %vm490 = vcmp.ge.s32.totalorder %v473, %v489
          %vm491 = vmand %vm488, %vm490
          %v492 = vsel %vm491, %v477, %v484
          %493 = vst [vmem:[%s479] sm:$0xff] %v492
          %v494 = vadd.s32 %v431, 24
          %v495 = vlaneseq
          %v496 = vand.u32 %v495, 127
          %s497 = scalar_lea.vmem %s428, 24
          %v498 = vld [vmem:[%s497] sm:$0xff]
          %v499 = vmul.f32 %v498, %v432
          %s500 = scalar_lea.vmem %s427, 24
          %v501 = vld [vmem:[%s500] sm:$0xff]
          %v502 = vstv %s198
          %vm503 = vcmp.gt.s32.totalorder %v496, %v502
          %v504 = vsub.f32 %v501, %v499
          %v505 = vsel %vm503, %v504, %v501
          %v506 = vstv %s198
          %v507 = vlaneseq
          %v508 = vand.u32 %v507, 127
          %vm509 = vcmp.eq.s32.totalorder %v508, %v506
          %v510 = vstv %s198
          %vm511 = vcmp.ge.s32.totalorder %v494, %v510
          %vm512 = vmand %vm509, %vm511
          %v513 = vsel %vm512, %v498, %v505
          %514 = vst [vmem:[%s500] sm:$0xff] %v513
          %s515 = scalar_lea.vmem %s427, %s198
          %v516 = vld [vmem:[%s515] ss:$0 sm:$0xff]
          %v517 = vstv %s198
          %v518 = vlaneseq
          %v519 = vand.u32 %v518, 127
          %vm520 = vcmp.eq.s32.totalorder %v519, %v517
          %v521 = vsel %vm520, %v294, %v516
          %522 = vst [vmem:[%s515] sm:$0x1] %v521
        $region59: #{custom-call.47} parent=53 // loop_footer
          %s202 = sadd.s32 1, %s198
        $region60: #{custom-call.47} parent=53 // loop_footer_branch
          %197 = sbr.rel target = $region56
        $region61: #{custom-call.47} parent=53 // loop_exit
          _
        %s523 = sand.u32 %s10, 1
        %s524 = sand.u32 %s10, 1
        %s525 = smul.addr %s524, 32
        %s526 = scalar_lea.vmem [#allocation1], %s525
        %s527 = sand.u32 %s58, 1
        %s528 = sand.u32 %s58, 1
        %s529 = smul.addr %s528, 8
        %s530 = scalar_lea.vmem [#allocation2], %s529
        %s531 = smul.u32 4, %s18
        %s532 = sadd.s32 %s19, %s531
        %s533 = smul.addr %s17, 4
        %s534 = sadd.s32 %s532, %s533
        %s535 = smul.addr %s16, 32
        %s536 = sadd.s32 %s534, %s535
        %s537 = smul.addr %s536, 8
        %s538 = scalar_lea.vmem %s1, %s537
        // Predicated region
        $region62: #{custom-call.47} parent=53 // pred_check
          _
        $region63: #{custom-call.47} parent=53 // pred_check_branch
          %540 = sbr.rel (0) target = $region65
        $region64: #{custom-call.47} parent=53 // pred_region
          // Predicated region
          $region66: #{custom-call.47} parent=64 // pred_check
            _
          $region67: #{custom-call.47} parent=64 // pred_check_branch
            %542 = sbr.rel (0) target = $region69
          $region68: #{custom-call.47} parent=64 // pred_region
            // Predicated region
            $region81: #{custom-call.47} parent=68 // pred_check
              _
            $region82: #{custom-call.47} parent=68 // pred_check_branch
              %564 = sbr.rel (0) target = $region84
            $region83: #{custom-call.47} parent=68 // pred_region
              loop: start=0, step=1, limit=1
              $region85: #{custom-call.47} parent=83 // loop_pre_header
                _
              $region86: #{custom-call.47} parent=83 // loop_header
                %s566 = sphi 0, %s570
                %p567 = scmp.ge.s32.totalorder %s566, 1
                %s571 = sphi %s526, %s526
                %s572 = sphi %s538, %s538
              $region87: #{custom-call.47} parent=83 // loop_header_branch
                %569 = sbr.rel (%p567) target = $region91
              $region88: #{custom-call.47} parent=83 // loop_body
                %v573 = vld [vmem:[%s571] sm:$0xff]
                %574 = vst [vmem:[%s572] sm:$0xff] %v573
                %v575 = vld [vmem:[%s571 + $0x8] sm:$0xff]
                %576 = vst [vmem:[%s572 + $0x8] sm:$0xff] %v575
                %v577 = vld [vmem:[%s571 + $0x10] sm:$0xff]
                %578 = vst [vmem:[%s572 + $0x10] sm:$0xff] %v577
                %v579 = vld [vmem:[%s571 + $0x18] sm:$0xff]
                %580 = vst [vmem:[%s572 + $0x18] sm:$0xff] %v579
              $region89: #{custom-call.47} parent=83 // loop_footer
                %s570 = sadd.s32 1, %s566
              $region90: #{custom-call.47} parent=83 // loop_footer_branch
                %565 = sbr.rel target = $region86
              $region91: #{custom-call.47} parent=83 // loop_exit
                _
            $region84: #{custom-call.47} parent=68 // pred_fallthru
              _
            // Predicated region
            $region92: #{custom-call.47} parent=68 // pred_check
              _
            $region93: #{custom-call.47} parent=68 // pred_check_branch
              %582 = sbr.rel target = $region95
            $region94: #{custom-call.47} parent=68 // pred_region
              _
            $region95: #{custom-call.47} parent=68 // pred_fallthru
              _
          $region69: #{custom-call.47} parent=64 // pred_fallthru
            _
          // Predicated region
          $region70: #{custom-call.47} parent=64 // pred_check
            _
          $region71: #{custom-call.47} parent=64 // pred_check_branch
            %544 = sbr.rel target = $region73
          $region72: #{custom-call.47} parent=64 // pred_region
            %s546 = ssub.s32 256, 1
            loop: start=0, step=1, limit=1
            $region74: #{custom-call.47} parent=72 // loop_pre_header
              _
            $region75: #{custom-call.47} parent=72 // loop_header
              %s548 = sphi 0, %s552
              %p549 = scmp.ge.s32.totalorder %s548, 1
              %s553 = sphi %s526, %s526
              %s554 = sphi %s538, %s538
            $region76: #{custom-call.47} parent=72 // loop_header_branch
              %551 = sbr.rel (%p549) target = $region80
            $region77: #{custom-call.47} parent=72 // loop_body
              %v555 = vld [vmem:[%s553] sm:%s546]
              %556 = vst [vmem:[%s554] sm:%s546] %v555
              %v557 = vld [vmem:[%s553 + $0x8] sm:%s546]
              %558 = vst [vmem:[%s554 + $0x8] sm:%s546] %v557
              %v559 = vld [vmem:[%s553 + $0x10] sm:%s546]
              %560 = vst [vmem:[%s554 + $0x10] sm:%s546] %v559
              %v561 = vld [vmem:[%s553 + $0x18] sm:%s546]
              %562 = vst [vmem:[%s554 + $0x18] sm:%s546] %v561
            $region78: #{custom-call.47} parent=72 // loop_footer
              %s552 = sadd.s32 1, %s548
            $region79: #{custom-call.47} parent=72 // loop_footer_branch
              %547 = sbr.rel target = $region75
            $region80: #{custom-call.47} parent=72 // loop_exit
              _
          $region73: #{custom-call.47} parent=64 // pred_fallthru
            _
        $region65: #{custom-call.47} parent=53 // pred_fallthru
          _
        %583 = vnop
        // Predicated region
        $region96: #{custom-call.47} parent=53 // pred_check
          %p584 = pneg %p68
        $region97: #{custom-call.47} parent=53 // pred_check_branch
          %586 = sbr.rel (%p584) target = $region99
        $region98: #{custom-call.47} parent=53 // pred_region
          %p587 = scmp.lt.s32.totalorder %s17, 0
          %s588 = ssub.s32 0, %s17
          %s589 = scalar_select %p587, %s588, %s17
          %s590 = sshrl.u32 %s589, 3
          %s591 = ssub.s32 0, %s590
          %s592 = scalar_select %p587, %s591, %s590
          %s593 = sadd.s32 %s592, %s16
          %s594 = smul.addr %s593, 8
          %s595 = scalar_lea.vmem %s2, %s594
          // Predicated region
          $region100: #{custom-call.47} parent=98 // pred_check
            _
          $region101: #{custom-call.47} parent=98 // pred_check_branch
            %597 = sbr.rel (0) target = $region103
          $region102: #{custom-call.47} parent=98 // pred_region
            // Predicated region
            $region104: #{custom-call.47} parent=102 // pred_check
              _
            $region105: #{custom-call.47} parent=102 // pred_check_branch
              %599 = sbr.rel (0) target = $region107
            $region106: #{custom-call.47} parent=102 // pred_region
              // Predicated region
              $region119: #{custom-call.47} parent=106 // pred_check
                _
              $region120: #{custom-call.47} parent=106 // pred_check_branch
                %615 = sbr.rel (0) target = $region122
              $region121: #{custom-call.47} parent=106 // pred_region
                loop: start=0, step=1, limit=1
                $region123: #{custom-call.47} parent=121 // loop_pre_header
                  _
                $region124: #{custom-call.47} parent=121 // loop_header
                  %s617 = sphi 0, %s621
                  %p618 = scmp.ge.s32.totalorder %s617, 1
                  %s622 = sphi %s530, %s530
                  %s623 = sphi %s595, %s595
                $region125: #{custom-call.47} parent=121 // loop_header_branch
                  %620 = sbr.rel (%p618) target = $region129
                $region126: #{custom-call.47} parent=121 // loop_body
                  %v624 = vld [vmem:[%s622] sm:$0xff]
                  %625 = vst [vmem:[%s623] sm:$0xff] %v624
                $region127: #{custom-call.47} parent=121 // loop_footer
                  %s621 = sadd.s32 1, %s617
                $region128: #{custom-call.47} parent=121 // loop_footer_branch
                  %616 = sbr.rel target = $region124
                $region129: #{custom-call.47} parent=121 // loop_exit
                  _
              $region122: #{custom-call.47} parent=106 // pred_fallthru
                _
              // Predicated region
              $region130: #{custom-call.47} parent=106 // pred_check
                _
              $region131: #{custom-call.47} parent=106 // pred_check_branch
                %627 = sbr.rel target = $region133
              $region132: #{custom-call.47} parent=106 // pred_region
                _
              $region133: #{custom-call.47} parent=106 // pred_fallthru
                _
            $region107: #{custom-call.47} parent=102 // pred_fallthru
              _
            // Predicated region
            $region108: #{custom-call.47} parent=102 // pred_check
              _
            $region109: #{custom-call.47} parent=102 // pred_check_branch
              %601 = sbr.rel target = $region111
            $region110: #{custom-call.47} parent=102 // pred_region
              %s603 = ssub.s32 256, 1
              loop: start=0, step=1, limit=1
              $region112: #{custom-call.47} parent=110 // loop_pre_header
                _
              $region113: #{custom-call.47} parent=110 // loop_header
                %s605 = sphi 0, %s609
                %p606 = scmp.ge.s32.totalorder %s605, 1
                %s610 = sphi %s530, %s530
                %s611 = sphi %s595, %s595
              $region114: #{custom-call.47} parent=110 // loop_header_branch
                %608 = sbr.rel (%p606) target = $region118
              $region115: #{custom-call.47} parent=110 // loop_body
                %v612 = vld [vmem:[%s610] sm:%s603]
                %613 = vst [vmem:[%s611] sm:%s603] %v612
              $region116: #{custom-call.47} parent=110 // loop_footer
                %s609 = sadd.s32 1, %s605
              $region117: #{custom-call.47} parent=110 // loop_footer_branch
                %604 = sbr.rel target = $region113
              $region118: #{custom-call.47} parent=110 // loop_exit
                _
            $region111: #{custom-call.47} parent=102 // pred_fallthru
              _
          $region103: #{custom-call.47} parent=98 // pred_fallthru
            _
          %628 = vnop
        $region99: #{custom-call.47} parent=53 // pred_fallthru
          _
      $region54: #{custom-call.47} parent=5 // pred_fallthru
        _
      %p629 = scmp.le.s32.totalorder 2, %s5
      // Predicated region
      $region134: #{custom-call.47} parent=5 // pred_check
        %p630 = pneg %p629
      $region135: #{custom-call.47} parent=5 // pred_check_branch
        %632 = sbr.rel (%p630) target = $region137
      $region136: #{custom-call.47} parent=5 // pred_region
        %s633 = ssub.s32 %s5, 2
        %s634 = sand.u32 %s11, 1
        %s635 = sand.u32 %s11, 1
        %s636 = smul.addr %s635, 32
        %s637 = scalar_lea.vmem [#allocation1], %s636
        // Predicated region
        $region138: #{custom-call.47} parent=136 // pred_check
          %p638 = pneg %p74
        $region139: #{custom-call.47} parent=136 // pred_check_branch
          %640 = sbr.rel (%p638) target = $region141
        $region140: #{custom-call.47} parent=136 // pred_region
          %s641 = sand.u32 %s59, 1
          %s642 = sand.u32 %s59, 1
          %s643 = smul.addr %s642, 8
          %s644 = scalar_lea.vmem [#allocation2], %s643
        $region141: #{custom-call.47} parent=136 // pred_fallthru
          _
      $region137: #{custom-call.47} parent=5 // pred_fallthru
        _
    $region6: #{custom-call.47} parent=1 // loop_footer
      %s9 = sadd.s32 1, %s5
    $region7: #{custom-call.47} parent=1 // loop_footer_branch
      %4 = sbr.rel target = $region3
    $region8: #{custom-call.47} parent=1 // loop_exit
      _

// kernel: _forward_impl.1
$region0: #{_forward_impl.1}
  #allocation0 [shape = 'u32[]', space=smem, size = 0x4, offset = 0x4, fixed_abs, tag = 'smem constant byte address 0x4 - core index']
  #allocation1 [shape = 'u32[144,128]{1,0:T(1,128)}', space=vmem, size = 0x12000, scoped, tag = 'internal scratch']
  %s0 = inlined_call_operand.vmem [shape: f32[512,128], index: 0, kind: input, shape index: {}]
  %s1 = inlined_call_operand.vmem [shape: f32[128,128], index: 1, kind: input, shape index: {}]
  %s2 = inlined_call_operand.vmem [shape: f32[1,128], index: 2, kind: input, shape index: {}]
  %s3 = inlined_call_operand.vmem [shape: f32[512,128], index: 3, kind: output, shape index: {}]
  %s4 = sld [smem:[#allocation0]]
  $region45: #{_forward_impl.1} parent=0
    _
  %s6 = ssub.s32 1, %s4
  %s7 = scalar_select 0, %s6, %s4
  loop: start=0, step=1, limit=4
  $region2: #{_forward_impl.1} parent=0 // loop_pre_header
    _
  $region3: #{_forward_impl.1} parent=0 // loop_header
    %s9 = sphi 0, %s13
    %p10 = scmp.ge.s32.totalorder %s9, 4
    %s19 = sphi 0, %s21
    %s22 = sphi 0, %s19
    %s23 = sphi 0, %s22
    %s39 = sphi 0, %s23
    %s43 = sphi 0, %s43
    %s45 = sphi 0, %s43
    %s46 = sphi 0, %s45
    %s60 = sphi 0, %s46
    %s64 = sphi 0, %s64
    %s66 = sphi 0, %s64
    %s67 = sphi 0, %s66
    %s81 = sphi 0, %s67
    %s87 = sphi 0, %s89
    %s90 = sphi 0, %s87
    %s91 = sphi 0, %s90
    %s107 = sphi 0, %s91
  $region4: #{_forward_impl.1} parent=0 // loop_header_branch
    %12 = sbr.rel (%p10) target = $region8
  $region5: #{_forward_impl.1} parent=0 // loop_body
    %s14 = ssub.s32 %s9, 1
    %s15 = ssub.s32 %s9, 2
    %s16 = sadd.s32 %s9, 1
    %s17 = ssub.s32 %s9, %s16
    %p18 = scmp.eq.s32.totalorder %s17, 0
    %s20 = sadd.s32 %s19, 1
    %s21 = scalar_select %p18, %s19, %s20
    %p24 = pneg %p18
    %p25 = scmp.eq.s32.totalorder %s9, 1
    %p26 = por %p24, %p25
    %p27 = scmp.ne.s32.totalorder %s19, %s22
    %p28 = scmp.eq.s32.totalorder %s9, 0
    %p29 = por %p27, %p28
    %p30 = scmp.ne.s32.totalorder %s19, %s22
    %p31 = scmp.eq.s32.totalorder %s14, 1
    %p32 = por %p30, %p31
    %p33 = scmp.ne.s32.totalorder %s22, %s23
    %p34 = scmp.eq.s32.totalorder %s14, 0
    %p35 = por %p33, %p34
    %p36 = scmp.ne.s32.totalorder %s22, %s23
    %p37 = scmp.eq.s32.totalorder %s15, 1
    %p38 = por %p36, %p37
    %p40 = scmp.ne.s32.totalorder %s23, %s39
    %p41 = scmp.eq.s32.totalorder %s15, 0
    %p42 = por %p40, %p41
    %s44 = sadd.s32 %s43, 1
    %p47 = scmp.eq.s32.totalorder %s9, 1
    %p48 = scmp.ne.s32.totalorder %s43, %s45
    %p49 = scmp.eq.s32.totalorder %s9, 0
    %p50 = por %p48, %p49
    %p51 = scmp.ne.s32.totalorder %s43, %s45
    %p52 = scmp.eq.s32.totalorder %s14, 1
    %p53 = por %p51, %p52
    %p54 = scmp.ne.s32.totalorder %s45, %s46
    %p55 = scmp.eq.s32.totalorder %s14, 0
    %p56 = por %p54, %p55
    %p57 = scmp.ne.s32.totalorder %s45, %s46
    %p58 = scmp.eq.s32.totalorder %s15, 1
    %p59 = por %p57, %p58
    %p61 = scmp.ne.s32.totalorder %s46, %s60
    %p62 = scmp.eq.s32.totalorder %s15, 0
    %p63 = por %p61, %p62
    %s65 = sadd.s32 %s64, 1
    %p68 = scmp.eq.s32.totalorder %s9, 1
    %p69 = scmp.ne.s32.totalorder %s64, %s66
    %p70 = scmp.eq.s32.totalorder %s9, 0
    %p71 = por %p69, %p70
    %p72 = scmp.ne.s32.totalorder %s64, %s66
    %p73 = scmp.eq.s32.totalorder %s14, 1
    %p74 = por %p72, %p73
    %p75 = scmp.ne.s32.totalorder %s66, %s67
    %p76 = scmp.eq.s32.totalorder %s14, 0
    %p77 = por %p75, %p76
    %p78 = scmp.ne.s32.totalorder %s66, %s67
    %p79 = scmp.eq.s32.totalorder %s15, 1
    %p80 = por %p78, %p79
    %p82 = scmp.ne.s32.totalorder %s67, %s81
    %p83 = scmp.eq.s32.totalorder %s15, 0
    %p84 = por %p82, %p83
    %s85 = ssub.s32 %s9, %s16
    %p86 = scmp.eq.s32.totalorder %s85, 0
    %s88 = sadd.s32 %s87, 1
    %s89 = scalar_select %p86, %s87, %s88
    %p92 = pneg %p86
    %p93 = scmp.eq.s32.totalorder %s9, 1
    %p94 = por %p92, %p93
    %p95 = scmp.ne.s32.totalorder %s87, %s90
    %p96 = scmp.eq.s32.totalorder %s9, 0
    %p97 = por %p95, %p96
    %p98 = scmp.ne.s32.totalorder %s87, %s90
    %p99 = scmp.eq.s32.totalorder %s14, 1
    %p100 = por %p98, %p99
    %p101 = scmp.ne.s32.totalorder %s90, %s91
    %p102 = scmp.eq.s32.totalorder %s14, 0
    %p103 = por %p101, %p102
    %p104 = scmp.ne.s32.totalorder %s90, %s91
    %p105 = scmp.eq.s32.totalorder %s15, 1
    %p106 = por %p104, %p105
    %p108 = scmp.ne.s32.totalorder %s91, %s107
    %p109 = scmp.eq.s32.totalorder %s15, 0
    %p110 = por %p108, %p109
    %p111 = scmp.le.s32.totalorder 1, %s9
    %p112 = scmp.lt.s32.totalorder %s9, 3
    %p113 = pnand %p111, %p112
    %p114 = pneg %p113
    // Predicated region
    $region9: #{_forward_impl.1} parent=5 // pred_check
      _
    $region10: #{_forward_impl.1} parent=5 // pred_check_branch
      %116 = sbr.rel (%p113) target = $region12
    $region11: #{_forward_impl.1} parent=5 // pred_region
      %s117 = ssub.s32 %s9, 1
      // Predicated region
      $region13: #{_forward_impl.1} parent=11 // pred_check
        %p118 = pneg %p56
      $region14: #{_forward_impl.1} parent=11 // pred_check_branch
        %120 = sbr.rel (%p118) target = $region16
      $region15: #{_forward_impl.1} parent=11 // pred_region
        _
      $region16: #{_forward_impl.1} parent=11 // pred_fallthru
        _
      // Predicated region
      $region17: #{_forward_impl.1} parent=11 // pred_check
        %p121 = pneg %p77
      $region18: #{_forward_impl.1} parent=11 // pred_check_branch
        %123 = sbr.rel (%p121) target = $region20
      $region19: #{_forward_impl.1} parent=11 // pred_region
        _
      $region20: #{_forward_impl.1} parent=11 // pred_fallthru
        _
    $region12: #{_forward_impl.1} parent=5 // pred_fallthru
      _
    %p124 = scmp.lt.s32.totalorder %s9, 2
    // Predicated region
    $region21: #{_forward_impl.1} parent=5 // pred_check
      %p125 = pneg %p124
    $region22: #{_forward_impl.1} parent=5 // pred_check_branch
      %127 = sbr.rel (%p125) target = $region24
    $region23: #{_forward_impl.1} parent=5 // pred_region
      // Predicated region
      $region25: #{_forward_impl.1} parent=23 // pred_check
        %p128 = pneg %p29
      $region26: #{_forward_impl.1} parent=23 // pred_check_branch
        %130 = sbr.rel (%p128) target = $region28
      $region27: #{_forward_impl.1} parent=23 // pred_region
        %s131 = smul.u32 32, %s9
        %p132 = scmp.lt.s32.totalorder %s131, 63
        %s133 = scalar_select %p132, %s131, 63
        %s134 = smul.addr %s133, 8
        %s135 = scalar_lea.vmem %s0, %s134
        %s136 = smul.u32 32, %s9
      $region28: #{_forward_impl.1} parent=23 // pred_fallthru
        _
    $region24: #{_forward_impl.1} parent=5 // pred_fallthru
      _
    %p137 = scmp.le.s32.totalorder 1, %s9
    %p138 = scmp.lt.s32.totalorder %s9, 3
    %p139 = pnand %p137, %p138
    %p140 = pneg %p139
    // Predicated region
    $region29: #{_forward_impl.1} parent=5 // pred_check
      _
    $region30: #{_forward_impl.1} parent=5 // pred_check_branch
      %142 = sbr.rel (%p139) target = $region32
    $region31: #{_forward_impl.1} parent=5 // pred_region
      %s143 = ssub.s32 %s9, 1
      %s144 = smul.u32 32, %s14
      %p145 = scmp.lt.s32.totalorder %s144, 63
      %s146 = scalar_select %p145, %s144, 63
      %s147 = smul.addr %s146, 8
      %s148 = scalar_lea.vmem %s0, %s147
      %p149 = pneg %p35
      %p150 = pneg %p32
      %p151 = pneg %p56
      %p152 = pneg %p53
      %p153 = pneg %p77
      %p154 = pneg %p74
      %p155 = pneg %p103
      %p156 = pneg %p100
      %s157 = smul.u32 32, %s14
      %p158 = scmp.lt.s32.totalorder %s157, 63
      %s159 = scalar_select %p158, %s157, 63
      %s160 = smul.addr %s159, 8
      %s161 = scalar_lea.vmem %s3, %s160
      %s162 = smul.u32 32, %s14
      %p163 = scmp.lt.s32.totalorder %s162, 63
      %s164 = scalar_select %p163, %s162, 63
      %s165 = smul.addr %s164, 8
      %s166 = scalar_lea.vmem %s0, %s165
      %s167 = smul.u32 32, %s14
      %s168 = smul.u32 32, %s14
      %p169 = scmp.lt.s32.totalorder %s168, 63
      %s170 = scalar_select %p169, %s168, 63
      %s171 = smul.addr %s170, 8
      %s172 = scalar_lea.vmem %s3, %s171
      %s173 = smul.u32 32, %s14
      %v174 = vld [vmem:[%s166] sm:$0xff]
      %v175 = vld [vmem:[%s166 + $0x8] sm:$0xff]
      %v176 = vld [vmem:[%s166 + $0x10] sm:$0xff]
      %v177 = vld [vmem:[%s166 + $0x18] sm:$0xff]
      %v178 = vld [vmem:[%s166 + $0x20] sm:$0xff]
      %v179 = vld [vmem:[%s166 + $0x28] sm:$0xff]
      %v180 = vld [vmem:[%s166 + $0x30] sm:$0xff]
      %v181 = vld [vmem:[%s166 + $0x38] sm:$0xff]
      %v182 = vld [vmem:[%s166 + $0x40] sm:$0xff]
      %v183 = vld [vmem:[%s166 + $0x48] sm:$0xff]
      %v184 = vld [vmem:[%s166 + $0x50] sm:$0xff]
      %v185 = vld [vmem:[%s166 + $0x58] sm:$0xff]
      %v186 = vld [vmem:[%s166 + $0x60] sm:$0xff]
      %v187 = vld [vmem:[%s166 + $0x68] sm:$0xff]
      %v188 = vld [vmem:[%s166 + $0x70] sm:$0xff]
      %v189 = vld [vmem:[%s166 + $0x78] sm:$0xff]
      %v190 = vld [vmem:[%s166 + $0x80] sm:$0xff]
      %v191 = vld [vmem:[%s166 + $0x88] sm:$0xff]
      %v192 = vld [vmem:[%s166 + $0x90] sm:$0xff]
      %v193 = vld [vmem:[%s166 + $0x98] sm:$0xff]
      %v194 = vld [vmem:[%s166 + $0xa0] sm:$0xff]
      %v195 = vld [vmem:[%s166 + $0xa8] sm:$0xff]
      %v196 = vld [vmem:[%s166 + $0xb0] sm:$0xff]
      %v197 = vld [vmem:[%s166 + $0xb8] sm:$0xff]
      %v198 = vld [vmem:[%s166 + $0xc0] sm:$0xff]
      %v199 = vld [vmem:[%s166 + $0xc8] sm:$0xff]
      %v200 = vld [vmem:[%s166 + $0xd0] sm:$0xff]
      %v201 = vld [vmem:[%s166 + $0xd8] sm:$0xff]
      %v202 = vld [vmem:[%s166 + $0xe0] sm:$0xff]
      %v203 = vld [vmem:[%s166 + $0xe8] sm:$0xff]
      %v204 = vld [vmem:[%s166 + $0xf0] sm:$0xff]
      %v205 = vld [vmem:[%s166 + $0xf8] sm:$0xff]
      %v206 = vld [vmem:[%s1] sm:$0xff]
      %v207 = vld [vmem:[%s1 + $0x8] sm:$0xff]
      %v208 = vld [vmem:[%s1 + $0x10] sm:$0xff]
      %v209 = vld [vmem:[%s1 + $0x18] sm:$0xff]
      %v210 = vld [vmem:[%s1 + $0x20] sm:$0xff]
      %v211 = vld [vmem:[%s1 + $0x28] sm:$0xff]
      %v212 = vld [vmem:[%s1 + $0x30] sm:$0xff]
      %v213 = vld [vmem:[%s1 + $0x38] sm:$0xff]
      %v214 = vld [vmem:[%s1 + $0x40] sm:$0xff]
      %v215 = vld [vmem:[%s1 + $0x48] sm:$0xff]
      %v216 = vld [vmem:[%s1 + $0x50] sm:$0xff]
      %v217 = vld [vmem:[%s1 + $0x58] sm:$0xff]
      %v218 = vld [vmem:[%s1 + $0x60] sm:$0xff]
      %v219 = vld [vmem:[%s1 + $0x68] sm:$0xff]
      %v220 = vld [vmem:[%s1 + $0x70] sm:$0xff]
      %v221 = vld [vmem:[%s1 + $0x78] sm:$0xff]
      %v222 = vld [vmem:[%s2] sm:$0x1]
      %v224 = vlaneseq
      %v225 = vshrl.u32 %v224, 7
      %v226 = vsub.s32 0, %v225
      %v227 = vrot.slane %v222, %v226
      %229 = vmatprep.subr.mxu0 0.0
      %230 = vmatpush1.msra.mxu0 %v221
      %231 = vmatprep.subr.mxu0 0.0
      %232 = vmatpush1.msra.mxu0 %v220
      %233 = vmatprep.subr.mxu0 0.0
      %234 = vmatpush1.msra.mxu0 %v219
      %235 = vmatprep.subr.mxu0 0.0
      %236 = vmatpush1.msra.mxu0 %v218
      %237 = vmatprep.subr.mxu0 0.0
      %238 = vmatpush1.msra.mxu0 %v217
      %239 = vmatprep.subr.mxu0 0.0
      %240 = vmatpush1.msra.mxu0 %v216
      %241 = vmatprep.subr.mxu0 0.0
      %242 = vmatpush1.msra.mxu0 %v215
      %243 = vmatprep.subr.mxu0 0.0
      %244 = vmatpush1.msra.mxu0 %v214
      %245 = vmatprep.subr.mxu0 0.0
      %246 = vmatpush1.msra.mxu0 %v213
      %247 = vmatprep.subr.mxu0 0.0
      %248 = vmatpush1.msra.mxu0 %v212
      %249 = vmatprep.subr.mxu0 0.0
      %250 = vmatpush1.msra.mxu0 %v211
      %251 = vmatprep.subr.mxu0 0.0
      %252 = vmatpush1.msra.mxu0 %v210
      %253 = vmatprep.subr.mxu0 0.0
      %254 = vmatpush1.msra.mxu0 %v209
      %255 = vmatprep.subr.mxu0 0.0
      %256 = vmatpush1.msra.mxu0 %v208
      %257 = vmatprep.subr.mxu0 0.0
      %258 = vmatpush1.msra.mxu0 %v207
      %259 = vmatprep.subr.mxu0 0.0
      %260 = vmatpush1.msra.mxu0 %v206
      %261 = vmatprep.subr.mxu0 0.0
      %262 = vmatpush2.msra.mxu0 0.0
      %263 = vmatprep.subr.mxu0 0.0
      %264 = vmatpush2.msra.mxu0 0.0
      %265 = vmatprep.subr.mxu0 0.0
      %266 = vmatpush2.msra.mxu0 0.0
      %267 = vmatprep.subr.mxu0 0.0
      %268 = vmatpush2.msra.mxu0 0.0
      %269 = vmatprep.subr.mxu0 0.0
      %270 = vmatpush2.msra.mxu0 0.0
      %271 = vmatprep.subr.mxu0 0.0
      %272 = vmatpush2.msra.mxu0 0.0
      %273 = vmatprep.subr.mxu0 0.0
      %274 = vmatpush2.msra.mxu0 0.0
      %275 = vmatprep.subr.mxu0 0.0
      %276 = vmatpush2.msra.mxu0 0.0
      %277 = vmatprep.subr.mxu0 0.0
      %278 = vmatpush2.msra.mxu0 0.0
      %279 = vmatprep.subr.mxu0 0.0
      %280 = vmatpush2.msra.mxu0 0.0
      %281 = vmatprep.subr.mxu0 0.0
      %282 = vmatpush2.msra.mxu0 0.0
      %283 = vmatprep.subr.mxu0 0.0
      %284 = vmatpush2.msra.mxu0 0.0
      %285 = vmatprep.subr.mxu0 0.0
      %286 = vmatpush2.msra.mxu0 0.0
      %287 = vmatprep.subr.mxu0 0.0
      %288 = vmatpush2.msra.mxu0 0.0
      %289 = vmatprep.subr.mxu0 0.0
      %290 = vmatpush2.msra.mxu0 0.0
      %291 = vmatprep.subr.mxu0 0.0
      %292 = vmatpush2.msra.mxu0 0.0
      %293 = vmatprep.mubr.f32.mxu0 0.0
      %294 = vmatmul.mubr.f32.gmra.mxu0 %v174
      %v295 = vpop.f32.mrf.mxu0
      %v296 = vadd.f32 %v227, %v295
      %v297 = vpop.f32.mrf.mxu0
      %298 = vmatprep.mubr.f32.mxu0 0.0
      %299 = vmatmul.mubr.f32.gmra.mxu0 %v175
      %v300 = vpop.f32.mrf.mxu0
      %v301 = vadd.f32 %v227, %v300
      %v302 = vpop.f32.mrf.mxu0
      %303 = vmatprep.mubr.f32.mxu0 0.0
      %304 = vmatmul.mubr.f32.gmra.mxu0 %v176
      %v305 = vpop.f32.mrf.mxu0
      %v306 = vadd.f32 %v227, %v305
      %v307 = vpop.f32.mrf.mxu0
      %308 = vmatprep.mubr.f32.mxu0 0.0
      %309 = vmatmul.mubr.f32.gmra.mxu0 %v177
      %v310 = vpop.f32.mrf.mxu0
      %v311 = vadd.f32 %v227, %v310
      %v312 = vpop.f32.mrf.mxu0
      %313 = vmatprep.mubr.f32.mxu0 0.0
      %314 = vmatmul.mubr.f32.gmra.mxu0 %v178
      %v315 = vpop.f32.mrf.mxu0
      %v316 = vadd.f32 %v227, %v315
      %v317 = vpop.f32.mrf.mxu0
      %318 = vmatprep.mubr.f32.mxu0 0.0
      %319 = vmatmul.mubr.f32.gmra.mxu0 %v179
      %v320 = vpop.f32.mrf.mxu0
      %v321 = vadd.f32 %v227, %v320
      %v322 = vpop.f32.mrf.mxu0
      %323 = vmatprep.mubr.f32.mxu0 0.0
      %324 = vmatmul.mubr.f32.gmra.mxu0 %v180
      %v325 = vpop.f32.mrf.mxu0
      %v326 = vadd.f32 %v227, %v325
      %v327 = vpop.f32.mrf.mxu0
      %328 = vmatprep.mubr.f32.mxu0 0.0
      %329 = vmatmul.mubr.f32.gmra.mxu0 %v181
      %v330 = vpop.f32.mrf.mxu0
      %v331 = vadd.f32 %v227, %v330
      %v332 = vpop.f32.mrf.mxu0
      %333 = vmatprep.mubr.f32.mxu0 0.0
      %334 = vmatmul.mubr.f32.gmra.mxu0 %v182
      %v335 = vpop.f32.mrf.mxu0
      %v336 = vadd.f32 %v227, %v335
      %v337 = vpop.f32.mrf.mxu0
      %338 = vmatprep.mubr.f32.mxu0 0.0
      %339 = vmatmul.mubr.f32.gmra.mxu0 %v183
      %v340 = vpop.f32.mrf.mxu0
      %v341 = vadd.f32 %v227, %v340
      %v342 = vpop.f32.mrf.mxu0
      %343 = vmatprep.mubr.f32.mxu0 0.0
      %344 = vmatmul.mubr.f32.gmra.mxu0 %v184
      %v345 = vpop.f32.mrf.mxu0
      %v346 = vadd.f32 %v227, %v345
      %v347 = vpop.f32.mrf.mxu0
      %348 = vmatprep.mubr.f32.mxu0 0.0
      %349 = vmatmul.mubr.f32.gmra.mxu0 %v185
      %v350 = vpop.f32.mrf.mxu0
      %v351 = vadd.f32 %v227, %v350
      %v352 = vpop.f32.mrf.mxu0
      %353 = vmatprep.mubr.f32.mxu0 0.0
      %354 = vmatmul.mubr.f32.gmra.mxu0 %v186
      %v355 = vpop.f32.mrf.mxu0
      %v356 = vadd.f32 %v227, %v355
      %v357 = vpop.f32.mrf.mxu0
      %358 = vmatprep.mubr.f32.mxu0 0.0
      %359 = vmatmul.mubr.f32.gmra.mxu0 %v187
      %v360 = vpop.f32.mrf.mxu0
      %v361 = vadd.f32 %v227, %v360
      %v362 = vpop.f32.mrf.mxu0
      %363 = vmatprep.mubr.f32.mxu0 0.0
      %364 = vmatmul.mubr.f32.gmra.mxu0 %v188
      %v365 = vpop.f32.mrf.mxu0
      %v366 = vadd.f32 %v227, %v365
      %v367 = vpop.f32.mrf.mxu0
      %368 = vmatprep.mubr.f32.mxu0 0.0
      %369 = vmatmul.mubr.f32.gmra.mxu0 %v189
      %v370 = vpop.f32.mrf.mxu0
      %v371 = vadd.f32 %v227, %v370
      %v372 = vpop.f32.mrf.mxu0
      %373 = vmatprep.mubr.f32.mxu0 0.0
      %374 = vmatmul.mubr.f32.gmra.mxu0 %v190
      %v375 = vpop.f32.mrf.mxu0
      %v376 = vadd.f32 %v227, %v375
      %v377 = vpop.f32.mrf.mxu0
      %378 = vmatprep.mubr.f32.mxu0 0.0
      %379 = vmatmul.mubr.f32.gmra.mxu0 %v191
      %v380 = vpop.f32.mrf.mxu0
      %v381 = vadd.f32 %v227, %v380
      %v382 = vpop.f32.mrf.mxu0
      %383 = vmatprep.mubr.f32.mxu0 0.0
      %384 = vmatmul.mubr.f32.gmra.mxu0 %v192
      %v385 = vpop.f32.mrf.mxu0
      %v386 = vadd.f32 %v227, %v385
      %v387 = vpop.f32.mrf.mxu0
      %388 = vmatprep.mubr.f32.mxu0 0.0
      %389 = vmatmul.mubr.f32.gmra.mxu0 %v193
      %v390 = vpop.f32.mrf.mxu0
      %v391 = vadd.f32 %v227, %v390
      %v392 = vpop.f32.mrf.mxu0
      %393 = vmatprep.mubr.f32.mxu0 0.0
      %394 = vmatmul.mubr.f32.gmra.mxu0 %v194
      %v395 = vpop.f32.mrf.mxu0
      %v396 = vadd.f32 %v227, %v395
      %v397 = vpop.f32.mrf.mxu0
      %398 = vmatprep.mubr.f32.mxu0 0.0
      %399 = vmatmul.mubr.f32.gmra.mxu0 %v195
      %v400 = vpop.f32.mrf.mxu0
      %v401 = vadd.f32 %v227, %v400
      %v402 = vpop.f32.mrf.mxu0
      %403 = vmatprep.mubr.f32.mxu0 0.0
      %404 = vmatmul.mubr.f32.gmra.mxu0 %v196
      %v405 = vpop.f32.mrf.mxu0
      %v406 = vadd.f32 %v227, %v405
      %v407 = vpop.f32.mrf.mxu0
      %408 = vmatprep.mubr.f32.mxu0 0.0
      %409 = vmatmul.mubr.f32.gmra.mxu0 %v197
      %v410 = vpop.f32.mrf.mxu0
      %v411 = vadd.f32 %v227, %v410
      %v412 = vpop.f32.mrf.mxu0
      %413 = vmatprep.mubr.f32.mxu0 0.0
      %414 = vmatmul.mubr.f32.gmra.mxu0 %v198
      %v415 = vpop.f32.mrf.mxu0
      %v416 = vadd.f32 %v227, %v415
      %v417 = vpop.f32.mrf.mxu0
      %418 = vmatprep.mubr.f32.mxu0 0.0
      %419 = vmatmul.mubr.f32.gmra.mxu0 %v199
      %v420 = vpop.f32.mrf.mxu0
      %v421 = vadd.f32 %v227, %v420
      %v422 = vpop.f32.mrf.mxu0
      %423 = vmatprep.mubr.f32.mxu0 0.0
      %424 = vmatmul.mubr.f32.gmra.mxu0 %v200
      %v425 = vpop.f32.mrf.mxu0
      %v426 = vadd.f32 %v227, %v425
      %v427 = vpop.f32.mrf.mxu0
      %428 = vmatprep.mubr.f32.mxu0 0.0
      %429 = vmatmul.mubr.f32.gmra.mxu0 %v201
      %v430 = vpop.f32.mrf.mxu0
      %v431 = vadd.f32 %v227, %v430
      %v432 = vpop.f32.mrf.mxu0
      %433 = vmatprep.mubr.f32.mxu0 0.0
      %434 = vmatmul.mubr.f32.gmra.mxu0 %v202
      %v435 = vpop.f32.mrf.mxu0
      %v436 = vadd.f32 %v227, %v435
      %v437 = vpop.f32.mrf.mxu0
      %438 = vmatprep.mubr.f32.mxu0 0.0
      %439 = vmatmul.mubr.f32.gmra.mxu0 %v203
      %v440 = vpop.f32.mrf.mxu0
      %v441 = vadd.f32 %v227, %v440
      %v442 = vpop.f32.mrf.mxu0
      %443 = vmatprep.mubr.f32.mxu0 0.0
      %444 = vmatmul.mubr.f32.gmra.mxu0 %v204
      %v445 = vpop.f32.mrf.mxu0
      %v446 = vadd.f32 %v227, %v445
      %v447 = vpop.f32.mrf.mxu0
      %448 = vmatprep.mubr.f32.mxu0 0.0
      %449 = vmatmul.mubr.f32.gmra.mxu0 %v205
      %v450 = vpop.f32.mrf.mxu0
      %v451 = vadd.f32 %v227, %v450
      %v452 = vpop.f32.mrf.mxu0
      %453 = vdwg.mxu0
      %454 = vst [vmem:[%s172] sm:$0xff] %v296
      %455 = vst [vmem:[%s172 + $0x8] sm:$0xff] %v301
      %456 = vst [vmem:[%s172 + $0x10] sm:$0xff] %v306
      %457 = vst [vmem:[%s172 + $0x18] sm:$0xff] %v311
      %458 = vst [vmem:[%s172 + $0x20] sm:$0xff] %v316
      %459 = vst [vmem:[%s172 + $0x28] sm:$0xff] %v321
      %460 = vst [vmem:[%s172 + $0x30] sm:$0xff] %v326
      %461 = vst [vmem:[%s172 + $0x38] sm:$0xff] %v331
      %462 = vst [vmem:[%s172 + $0x40] sm:$0xff] %v336
      %463 = vst [vmem:[%s172 + $0x48] sm:$0xff] %v341
      %464 = vst [vmem:[%s172 + $0x50] sm:$0xff] %v346
      %465 = vst [vmem:[%s172 + $0x58] sm:$0xff] %v351
      %466 = vst [vmem:[%s172 + $0x60] sm:$0xff] %v356
      %467 = vst [vmem:[%s172 + $0x68] sm:$0xff] %v361
      %468 = vst [vmem:[%s172 + $0x70] sm:$0xff] %v366
      %469 = vst [vmem:[%s172 + $0x78] sm:$0xff] %v371
      %470 = vst [vmem:[%s172 + $0x80] sm:$0xff] %v376
      %471 = vst [vmem:[%s172 + $0x88] sm:$0xff] %v381
      %472 = vst [vmem:[%s172 + $0x90] sm:$0xff] %v386
      %473 = vst [vmem:[%s172 + $0x98] sm:$0xff] %v391
      %474 = vst [vmem:[%s172 + $0xa0] sm:$0xff] %v396
      %475 = vst [vmem:[%s172 + $0xa8] sm:$0xff] %v401
      %476 = vst [vmem:[%s172 + $0xb0] sm:$0xff] %v406
      %477 = vst [vmem:[%s172 + $0xb8] sm:$0xff] %v411
      %478 = vst [vmem:[%s172 + $0xc0] sm:$0xff] %v416
      %479 = vst [vmem:[%s172 + $0xc8] sm:$0xff] %v421
      %480 = vst [vmem:[%s172 + $0xd0] sm:$0xff] %v426
      %481 = vst [vmem:[%s172 + $0xd8] sm:$0xff] %v431
      %482 = vst [vmem:[%s172 + $0xe0] sm:$0xff] %v436
      %483 = vst [vmem:[%s172 + $0xe8] sm:$0xff] %v441
      %484 = vst [vmem:[%s172 + $0xf0] sm:$0xff] %v446
      %485 = vst [vmem:[%s172 + $0xf8] sm:$0xff] %v451
      %s486 = smul.u32 32, %s14
      %p487 = scmp.lt.s32.totalorder %s486, 63
      %s488 = scalar_select %p487, %s486, 63
      %s489 = smul.addr %s488, 8
      %s490 = scalar_lea.vmem %s3, %s489
      // Predicated region
      $region33: #{_forward_impl.1} parent=31 // pred_check
        %p491 = pneg %p100
      $region34: #{_forward_impl.1} parent=31 // pred_check_branch
        %493 = sbr.rel (%p491) target = $region36
      $region35: #{_forward_impl.1} parent=31 // pred_region
        %s494 = smul.u32 32, %s14
      $region36: #{_forward_impl.1} parent=31 // pred_fallthru
        _
    $region32: #{_forward_impl.1} parent=5 // pred_fallthru
      _
    %p495 = scmp.le.s32.totalorder 2, %s9
    // Predicated region
    $region37: #{_forward_impl.1} parent=5 // pred_check
      %p496 = pneg %p495
    $region38: #{_forward_impl.1} parent=5 // pred_check_branch
      %498 = sbr.rel (%p496) target = $region40
    $region39: #{_forward_impl.1} parent=5 // pred_region
      %s499 = ssub.s32 %s9, 2
      // Predicated region
      $region41: #{_forward_impl.1} parent=39 // pred_check
        %p500 = pneg %p106
      $region42: #{_forward_impl.1} parent=39 // pred_check_branch
        %502 = sbr.rel (%p500) target = $region44
      $region43: #{_forward_impl.1} parent=39 // pred_region
        %s503 = smul.u32 32, %s15
        %p504 = scmp.lt.s32.totalorder %s503, 63
        %s505 = scalar_select %p504, %s503, 63
        %s506 = smul.addr %s505, 8
        %s507 = scalar_lea.vmem %s3, %s506
      $region44: #{_forward_impl.1} parent=39 // pred_fallthru
        _
    $region40: #{_forward_impl.1} parent=5 // pred_fallthru
      _
  $region6: #{_forward_impl.1} parent=0 // loop_footer
    %s13 = sadd.s32 1, %s9
  $region7: #{_forward_impl.1} parent=0 // loop_footer_branch
    %8 = sbr.rel target = $region3
  $region8: #{_forward_impl.1} parent=0 // loop_exit
    _

// kernel: custom-call.48
$region0: #{custom-call.48}
  %s0 = inlined_call_operand.vmem [shape: f32[2,8,16,16], index: 0, kind: input, shape index: {}]
  %s1 = inlined_call_operand.vmem [shape: f32[2,8,16,16], index: 1, kind: output, shape index: {}]
  $region1: #{custom-call.48} parent=0
    #allocation0 [shape = 'u8[16384]{0}', space=vmem, size = 0x4000, scoped, tag = 'operand span for operand 0']
    #allocation1 [shape = 'u8[16384]{0}', space=vmem, size = 0x4000, scoped, tag = 'operand span for operand 1']
    loop: start=0, step=1, limit=18
    $region2: #{custom-call.48} parent=1 // loop_pre_header
      _
    $region3: #{custom-call.48} parent=1 // loop_header
      %s3 = sphi 0, %s7
      %p4 = scmp.ge.s32.totalorder %s3, 18
      %s10 = sphi 0, %s22
      %s11 = sphi 0, %s18
      %s12 = sphi 0, %s10
      %s13 = sphi 0, %s11
      %s14 = sphi 0, %s12
      %s15 = sphi 0, %s13
    $region4: #{custom-call.48} parent=1 // loop_header_branch
      %6 = sbr.rel (%p4) target = $region8
    $region5: #{custom-call.48} parent=1 // loop_body
      %s8 = ssub.s32 %s3, 1
      %s9 = ssub.s32 %s3, 2
      %s16 = sadd.s32 1, %s11
      %p17 = scmp.ge.s32.totalorder %s16, 8
      %s18 = scalar_select %p17, 0, %s16
      %s19 = sadd.s32 1, %s10
      %s20 = scalar_select %p17, %s19, %s10
      %p21 = scmp.ge.s32.totalorder %s20, 2
      %s22 = scalar_select %p21, 0, %s20
      %p23 = scmp.le.s32.totalorder 1, %s3
      %p24 = scmp.lt.s32.totalorder %s3, 17
      %p25 = pnand %p23, %p24
      %p26 = pneg %p25
      // Predicated region
      $region9: #{custom-call.48} parent=5 // pred_check
        _
      $region10: #{custom-call.48} parent=5 // pred_check_branch
        %28 = sbr.rel (%p25) target = $region12
      $region11: #{custom-call.48} parent=5 // pred_region
        %s29 = ssub.s32 %s3, 1
      $region12: #{custom-call.48} parent=5 // pred_fallthru
        _
      %p30 = scmp.lt.s32.totalorder %s3, 16
      // Predicated region
      $region13: #{custom-call.48} parent=5 // pred_check
        %p31 = pneg %p30
      $region14: #{custom-call.48} parent=5 // pred_check_branch
        %33 = sbr.rel (%p31) target = $region16
      $region15: #{custom-call.48} parent=5 // pred_region
        %s34 = sand.u32 %s3, 1
        %s35 = sand.u32 %s3, 1
        %s36 = smul.addr %s35, 16
        %s37 = scalar_lea.vmem [#allocation0], %s36
        %s38 = smul.addr %s10, 8
        %s39 = sadd.s32 %s11, %s38
        %s40 = smul.addr %s39, 16
        %s41 = scalar_lea.vmem %s0, %s40
        // Predicated region
        $region17: #{custom-call.48} parent=15 // pred_check
          _
        $region18: #{custom-call.48} parent=15 // pred_check_branch
          %43 = sbr.rel (0) target = $region20
        $region19: #{custom-call.48} parent=15 // pred_region
          // Predicated region
          $region21: #{custom-call.48} parent=19 // pred_check
            _
          $region22: #{custom-call.48} parent=19 // pred_check_branch
            %45 = sbr.rel (0) target = $region24
          $region23: #{custom-call.48} parent=19 // pred_region
            loop: start=0, step=1, limit=1
            $region25: #{custom-call.48} parent=23 // loop_pre_header
              _
            $region26: #{custom-call.48} parent=23 // loop_header
              %s47 = sphi 0, %s51
              %p48 = scmp.ge.s32.totalorder %s47, 1
              %s52 = sphi %s41, %s41
              %s53 = sphi %s37, %s37
            $region27: #{custom-call.48} parent=23 // loop_header_branch
              %50 = sbr.rel (%p48) target = $region31
            $region28: #{custom-call.48} parent=23 // loop_body
              %v54 = vld [vmem:[%s52] sm:$0xff]
              %55 = vst [vmem:[%s53] sm:$0xff] %v54
              %v56 = vld [vmem:[%s52 + $0x8] sm:$0xff]
              %57 = vst [vmem:[%s53 + $0x8] sm:$0xff] %v56
            $region29: #{custom-call.48} parent=23 // loop_footer
              %s51 = sadd.s32 1, %s47
            $region30: #{custom-call.48} parent=23 // loop_footer_branch
              %46 = sbr.rel target = $region26
            $region31: #{custom-call.48} parent=23 // loop_exit
              _
          $region24: #{custom-call.48} parent=19 // pred_fallthru
            _
          // Predicated region
          $region32: #{custom-call.48} parent=19 // pred_check
            _
          $region33: #{custom-call.48} parent=19 // pred_check_branch
            %59 = sbr.rel target = $region35
          $region34: #{custom-call.48} parent=19 // pred_region
            _
          $region35: #{custom-call.48} parent=19 // pred_fallthru
            _
        $region20: #{custom-call.48} parent=15 // pred_fallthru
          _
        %60 = vnop
      $region16: #{custom-call.48} parent=5 // pred_fallthru
        _
      %p61 = scmp.le.s32.totalorder 1, %s3
      %p62 = scmp.lt.s32.totalorder %s3, 17
      %p63 = pnand %p61, %p62
      %p64 = pneg %p63
      // Predicated region
      $region36: #{custom-call.48} parent=5 // pred_check
        _
      $region37: #{custom-call.48} parent=5 // pred_check_branch
        %66 = sbr.rel (%p63) target = $region39
      $region38: #{custom-call.48} parent=5 // pred_region
        %s67 = ssub.s32 %s3, 1
        %s68 = sand.u32 %s8, 1
        %s69 = sand.u32 %s8, 1
        %s70 = smul.addr %s69, 16
        %s71 = scalar_lea.vmem [#allocation0], %s70
        %s72 = sand.u32 %s8, 1
        %s73 = sand.u32 %s8, 1
        %s74 = smul.addr %s73, 16
        %s75 = scalar_lea.vmem [#allocation0], %s74
        %s76 = sand.u32 %s8, 1
        %s77 = sand.u32 %s8, 1
        %s78 = smul.addr %s77, 16
        %s79 = scalar_lea.vmem [#allocation1], %s78
        %v80 = vlaneseq
        %v81 = vand.u32 %v80, 127
        %v82 = vlaneseq
        %v83 = vshrl.u32 %v82, 7
        %vm85 = vcmp.eq.s32.totalorder %v81, %v83
        %v86 = vld [vmem:[%s71] sm:$0xff]
        %v87 = vlaneseq
        %v88 = vand.u32 %v87, 127
        %vm89 = vcmp.eq.s32.totalorder %v88, 0
        %v90 = vsel %vm89, %v86, 1.0
        %v91 = vsel %vm85, %v90, 0.0
        %v92 = vlaneseq
        %v93 = vand.u32 %v92, 127
        %v94 = vlaneseq
        %v95 = vshrl.u32 %v94, 7
        %v96 = vadd.s32 %v95, 8
        %vm97 = vcmp.eq.s32.totalorder %v93, %v96
        %v98 = vsel %vm97, 1.0, 0.0
        %s99 = scalar_lea.vmem %s71, 1 [#allocation0]
        %v100 = vld [vmem:[%s99] ss:$0 sm:$0xff]
        %vm101 = vcmask 130048
        %v102 = vsel %vm101, %v100, 0.0
        %v103 = vlaneseq
        %v104 = vand.u32 %v103, 127
        %vm105 = vcmp.eq.s32.totalorder %v104, 1
        %v106 = vmul.f32 %v102, %v91
        %107 = vadd.xlane.f32.xlu0 %v106
        %v108 = vpop.xlane.xlu0 %107
        %v109 = vsel %vm105, %v108, %v91
        %s110 = scalar_lea.vmem %s71, 2 [#allocation0]
        %v111 = vld [vmem:[%s110] ss:$0 sm:$0xff]
        %vm112 = vcmask 130048
        %v113 = vsel %vm112, %v111, 0.0
        %v114 = vlaneseq
        %v115 = vand.u32 %v114, 127
        %vm116 = vcmp.eq.s32.totalorder %v115, 2
        %v117 = vmul.f32 %v113, %v109
        %118 = vadd.xlane.f32.xlu0 %v117
        %v119 = vpop.xlane.xlu0 %118
        %v120 = vsel %vm116, %v119, %v109
        %s121 = scalar_lea.vmem %s71, 3 [#allocation0]
        %v122 = vld [vmem:[%s121] ss:$0 sm:$0xff]
        %vm123 = vcmask 130048
        %v124 = vsel %vm123, %v122, 0.0
        %v125 = vlaneseq
        %v126 = vand.u32 %v125, 127
        %vm127 = vcmp.eq.s32.totalorder %v126, 3
        %v128 = vmul.f32 %v124, %v120
        %129 = vadd.xlane.f32.xlu0 %v128
        %v130 = vpop.xlane.xlu0 %129
        %v131 = vsel %vm127, %v130, %v120
        %s132 = scalar_lea.vmem %s71, 4 [#allocation0]
        %v133 = vld [vmem:[%s132] ss:$0 sm:$0xff]
        %vm134 = vcmask 130048
        %v135 = vsel %vm134, %v133, 0.0
        %v136 = vlaneseq
        %v137 = vand.u32 %v136, 127
        %vm138 = vcmp.eq.s32.totalorder %v137, 4
        %v139 = vmul.f32 %v135, %v131
        %140 = vadd.xlane.f32.xlu0 %v139
        %v141 = vpop.xlane.xlu0 %140
        %v142 = vsel %vm138, %v141, %v131
        %s143 = scalar_lea.vmem %s71, 5 [#allocation0]
        %v144 = vld [vmem:[%s143] ss:$0 sm:$0xff]
        %vm145 = vcmask 130048
        %v146 = vsel %vm145, %v144, 0.0
        %v147 = vlaneseq
        %v148 = vand.u32 %v147, 127
        %vm149 = vcmp.eq.s32.totalorder %v148, 5
        %v150 = vmul.f32 %v146, %v142
        %151 = vadd.xlane.f32.xlu0 %v150
        %v152 = vpop.xlane.xlu0 %151
        %v153 = vsel %vm149, %v152, %v142
        %s154 = scalar_lea.vmem %s71, 6 [#allocation0]
        %v155 = vld [vmem:[%s154] ss:$0 sm:$0xff]
        %vm156 = vcmask 130048
        %v157 = vsel %vm156, %v155, 0.0
        %v158 = vlaneseq
        %v159 = vand.u32 %v158, 127
        %vm160 = vcmp.eq.s32.totalorder %v159, 6
        %v161 = vmul.f32 %v157, %v153
        %162 = vadd.xlane.f32.xlu0 %v161
        %v163 = vpop.xlane.xlu0 %162
        %v164 = vsel %vm160, %v163, %v153
        %s165 = scalar_lea.vmem %s71, 7 [#allocation0]
        %v166 = vld [vmem:[%s165] ss:$0 sm:$0xff]
        %vm167 = vcmask 130048
        %v168 = vsel %vm167, %v166, 0.0
        %v169 = vlaneseq
        %v170 = vand.u32 %v169, 127
        %vm171 = vcmp.eq.s32.totalorder %v170, 7
        %v172 = vmul.f32 %v168, %v164
        %173 = vadd.xlane.f32.xlu0 %v172
        %v174 = vpop.xlane.xlu0 %173
        %v175 = vsel %vm171, %v174, %v164
        %s176 = scalar_lea.vmem %s71, 8 [#allocation0]
        %v177 = vld [vmem:[%s176] ss:$0 sm:$0xff]
        %vm178 = vcmask 130048
        %v179 = vsel %vm178, %v177, 0.0
        %v180 = vlaneseq
        %v181 = vand.u32 %v180, 127
        %vm182 = vcmp.eq.s32.totalorder %v181, 8
        %v183 = vmul.f32 %v179, %v175
        %184 = vadd.xlane.f32.xlu0 %v183
        %v185 = vpop.xlane.xlu0 %184
        %v186 = vsel %vm182, %v185, %v175
        %v187 = vmul.f32 %v179, %v98
        %188 = vadd.xlane.f32.xlu0 %v187
        %v189 = vpop.xlane.xlu0 %188
        %v190 = vsel %vm182, %v189, %v98
        %s191 = scalar_lea.vmem %s71, 9 [#allocation0]
        %v192 = vld [vmem:[%s191] ss:$0 sm:$0xff]
        %vm193 = vcmask 130048
        %v194 = vsel %vm193, %v192, 0.0
        %v195 = vlaneseq
        %v196 = vand.u32 %v195, 127
        %vm197 = vcmp.eq.s32.totalorder %v196, 9
        %v198 = vmul.f32 %v194, %v186
        %199 = vadd.xlane.f32.xlu0 %v198
        %v200 = vpop.xlane.xlu0 %199
        %v201 = vsel %vm197, %v200, %v186
        %v202 = vmul.f32 %v194, %v190
        %203 = vadd.xlane.f32.xlu0 %v202
        %v204 = vpop.xlane.xlu0 %203
        %v205 = vsel %vm197, %v204, %v190
        %s206 = scalar_lea.vmem %s71, 10 [#allocation0]
        %v207 = vld [vmem:[%s206] ss:$0 sm:$0xff]
        %vm208 = vcmask 130048
        %v209 = vsel %vm208, %v207, 0.0
        %v210 = vlaneseq
        %v211 = vand.u32 %v210, 127
        %vm212 = vcmp.eq.s32.totalorder %v211, 10
        %v213 = vmul.f32 %v209, %v201
        %214 = vadd.xlane.f32.xlu0 %v213
        %v215 = vpop.xlane.xlu0 %214
        %v216 = vsel %vm212, %v215, %v201
        %v217 = vmul.f32 %v209, %v205
        %218 = vadd.xlane.f32.xlu0 %v217
        %v219 = vpop.xlane.xlu0 %218
        %v220 = vsel %vm212, %v219, %v205
        %s221 = scalar_lea.vmem %s71, 11 [#allocation0]
        %v222 = vld [vmem:[%s221] ss:$0 sm:$0xff]
        %vm223 = vcmask 130048
        %v224 = vsel %vm223, %v222, 0.0
        %v225 = vlaneseq
        %v226 = vand.u32 %v225, 127
        %vm227 = vcmp.eq.s32.totalorder %v226, 11
        %v228 = vmul.f32 %v224, %v216
        %229 = vadd.xlane.f32.xlu0 %v228
        %v230 = vpop.xlane.xlu0 %229
        %v231 = vsel %vm227, %v230, %v216
        %v232 = vmul.f32 %v224, %v220
        %233 = vadd.xlane.f32.xlu0 %v232
        %v234 = vpop.xlane.xlu0 %233
        %v235 = vsel %vm227, %v234, %v220
        %s236 = scalar_lea.vmem %s71, 12 [#allocation0]
        %v237 = vld [vmem:[%s236] ss:$0 sm:$0xff]
        %vm238 = vcmask 130048
        %v239 = vsel %vm238, %v237, 0.0
        %v240 = vlaneseq
        %v241 = vand.u32 %v240, 127
        %vm242 = vcmp.eq.s32.totalorder %v241, 12
        %v243 = vmul.f32 %v239, %v231
        %244 = vadd.xlane.f32.xlu0 %v243
        %v245 = vpop.xlane.xlu0 %244
        %v246 = vsel %vm242, %v245, %v231
        %v247 = vmul.f32 %v239, %v235
        %248 = vadd.xlane.f32.xlu0 %v247
        %v249 = vpop.xlane.xlu0 %248
        %v250 = vsel %vm242, %v249, %v235
        %s251 = scalar_lea.vmem %s71, 13 [#allocation0]
        %v252 = vld [vmem:[%s251] ss:$0 sm:$0xff]
        %vm253 = vcmask 130048
        %v254 = vsel %vm253, %v252, 0.0
        %v255 = vlaneseq
        %v256 = vand.u32 %v255, 127
        %vm257 = vcmp.eq.s32.totalorder %v256, 13
        %v258 = vmul.f32 %v254, %v246
        %259 = vadd.xlane.f32.xlu0 %v258
        %v260 = vpop.xlane.xlu0 %259
        %v261 = vsel %vm257, %v260, %v246
        %v262 = vmul.f32 %v254, %v250
        %263 = vadd.xlane.f32.xlu0 %v262
        %v264 = vpop.xlane.xlu0 %263
        %v265 = vsel %vm257, %v264, %v250
        %s266 = scalar_lea.vmem %s71, 14 [#allocation0]
        %v267 = vld [vmem:[%s266] ss:$0 sm:$0xff]
        %vm268 = vcmask 130048
        %v269 = vsel %vm268, %v267, 0.0
        %v270 = vlaneseq
        %v271 = vand.u32 %v270, 127
        %vm272 = vcmp.eq.s32.totalorder %v271, 14
        %v273 = vmul.f32 %v269, %v261
        %274 = vadd.xlane.f32.xlu0 %v273
        %v275 = vpop.xlane.xlu0 %274
        %v276 = vsel %vm272, %v275, %v261
        %v277 = vmul.f32 %v269, %v265
        %278 = vadd.xlane.f32.xlu0 %v277
        %v279 = vpop.xlane.xlu0 %278
        %v280 = vsel %vm272, %v279, %v265
        %s281 = scalar_lea.vmem %s71, 15 [#allocation0]
        %v282 = vld [vmem:[%s281] ss:$0 sm:$0xff]
        %vm283 = vcmask 130048
        %v284 = vsel %vm283, %v282, 0.0
        %v285 = vlaneseq
        %v286 = vand.u32 %v285, 127
        %vm287 = vcmp.eq.s32.totalorder %v286, 15
        %v288 = vmul.f32 %v284, %v276
        %289 = vadd.xlane.f32.xlu0 %v288
        %v290 = vpop.xlane.xlu0 %289
        %v291 = vsel %vm287, %v290, %v276
        %v292 = vmul.f32 %v284, %v280
        %293 = vadd.xlane.f32.xlu0 %v292
        %v294 = vpop.xlane.xlu0 %293
        %v295 = vsel %vm287, %v294, %v280
        %296 = vst [vmem:[%s79] sm:$0xff] %v291
        %s297 = scalar_lea.vmem %s79, 8 [#allocation1]
        %298 = vst [vmem:[%s297] sm:$0xff] %v295
        %s299 = sand.u32 %s8, 1
        %s300 = sand.u32 %s8, 1
        %s301 = smul.addr %s300, 16
        %s302 = scalar_lea.vmem [#allocation1], %s301
        %s303 = smul.addr %s12, 8
        %s304 = sadd.s32 %s13, %s303
        %s305 = smul.addr %s304, 16
        %s306 = scalar_lea.vmem %s1, %s305
        // Predicated region
        $region40: #{custom-call.48} parent=38 // pred_check
          _
        $region41: #{custom-call.48} parent=38 // pred_check_branch
          %308 = sbr.rel (0) target = $region43
        $region42: #{custom-call.48} parent=38 // pred_region
          // Predicated region
          $region44: #{custom-call.48} parent=42 // pred_check
            _
          $region45: #{custom-call.48} parent=42 // pred_check_branch
            %310 = sbr.rel (0) target = $region47
          $region46: #{custom-call.48} parent=42 // pred_region
            loop: start=0, step=1, limit=1
            $region48: #{custom-call.48} parent=46 // loop_pre_header
              _
            $region49: #{custom-call.48} parent=46 // loop_header
              %s312 = sphi 0, %s316
              %p313 = scmp.ge.s32.totalorder %s312, 1
              %s317 = sphi %s302, %s302
              %s318 = sphi %s306, %s306
            $region50: #{custom-call.48} parent=46 // loop_header_branch
              %315 = sbr.rel (%p313) target = $region54
            $region51: #{custom-call.48} parent=46 // loop_body
              %v319 = vld [vmem:[%s317] sm:$0xff]
              %320 = vst [vmem:[%s318] sm:$0xff] %v319
              %v321 = vld [vmem:[%s317 + $0x8] sm:$0xff]
              %322 = vst [vmem:[%s318 + $0x8] sm:$0xff] %v321
            $region52: #{custom-call.48} parent=46 // loop_footer
              %s316 = sadd.s32 1, %s312
            $region53: #{custom-call.48} parent=46 // loop_footer_branch
              %311 = sbr.rel target = $region49
            $region54: #{custom-call.48} parent=46 // loop_exit
              _
          $region47: #{custom-call.48} parent=42 // pred_fallthru
            _
          // Predicated region
          $region55: #{custom-call.48} parent=42 // pred_check
            _
          $region56: #{custom-call.48} parent=42 // pred_check_branch
            %324 = sbr.rel target = $region58
          $region57: #{custom-call.48} parent=42 // pred_region
            _
          $region58: #{custom-call.48} parent=42 // pred_fallthru
            _
        $region43: #{custom-call.48} parent=38 // pred_fallthru
          _
        %325 = vnop
      $region39: #{custom-call.48} parent=5 // pred_fallthru
        _
      %p326 = scmp.le.s32.totalorder 2, %s3
      // Predicated region
      $region59: #{custom-call.48} parent=5 // pred_check
        %p327 = pneg %p326
      $region60: #{custom-call.48} parent=5 // pred_check_branch
        %329 = sbr.rel (%p327) target = $region62
      $region61: #{custom-call.48} parent=5 // pred_region
        %s330 = ssub.s32 %s3, 2
        %s331 = sand.u32 %s9, 1
        %s332 = sand.u32 %s9, 1
        %s333 = smul.addr %s332, 16
        %s334 = scalar_lea.vmem [#allocation1], %s333
      $region62: #{custom-call.48} parent=5 // pred_fallthru
        _
    $region6: #{custom-call.48} parent=1 // loop_footer
      %s7 = sadd.s32 1, %s3
    $region7: #{custom-call.48} parent=1 // loop_footer_branch
      %2 = sbr.rel target = $region3
    $region8: #{custom-call.48} parent=1 // loop_exit
      _

// kernel: custom-call.40
$region0: #{custom-call.40}
  %s0 = inlined_call_operand.hbm [shape: pred[2,8], index: 0, kind: output, shape index: {}]

// kernel: custom-call.45
$region0: #{custom-call.45}
  %s0 = inlined_call_operand.vmem [shape: f32[2,8,16,16], index: 0, kind: input, shape index: {}]
  %s1 = inlined_call_operand.vmem [shape: f32[2,8,16,16], index: 1, kind: output, shape index: {}]
  $region1: #{custom-call.45} parent=0
    #allocation0 [shape = 'u8[16384]{0}', space=vmem, size = 0x4000, scoped, tag = 'operand span for operand 0']
    #allocation1 [shape = 'u8[16384]{0}', space=vmem, size = 0x4000, scoped, tag = 'operand span for operand 1']
    loop: start=0, step=1, limit=18
    $region2: #{custom-call.45} parent=1 // loop_pre_header
      _
    $region3: #{custom-call.45} parent=1 // loop_header
      %s3 = sphi 0, %s7
      %p4 = scmp.ge.s32.totalorder %s3, 18
      %s10 = sphi 0, %s36
      %s11 = sphi 0, %s32
      %s12 = sphi 0, %s28
      %s13 = sphi 0, %s24
      %s14 = sphi 0, %s10
      %s15 = sphi 0, %s11
      %s16 = sphi 0, %s12
      %s17 = sphi 0, %s13
      %s18 = sphi 0, %s14
      %s19 = sphi 0, %s15
      %s20 = sphi 0, %s16
      %s21 = sphi 0, %s17
    $region4: #{custom-call.45} parent=1 // loop_header_branch
      %6 = sbr.rel (%p4) target = $region8
    $region5: #{custom-call.45} parent=1 // loop_body
      %s8 = ssub.s32 %s3, 1
      %s9 = ssub.s32 %s3, 2
      %s22 = sadd.s32 1, %s13
      %p23 = scmp.ge.s32.totalorder %s22, 1
      %s24 = scalar_select %p23, 0, %s22
      %s25 = sadd.s32 1, %s12
      %s26 = scalar_select %p23, %s25, %s12
      %p27 = scmp.ge.s32.totalorder %s26, 1
      %s28 = scalar_select %p27, 0, %s26
      %s29 = sadd.s32 1, %s11
      %s30 = scalar_select %p27, %s29, %s11
      %p31 = scmp.ge.s32.totalorder %s30, 8
      %s32 = scalar_select %p31, 0, %s30
      %s33 = sadd.s32 1, %s10
      %s34 = scalar_select %p31, %s33, %s10
      %p35 = scmp.ge.s32.totalorder %s34, 2
      %s36 = scalar_select %p35, 0, %s34
      %p37 = scmp.le.s32.totalorder 1, %s3
      %p38 = scmp.lt.s32.totalorder %s3, 17
      %p39 = pnand %p37, %p38
      %p40 = pneg %p39
      // Predicated region
      $region9: #{custom-call.45} parent=5 // pred_check
        _
      $region10: #{custom-call.45} parent=5 // pred_check_branch
        %42 = sbr.rel (%p39) target = $region12
      $region11: #{custom-call.45} parent=5 // pred_region
        %s43 = ssub.s32 %s3, 1
      $region12: #{custom-call.45} parent=5 // pred_fallthru
        _
      %p44 = scmp.lt.s32.totalorder %s3, 16
      // Predicated region
      $region13: #{custom-call.45} parent=5 // pred_check
        %p45 = pneg %p44
      $region14: #{custom-call.45} parent=5 // pred_check_branch
        %47 = sbr.rel (%p45) target = $region16
      $region15: #{custom-call.45} parent=5 // pred_region
        %s48 = sand.u32 %s3, 1
        %s49 = sand.u32 %s3, 1
        %s50 = smul.addr %s49, 16
        %s51 = scalar_lea.vmem [#allocation0], %s50
        %s52 = sadd.s32 %s13, %s12
        %s53 = smul.addr %s11, 2
        %s54 = sadd.s32 %s52, %s53
        %s55 = smul.addr %s10, 16
        %s56 = sadd.s32 %s54, %s55
        %s57 = smul.addr %s56, 8
        %s58 = scalar_lea.vmem %s0, %s57
        // Predicated region
        $region17: #{custom-call.45} parent=15 // pred_check
          _
        $region18: #{custom-call.45} parent=15 // pred_check_branch
          %60 = sbr.rel (0) target = $region20
        $region19: #{custom-call.45} parent=15 // pred_region
          // Predicated region
          $region21: #{custom-call.45} parent=19 // pred_check
            _
          $region22: #{custom-call.45} parent=19 // pred_check_branch
            %62 = sbr.rel (0) target = $region24
          $region23: #{custom-call.45} parent=19 // pred_region
            // Predicated region
            $region36: #{custom-call.45} parent=23 // pred_check
              _
            $region37: #{custom-call.45} parent=23 // pred_check_branch
              %80 = sbr.rel (0) target = $region39
            $region38: #{custom-call.45} parent=23 // pred_region
              loop: start=0, step=1, limit=1
              $region40: #{custom-call.45} parent=38 // loop_pre_header
                _
              $region41: #{custom-call.45} parent=38 // loop_header
                %s82 = sphi 0, %s86
                %p83 = scmp.ge.s32.totalorder %s82, 1
                %s87 = sphi %s58, %s58
                %s88 = sphi %s51, %s51
              $region42: #{custom-call.45} parent=38 // loop_header_branch
                %85 = sbr.rel (%p83) target = $region46
              $region43: #{custom-call.45} parent=38 // loop_body
                %v89 = vld [vmem:[%s87] sm:$0xff]
                %90 = vst [vmem:[%s88] sm:$0xff] %v89
                %v91 = vld [vmem:[%s87 + $0x8] sm:$0xff]
                %92 = vst [vmem:[%s88 + $0x8] sm:$0xff] %v91
              $region44: #{custom-call.45} parent=38 // loop_footer
                %s86 = sadd.s32 1, %s82
              $region45: #{custom-call.45} parent=38 // loop_footer_branch
                %81 = sbr.rel target = $region41
              $region46: #{custom-call.45} parent=38 // loop_exit
                _
            $region39: #{custom-call.45} parent=23 // pred_fallthru
              _
            // Predicated region
            $region47: #{custom-call.45} parent=23 // pred_check
              _
            $region48: #{custom-call.45} parent=23 // pred_check_branch
              %94 = sbr.rel target = $region50
            $region49: #{custom-call.45} parent=23 // pred_region
              _
            $region50: #{custom-call.45} parent=23 // pred_fallthru
              _
          $region24: #{custom-call.45} parent=19 // pred_fallthru
            _
          // Predicated region
          $region25: #{custom-call.45} parent=19 // pred_check
            _
          $region26: #{custom-call.45} parent=19 // pred_check_branch
            %64 = sbr.rel target = $region28
          $region27: #{custom-call.45} parent=19 // pred_region
            %s66 = ssub.s32 256, 1
            loop: start=0, step=1, limit=1
            $region29: #{custom-call.45} parent=27 // loop_pre_header
              _
            $region30: #{custom-call.45} parent=27 // loop_header
              %s68 = sphi 0, %s72
              %p69 = scmp.ge.s32.totalorder %s68, 1
              %s73 = sphi %s58, %s58
              %s74 = sphi %s51, %s51
            $region31: #{custom-call.45} parent=27 // loop_header_branch
              %71 = sbr.rel (%p69) target = $region35
            $region32: #{custom-call.45} parent=27 // loop_body
              %v75 = vld [vmem:[%s73] sm:%s66]
              %76 = vst [vmem:[%s74] sm:%s66] %v75
              %v77 = vld [vmem:[%s73 + $0x8] sm:%s66]
              %78 = vst [vmem:[%s74 + $0x8] sm:%s66] %v77
            $region33: #{custom-call.45} parent=27 // loop_footer
              %s72 = sadd.s32 1, %s68
            $region34: #{custom-call.45} parent=27 // loop_footer_branch
              %67 = sbr.rel target = $region30
            $region35: #{custom-call.45} parent=27 // loop_exit
              _
          $region28: #{custom-call.45} parent=19 // pred_fallthru
            _
        $region20: #{custom-call.45} parent=15 // pred_fallthru
          _
        %95 = vnop
      $region16: #{custom-call.45} parent=5 // pred_fallthru
        _
      %p96 = scmp.le.s32.totalorder 1, %s3
      %p97 = scmp.lt.s32.totalorder %s3, 17
      %p98 = pnand %p96, %p97
      %p99 = pneg %p98
      // Predicated region
      $region51: #{custom-call.45} parent=5 // pred_check
        _
      $region52: #{custom-call.45} parent=5 // pred_check_branch
        %101 = sbr.rel (%p98) target = $region54
      $region53: #{custom-call.45} parent=5 // pred_region
        %s102 = ssub.s32 %s3, 1
        %s103 = sand.u32 %s8, 1
        %s104 = sand.u32 %s8, 1
        %s105 = smul.addr %s104, 16
        %s106 = scalar_lea.vmem [#allocation0], %s105
        %s107 = sand.u32 %s8, 1
        %s108 = sand.u32 %s8, 1
        %s109 = smul.addr %s108, 16
        %s110 = scalar_lea.vmem [#allocation0], %s109
        %s111 = sand.u32 %s8, 1
        %s112 = sand.u32 %s8, 1
        %s113 = smul.addr %s112, 16
        %s114 = scalar_lea.vmem [#allocation1], %s113
        %115 = vst [vmem:[%s114] sm:$0xff] 0.0
        %s116 = scalar_lea.vmem %s114, 8 [#allocation1]
        %117 = vst [vmem:[%s116] sm:$0xff] 0.0
        %vm118 = vcmask 7168
        %v119 = vld [vmem:[%s114] ss:$0 sm:$0xff]
        %v120 = vld [vmem:[%s106] ss:$0 sm:$0xff]
        %v121 = vmul.f32 %v119, %v119
        %122 = vadd.xlane.f32.xlu0 %v121
        %v123 = vpop.xlane.xlu0 %122
        %v124 = vsub.f32 %v120, %v123
        %v125 = vrsqrt.pop %v124
        %v126 = vld [vmem:[%s106] sm:$0xff]
        %v127 = vld [vmem:[%s114] sm:$0xff]
        %v128 = vmul.f32 %v127, %v119
        %129 = vadd.xlane.f32.xlu0 %v128
        %v130 = vpop.xlane.xlu0 %129
        %v131 = vsub.f32 %v126, %v130
        %v132 = vmul.f32 %v131, %v125
        %v133 = vsel %vm118, %v132, 0.0
        %v134 = vadd.f32 %v127, %v133
        %135 = vst [vmem:[%s114] sm:$0xff] %v134
        %s136 = scalar_lea.vmem %s106, 8 [#allocation0]
        %v137 = vld [vmem:[%s136] sm:$0xff]
        %s138 = scalar_lea.vmem %s114, 8 [#allocation1]
        %v139 = vld [vmem:[%s138] sm:$0xff]
        %v140 = vmul.f32 %v139, %v119
        %141 = vadd.xlane.f32.xlu0 %v140
        %v142 = vpop.xlane.xlu0 %141
        %v143 = vsub.f32 %v137, %v142
        %v144 = vmul.f32 %v143, %v125
        %v145 = vsel %vm118, %v144, 0.0
        %v146 = vadd.f32 %v139, %v145
        %s147 = scalar_lea.vmem %s114, 8 [#allocation1]
        %148 = vst [vmem:[%s147] sm:$0xff] %v146
        %vm149 = vcmask 15368
        %s150 = scalar_lea.vmem %s114, 1 [#allocation1]
        %v151 = vld [vmem:[%s150] ss:$0 sm:$0xff]
        %s152 = scalar_lea.vmem %s106, 1 [#allocation0]
        %v153 = vld [vmem:[%s152] ss:$0 sm:$0xff]
        %v154 = vmul.f32 %v151, %v151
        %155 = vadd.xlane.f32.xlu0 %v154
        %v156 = vpop.xlane.xlu0 %155
        %v157 = vsub.f32 %v153, %v156
        %v158 = vrsqrt.pop %v157
        %v159 = vld [vmem:[%s106] sm:$0xff]
        %v160 = vld [vmem:[%s114] sm:$0xff]
        %v161 = vmul.f32 %v160, %v151
        %162 = vadd.xlane.f32.xlu0 %v161
        %v163 = vpop.xlane.xlu0 %162
        %v164 = vsub.f32 %v159, %v163
        %v165 = vmul.f32 %v164, %v158
        %vm166 = vcmask 1047553
        %vm167 = vmand %vm149, %vm166
        %v168 = vsel %vm167, %v165, 0.0
        %v169 = vadd.f32 %v160, %v168
        %170 = vst [vmem:[%s114] sm:$0xff] %v169
        %s171 = scalar_lea.vmem %s106, 8 [#allocation0]
        %v172 = vld [vmem:[%s171] sm:$0xff]
        %s173 = scalar_lea.vmem %s114, 8 [#allocation1]
        %v174 = vld [vmem:[%s173] sm:$0xff]
        %v175 = vmul.f32 %v174, %v151
        %176 = vadd.xlane.f32.xlu0 %v175
        %v177 = vpop.xlane.xlu0 %176
        %v178 = vsub.f32 %v172, %v177
        %v179 = vmul.f32 %v178, %v158
        %v180 = vsel %vm149, %v179, 0.0
        %v181 = vadd.f32 %v174, %v180
        %s182 = scalar_lea.vmem %s114, 8 [#allocation1]
        %183 = vst [vmem:[%s182] sm:$0xff] %v181
        %vm184 = vcmask 23568
        %s185 = scalar_lea.vmem %s114, 2 [#allocation1]
        %v186 = vld [vmem:[%s185] ss:$0 sm:$0xff]
        %s187 = scalar_lea.vmem %s106, 2 [#allocation0]
        %v188 = vld [vmem:[%s187] ss:$0 sm:$0xff]
        %v189 = vmul.f32 %v186, %v186
        %190 = vadd.xlane.f32.xlu0 %v189
        %v191 = vpop.xlane.xlu0 %190
        %v192 = vsub.f32 %v188, %v191
        %v193 = vrsqrt.pop %v192
        %v194 = vld [vmem:[%s106] sm:$0xff]
        %v195 = vld [vmem:[%s114] sm:$0xff]
        %v196 = vmul.f32 %v195, %v186
        %197 = vadd.xlane.f32.xlu0 %v196
        %v198 = vpop.xlane.xlu0 %197
        %v199 = vsub.f32 %v194, %v198
        %v200 = vmul.f32 %v199, %v193
        %vm201 = vcmask 1047554
        %vm202 = vmand %vm184, %vm201
        %v203 = vsel %vm202, %v200, 0.0
        %v204 = vadd.f32 %v195, %v203
        %205 = vst [vmem:[%s114] sm:$0xff] %v204
        %s206 = scalar_lea.vmem %s106, 8 [#allocation0]
        %v207 = vld [vmem:[%s206] sm:$0xff]
        %s208 = scalar_lea.vmem %s114, 8 [#allocation1]
        %v209 = vld [vmem:[%s208] sm:$0xff]
        %v210 = vmul.f32 %v209, %v186
        %211 = vadd.xlane.f32.xlu0 %v210
        %v212 = vpop.xlane.xlu0 %211
        %v213 = vsub.f32 %v207, %v212
        %v214 = vmul.f32 %v213, %v193
        %v215 = vsel %vm184, %v214, 0.0
        %v216 = vadd.f32 %v209, %v215
        %s217 = scalar_lea.vmem %s114, 8 [#allocation1]
        %218 = vst [vmem:[%s217] sm:$0xff] %v216
        %vm219 = vcmask 31768
        %s220 = scalar_lea.vmem %s114, 3 [#allocation1]
        %v221 = vld [vmem:[%s220] ss:$0 sm:$0xff]
        %s222 = scalar_lea.vmem %s106, 3 [#allocation0]
        %v223 = vld [vmem:[%s222] ss:$0 sm:$0xff]
        %v224 = vmul.f32 %v221, %v221
        %225 = vadd.xlane.f32.xlu0 %v224
        %v226 = vpop.xlane.xlu0 %225
        %v227 = vsub.f32 %v223, %v226
        %v228 = vrsqrt.pop %v227
        %v229 = vld [vmem:[%s106] sm:$0xff]
        %v230 = vld [vmem:[%s114] sm:$0xff]
        %v231 = vmul.f32 %v230, %v221
        %232 = vadd.xlane.f32.xlu0 %v231
        %v233 = vpop.xlane.xlu0 %232
        %v234 = vsub.f32 %v229, %v233
        %v235 = vmul.f32 %v234, %v228
        %vm236 = vcmask 1047555
        %vm237 = vmand %vm219, %vm236
        %v238 = vsel %vm237, %v235, 0.0
        %v239 = vadd.f32 %v230, %v238
        %240 = vst [vmem:[%s114] sm:$0xff] %v239
        %s241 = scalar_lea.vmem %s106, 8 [#allocation0]
        %v242 = vld [vmem:[%s241] sm:$0xff]
        %s243 = scalar_lea.vmem %s114, 8 [#allocation1]
        %v244 = vld [vmem:[%s243] sm:$0xff]
        %v245 = vmul.f32 %v244, %v221
        %246 = vadd.xlane.f32.xlu0 %v245
        %v247 = vpop.xlane.xlu0 %246
        %v248 = vsub.f32 %v242, %v247
        %v249 = vmul.f32 %v248, %v228
        %v250 = vsel %vm219, %v249, 0.0
        %v251 = vadd.f32 %v244, %v250
        %s252 = scalar_lea.vmem %s114, 8 [#allocation1]
        %253 = vst [vmem:[%s252] sm:$0xff] %v251
        %vm254 = vcmask 39968
        %s255 = scalar_lea.vmem %s114, 4 [#allocation1]
        %v256 = vld [vmem:[%s255] ss:$0 sm:$0xff]
        %s257 = scalar_lea.vmem %s106, 4 [#allocation0]
        %v258 = vld [vmem:[%s257] ss:$0 sm:$0xff]
        %v259 = vmul.f32 %v256, %v256
        %260 = vadd.xlane.f32.xlu0 %v259
        %v261 = vpop.xlane.xlu0 %260
        %v262 = vsub.f32 %v258, %v261
        %v263 = vrsqrt.pop %v262
        %v264 = vld [vmem:[%s106] sm:$0xff]
        %v265 = vld [vmem:[%s114] sm:$0xff]
        %v266 = vmul.f32 %v265, %v256
        %267 = vadd.xlane.f32.xlu0 %v266
        %v268 = vpop.xlane.xlu0 %267
        %v269 = vsub.f32 %v264, %v268
        %v270 = vmul.f32 %v269, %v263
        %vm271 = vcmask 1047556
        %vm272 = vmand %vm254, %vm271
        %v273 = vsel %vm272, %v270, 0.0
        %v274 = vadd.f32 %v265, %v273
        %275 = vst [vmem:[%s114] sm:$0xff] %v274
        %s276 = scalar_lea.vmem %s106, 8 [#allocation0]
        %v277 = vld [vmem:[%s276] sm:$0xff]
        %s278 = scalar_lea.vmem %s114, 8 [#allocation1]
        %v279 = vld [vmem:[%s278] sm:$0xff]
        %v280 = vmul.f32 %v279, %v256
        %281 = vadd.xlane.f32.xlu0 %v280
        %v282 = vpop.xlane.xlu0 %281
        %v283 = vsub.f32 %v277, %v282
        %v284 = vmul.f32 %v283, %v263
        %v285 = vsel %vm254, %v284, 0.0
        %v286 = vadd.f32 %v279, %v285
        %s287 = scalar_lea.vmem %s114, 8 [#allocation1]
        %288 = vst [vmem:[%s287] sm:$0xff] %v286
        %vm289 = vcmask 48168
        %s290 = scalar_lea.vmem %s114, 5 [#allocation1]
        %v291 = vld [vmem:[%s290] ss:$0 sm:$0xff]
        %s292 = scalar_lea.vmem %s106, 5 [#allocation0]
        %v293 = vld [vmem:[%s292] ss:$0 sm:$0xff]
        %v294 = vmul.f32 %v291, %v291
        %295 = vadd.xlane.f32.xlu0 %v294
        %v296 = vpop.xlane.xlu0 %295
        %v297 = vsub.f32 %v293, %v296
        %v298 = vrsqrt.pop %v297
        %v299 = vld [vmem:[%s106] sm:$0xff]
        %v300 = vld [vmem:[%s114] sm:$0xff]
        %v301 = vmul.f32 %v300, %v291
        %302 = vadd.xlane.f32.xlu0 %v301
        %v303 = vpop.xlane.xlu0 %302
        %v304 = vsub.f32 %v299, %v303
        %v305 = vmul.f32 %v304, %v298
        %vm306 = vcmask 1047557
        %vm307 = vmand %vm289, %vm306
        %v308 = vsel %vm307, %v305, 0.0
        %v309 = vadd.f32 %v300, %v308
        %310 = vst [vmem:[%s114] sm:$0xff] %v309
        %s311 = scalar_lea.vmem %s106, 8 [#allocation0]
        %v312 = vld [vmem:[%s311] sm:$0xff]
        %s313 = scalar_lea.vmem %s114, 8 [#allocation1]
        %v314 = vld [vmem:[%s313] sm:$0xff]
        %v315 = vmul.f32 %v314, %v291
        %316 = vadd.xlane.f32.xlu0 %v315
        %v317 = vpop.xlane.xlu0 %316
        %v318 = vsub.f32 %v312, %v317
        %v319 = vmul.f32 %v318, %v298
        %v320 = vsel %vm289, %v319, 0.0
        %v321 = vadd.f32 %v314, %v320
        %s322 = scalar_lea.vmem %s114, 8 [#allocation1]
        %323 = vst [vmem:[%s322] sm:$0xff] %v321
        %vm324 = vcmask 56368
        %s325 = scalar_lea.vmem %s114, 6 [#allocation1]
        %v326 = vld [vmem:[%s325] ss:$0 sm:$0xff]
        %s327 = scalar_lea.vmem %s106, 6 [#allocation0]
        %v328 = vld [vmem:[%s327] ss:$0 sm:$0xff]
        %v329 = vmul.f32 %v326, %v326
        %330 = vadd.xlane.f32.xlu0 %v329
        %v331 = vpop.xlane.xlu0 %330
        %v332 = vsub.f32 %v328, %v331
        %v333 = vrsqrt.pop %v332
        %v334 = vld [vmem:[%s106] sm:$0xff]
        %v335 = vld [vmem:[%s114] sm:$0xff]
        %v336 = vmul.f32 %v335, %v326
        %337 = vadd.xlane.f32.xlu0 %v336
        %v338 = vpop.xlane.xlu0 %337
        %v339 = vsub.f32 %v334, %v338
        %v340 = vmul.f32 %v339, %v333
        %vm341 = vcmask 1047558
        %vm342 = vmand %vm324, %vm341
        %v343 = vsel %vm342, %v340, 0.0
        %v344 = vadd.f32 %v335, %v343
        %345 = vst [vmem:[%s114] sm:$0xff] %v344
        %s346 = scalar_lea.vmem %s106, 8 [#allocation0]
        %v347 = vld [vmem:[%s346] sm:$0xff]
        %s348 = scalar_lea.vmem %s114, 8 [#allocation1]
        %v349 = vld [vmem:[%s348] sm:$0xff]
        %v350 = vmul.f32 %v349, %v326
        %351 = vadd.xlane.f32.xlu0 %v350
        %v352 = vpop.xlane.xlu0 %351
        %v353 = vsub.f32 %v347, %v352
        %v354 = vmul.f32 %v353, %v333
        %v355 = vsel %vm324, %v354, 0.0
        %v356 = vadd.f32 %v349, %v355
        %s357 = scalar_lea.vmem %s114, 8 [#allocation1]
        %358 = vst [vmem:[%s357] sm:$0xff] %v356
        %vm359 = vcmask 64568
        %s360 = scalar_lea.vmem %s114, 7 [#allocation1]
        %v361 = vld [vmem:[%s360] ss:$0 sm:$0xff]
        %s362 = scalar_lea.vmem %s106, 7 [#allocation0]
        %v363 = vld [vmem:[%s362] ss:$0 sm:$0xff]
        %v364 = vmul.f32 %v361, %v361
        %365 = vadd.xlane.f32.xlu0 %v364
        %v366 = vpop.xlane.xlu0 %365
        %v367 = vsub.f32 %v363, %v366
        %v368 = vrsqrt.pop %v367
        %v369 = vld [vmem:[%s106] sm:$0xff]
        %v370 = vld [vmem:[%s114] sm:$0xff]
        %v371 = vmul.f32 %v370, %v361
        %372 = vadd.xlane.f32.xlu0 %v371
        %v373 = vpop.xlane.xlu0 %372
        %v374 = vsub.f32 %v369, %v373
        %v375 = vmul.f32 %v374, %v368
        %vm376 = vcmask 1047559
        %vm377 = vmand %vm359, %vm376
        %v378 = vsel %vm377, %v375, 0.0
        %v379 = vadd.f32 %v370, %v378
        %380 = vst [vmem:[%s114] sm:$0xff] %v379
        %s381 = scalar_lea.vmem %s106, 8 [#allocation0]
        %v382 = vld [vmem:[%s381] sm:$0xff]
        %s383 = scalar_lea.vmem %s114, 8 [#allocation1]
        %v384 = vld [vmem:[%s383] sm:$0xff]
        %v385 = vmul.f32 %v384, %v361
        %386 = vadd.xlane.f32.xlu0 %v385
        %v387 = vpop.xlane.xlu0 %386
        %v388 = vsub.f32 %v382, %v387
        %v389 = vmul.f32 %v388, %v368
        %v390 = vsel %vm359, %v389, 0.0
        %v391 = vadd.f32 %v384, %v390
        %s392 = scalar_lea.vmem %s114, 8 [#allocation1]
        %393 = vst [vmem:[%s392] sm:$0xff] %v391
        %vm394 = vcmask 72768
        %s395 = scalar_lea.vmem %s114, 8 [#allocation1]
        %v396 = vld [vmem:[%s395] ss:$0 sm:$0xff]
        %s397 = scalar_lea.vmem %s106, 8 [#allocation0]
        %v398 = vld [vmem:[%s397] ss:$0 sm:$0xff]
        %v399 = vmul.f32 %v396, %v396
        %400 = vadd.xlane.f32.xlu0 %v399
        %v401 = vpop.xlane.xlu0 %400
        %v402 = vsub.f32 %v398, %v401
        %v403 = vrsqrt.pop %v402
        %s404 = scalar_lea.vmem %s106, 8 [#allocation0]
        %v405 = vld [vmem:[%s404] sm:$0xff]
        %s406 = scalar_lea.vmem %s114, 8 [#allocation1]
        %v407 = vld [vmem:[%s406] sm:$0xff]
        %v408 = vmul.f32 %v407, %v396
        %409 = vadd.xlane.f32.xlu0 %v408
        %v410 = vpop.xlane.xlu0 %409
        %v411 = vsub.f32 %v405, %v410
        %v412 = vmul.f32 %v411, %v403
        %v413 = vsel %vm394, %v412, 0.0
        %v414 = vadd.f32 %v407, %v413
        %s415 = scalar_lea.vmem %s114, 8 [#allocation1]
        %416 = vst [vmem:[%s415] sm:$0xff] %v414
        %vm417 = vcmask 80968
        %s418 = scalar_lea.vmem %s114, 9 [#allocation1]
        %v419 = vld [vmem:[%s418] ss:$0 sm:$0xff]
        %s420 = scalar_lea.vmem %s106, 9 [#allocation0]
        %v421 = vld [vmem:[%s420] ss:$0 sm:$0xff]
        %v422 = vmul.f32 %v419, %v419
        %423 = vadd.xlane.f32.xlu0 %v422
        %v424 = vpop.xlane.xlu0 %423
        %v425 = vsub.f32 %v421, %v424
        %v426 = vrsqrt.pop %v425
        %s427 = scalar_lea.vmem %s106, 8 [#allocation0]
        %v428 = vld [vmem:[%s427] sm:$0xff]
        %s429 = scalar_lea.vmem %s114, 8 [#allocation1]
        %v430 = vld [vmem:[%s429] sm:$0xff]
        %v431 = vmul.f32 %v430, %v419
        %432 = vadd.xlane.f32.xlu0 %v431
        %v433 = vpop.xlane.xlu0 %432
        %v434 = vsub.f32 %v428, %v433
        %v435 = vmul.f32 %v434, %v426
        %vm436 = vcmask 1047553
        %vm437 = vmand %vm417, %vm436
        %v438 = vsel %vm437, %v435, 0.0
        %v439 = vadd.f32 %v430, %v438
        %s440 = scalar_lea.vmem %s114, 8 [#allocation1]
        %441 = vst [vmem:[%s440] sm:$0xff] %v439
        %vm442 = vcmask 89168
        %s443 = scalar_lea.vmem %s114, 10 [#allocation1]
        %v444 = vld [vmem:[%s443] ss:$0 sm:$0xff]
        %s445 = scalar_lea.vmem %s106, 10 [#allocation0]
        %v446 = vld [vmem:[%s445] ss:$0 sm:$0xff]
        %v447 = vmul.f32 %v444, %v444
        %448 = vadd.xlane.f32.xlu0 %v447
        %v449 = vpop.xlane.xlu0 %448
        %v450 = vsub.f32 %v446, %v449
        %v451 = vrsqrt.pop %v450
        %s452 = scalar_lea.vmem %s106, 8 [#allocation0]
        %v453 = vld [vmem:[%s452] sm:$0xff]
        %s454 = scalar_lea.vmem %s114, 8 [#allocation1]
        %v455 = vld [vmem:[%s454] sm:$0xff]
        %v456 = vmul.f32 %v455, %v444
        %457 = vadd.xlane.f32.xlu0 %v456
        %v458 = vpop.xlane.xlu0 %457
        %v459 = vsub.f32 %v453, %v458
        %v460 = vmul.f32 %v459, %v451
        %vm461 = vcmask 1047554
        %vm462 = vmand %vm442, %vm461
        %v463 = vsel %vm462, %v460, 0.0
        %v464 = vadd.f32 %v455, %v463
        %s465 = scalar_lea.vmem %s114, 8 [#allocation1]
        %466 = vst [vmem:[%s465] sm:$0xff] %v464
        %vm467 = vcmask 97368
        %s468 = scalar_lea.vmem %s114, 11 [#allocation1]
        %v469 = vld [vmem:[%s468] ss:$0 sm:$0xff]
        %s470 = scalar_lea.vmem %s106, 11 [#allocation0]
        %v471 = vld [vmem:[%s470] ss:$0 sm:$0xff]
        %v472 = vmul.f32 %v469, %v469
        %473 = vadd.xlane.f32.xlu0 %v472
        %v474 = vpop.xlane.xlu0 %473
        %v475 = vsub.f32 %v471, %v474
        %v476 = vrsqrt.pop %v475
        %s477 = scalar_lea.vmem %s106, 8 [#allocation0]
        %v478 = vld [vmem:[%s477] sm:$0xff]
        %s479 = scalar_lea.vmem %s114, 8 [#allocation1]
        %v480 = vld [vmem:[%s479] sm:$0xff]
        %v481 = vmul.f32 %v480, %v469
        %482 = vadd.xlane.f32.xlu0 %v481
        %v483 = vpop.xlane.xlu0 %482
        %v484 = vsub.f32 %v478, %v483
        %v485 = vmul.f32 %v484, %v476
        %vm486 = vcmask 1047555
        %vm487 = vmand %vm467, %vm486
        %v488 = vsel %vm487, %v485, 0.0
        %v489 = vadd.f32 %v480, %v488
        %s490 = scalar_lea.vmem %s114, 8 [#allocation1]
        %491 = vst [vmem:[%s490] sm:$0xff] %v489
        %vm492 = vcmask 105568
        %s493 = scalar_lea.vmem %s114, 12 [#allocation1]
        %v494 = vld [vmem:[%s493] ss:$0 sm:$0xff]
        %s495 = scalar_lea.vmem %s106, 12 [#allocation0]
        %v496 = vld [vmem:[%s495] ss:$0 sm:$0xff]
        %v497 = vmul.f32 %v494, %v494
        %498 = vadd.xlane.f32.xlu0 %v497
        %v499 = vpop.xlane.xlu0 %498
        %v500 = vsub.f32 %v496, %v499
        %v501 = vrsqrt.pop %v500
        %s502 = scalar_lea.vmem %s106, 8 [#allocation0]
        %v503 = vld [vmem:[%s502] sm:$0xff]
        %s504 = scalar_lea.vmem %s114, 8 [#allocation1]
        %v505 = vld [vmem:[%s504] sm:$0xff]
        %v506 = vmul.f32 %v505, %v494
        %507 = vadd.xlane.f32.xlu0 %v506
        %v508 = vpop.xlane.xlu0 %507
        %v509 = vsub.f32 %v503, %v508
        %v510 = vmul.f32 %v509, %v501
        %vm511 = vcmask 1047556
        %vm512 = vmand %vm492, %vm511
        %v513 = vsel %vm512, %v510, 0.0
        %v514 = vadd.f32 %v505, %v513
        %s515 = scalar_lea.vmem %s114, 8 [#allocation1]
        %516 = vst [vmem:[%s515] sm:$0xff] %v514
        %vm517 = vcmask 113768
        %s518 = scalar_lea.vmem %s114, 13 [#allocation1]
        %v519 = vld [vmem:[%s518] ss:$0 sm:$0xff]
        %s520 = scalar_lea.vmem %s106, 13 [#allocation0]
        %v521 = vld [vmem:[%s520] ss:$0 sm:$0xff]
        %v522 = vmul.f32 %v519, %v519
        %523 = vadd.xlane.f32.xlu0 %v522
        %v524 = vpop.xlane.xlu0 %523
        %v525 = vsub.f32 %v521, %v524
        %v526 = vrsqrt.pop %v525
        %s527 = scalar_lea.vmem %s106, 8 [#allocation0]
        %v528 = vld [vmem:[%s527] sm:$0xff]
        %s529 = scalar_lea.vmem %s114, 8 [#allocation1]
        %v530 = vld [vmem:[%s529] sm:$0xff]
        %v531 = vmul.f32 %v530, %v519
        %532 = vadd.xlane.f32.xlu0 %v531
        %v533 = vpop.xlane.xlu0 %532
        %v534 = vsub.f32 %v528, %v533
        %v535 = vmul.f32 %v534, %v526
        %vm536 = vcmask 1047557
        %vm537 = vmand %vm517, %vm536
        %v538 = vsel %vm537, %v535, 0.0
        %v539 = vadd.f32 %v530, %v538
        %s540 = scalar_lea.vmem %s114, 8 [#allocation1]
        %541 = vst [vmem:[%s540] sm:$0xff] %v539
        %vm542 = vcmask 121968
        %s543 = scalar_lea.vmem %s114, 14 [#allocation1]
        %v544 = vld [vmem:[%s543] ss:$0 sm:$0xff]
        %s545 = scalar_lea.vmem %s106, 14 [#allocation0]
        %v546 = vld [vmem:[%s545] ss:$0 sm:$0xff]
        %v547 = vmul.f32 %v544, %v544
        %548 = vadd.xlane.f32.xlu0 %v547
        %v549 = vpop.xlane.xlu0 %548
        %v550 = vsub.f32 %v546, %v549
        %v551 = vrsqrt.pop %v550
        %s552 = scalar_lea.vmem %s106, 8 [#allocation0]
        %v553 = vld [vmem:[%s552] sm:$0xff]
        %s554 = scalar_lea.vmem %s114, 8 [#allocation1]
        %v555 = vld [vmem:[%s554] sm:$0xff]
        %v556 = vmul.f32 %v555, %v544
        %557 = vadd.xlane.f32.xlu0 %v556
        %v558 = vpop.xlane.xlu0 %557
        %v559 = vsub.f32 %v553, %v558
        %v560 = vmul.f32 %v559, %v551
        %vm561 = vcmask 1047558
        %vm562 = vmand %vm542, %vm561
        %v563 = vsel %vm562, %v560, 0.0
        %v564 = vadd.f32 %v555, %v563
        %s565 = scalar_lea.vmem %s114, 8 [#allocation1]
        %566 = vst [vmem:[%s565] sm:$0xff] %v564
        %vm567 = vcmask 130168
        %s568 = scalar_lea.vmem %s114, 15 [#allocation1]
        %v569 = vld [vmem:[%s568] ss:$0 sm:$0xff]
        %s570 = scalar_lea.vmem %s106, 15 [#allocation0]
        %v571 = vld [vmem:[%s570] ss:$0 sm:$0xff]
        %v572 = vmul.f32 %v569, %v569
        %573 = vadd.xlane.f32.xlu0 %v572
        %v574 = vpop.xlane.xlu0 %573
        %v575 = vsub.f32 %v571, %v574
        %v576 = vrsqrt.pop %v575
        %s577 = scalar_lea.vmem %s106, 8 [#allocation0]
        %v578 = vld [vmem:[%s577] sm:$0xff]
        %s579 = scalar_lea.vmem %s114, 8 [#allocation1]
        %v580 = vld [vmem:[%s579] sm:$0xff]
        %v581 = vmul.f32 %v580, %v569
        %582 = vadd.xlane.f32.xlu0 %v581
        %v583 = vpop.xlane.xlu0 %582
        %v584 = vsub.f32 %v578, %v583
        %v585 = vmul.f32 %v584, %v576
        %vm586 = vcmask 1047559
        %vm587 = vmand %vm567, %vm586
        %v588 = vsel %vm587, %v585, 0.0
        %v589 = vadd.f32 %v580, %v588
        %s590 = scalar_lea.vmem %s114, 8 [#allocation1]
        %591 = vst [vmem:[%s590] sm:$0xff] %v589
        %s592 = sand.u32 %s8, 1
        %s593 = sand.u32 %s8, 1
        %s594 = smul.addr %s593, 16
        %s595 = scalar_lea.vmem [#allocation1], %s594
        %s596 = sadd.s32 %s17, %s16
        %s597 = smul.addr %s15, 2
        %s598 = sadd.s32 %s596, %s597
        %s599 = smul.addr %s14, 16
        %s600 = sadd.s32 %s598, %s599
        %s601 = smul.addr %s600, 8
        %s602 = scalar_lea.vmem %s1, %s601
        // Predicated region
        $region55: #{custom-call.45} parent=53 // pred_check
          _
        $region56: #{custom-call.45} parent=53 // pred_check_branch
          %604 = sbr.rel (0) target = $region58
        $region57: #{custom-call.45} parent=53 // pred_region
          // Predicated region
          $region59: #{custom-call.45} parent=57 // pred_check
            _
          $region60: #{custom-call.45} parent=57 // pred_check_branch
            %606 = sbr.rel (0) target = $region62
          $region61: #{custom-call.45} parent=57 // pred_region
            // Predicated region
            $region74: #{custom-call.45} parent=61 // pred_check
              _
            $region75: #{custom-call.45} parent=61 // pred_check_branch
              %624 = sbr.rel (0) target = $region77
            $region76: #{custom-call.45} parent=61 // pred_region
              loop: start=0, step=1, limit=1
              $region78: #{custom-call.45} parent=76 // loop_pre_header
                _
              $region79: #{custom-call.45} parent=76 // loop_header
                %s626 = sphi 0, %s630
                %p627 = scmp.ge.s32.totalorder %s626, 1
                %s631 = sphi %s595, %s595
                %s632 = sphi %s602, %s602
              $region80: #{custom-call.45} parent=76 // loop_header_branch
                %629 = sbr.rel (%p627) target = $region84
              $region81: #{custom-call.45} parent=76 // loop_body
                %v633 = vld [vmem:[%s631] sm:$0xff]
                %634 = vst [vmem:[%s632] sm:$0xff] %v633
                %v635 = vld [vmem:[%s631 + $0x8] sm:$0xff]
                %636 = vst [vmem:[%s632 + $0x8] sm:$0xff] %v635
              $region82: #{custom-call.45} parent=76 // loop_footer
                %s630 = sadd.s32 1, %s626
              $region83: #{custom-call.45} parent=76 // loop_footer_branch
                %625 = sbr.rel target = $region79
              $region84: #{custom-call.45} parent=76 // loop_exit
                _
            $region77: #{custom-call.45} parent=61 // pred_fallthru
              _
            // Predicated region
            $region85: #{custom-call.45} parent=61 // pred_check
              _
            $region86: #{custom-call.45} parent=61 // pred_check_branch
              %638 = sbr.rel target = $region88
            $region87: #{custom-call.45} parent=61 // pred_region
              _
            $region88: #{custom-call.45} parent=61 // pred_fallthru
              _
          $region62: #{custom-call.45} parent=57 // pred_fallthru
            _
          // Predicated region
          $region63: #{custom-call.45} parent=57 // pred_check
            _
          $region64: #{custom-call.45} parent=57 // pred_check_branch
            %608 = sbr.rel target = $region66
          $region65: #{custom-call.45} parent=57 // pred_region
            %s610 = ssub.s32 256, 1
            loop: start=0, step=1, limit=1
            $region67: #{custom-call.45} parent=65 // loop_pre_header
              _
            $region68: #{custom-call.45} parent=65 // loop_header
              %s612 = sphi 0, %s616
              %p613 = scmp.ge.s32.totalorder %s612, 1
              %s617 = sphi %s595, %s595
              %s618 = sphi %s602, %s602
            $region69: #{custom-call.45} parent=65 // loop_header_branch
              %615 = sbr.rel (%p613) target = $region73
            $region70: #{custom-call.45} parent=65 // loop_body
              %v619 = vld [vmem:[%s617] sm:%s610]
              %620 = vst [vmem:[%s618] sm:%s610] %v619
              %v621 = vld [vmem:[%s617 + $0x8] sm:%s610]
              %622 = vst [vmem:[%s618 + $0x8] sm:%s610] %v621
            $region71: #{custom-call.45} parent=65 // loop_footer
              %s616 = sadd.s32 1, %s612
            $region72: #{custom-call.45} parent=65 // loop_footer_branch
              %611 = sbr.rel target = $region68
            $region73: #{custom-call.45} parent=65 // loop_exit
              _
          $region66: #{custom-call.45} parent=57 // pred_fallthru
            _
        $region58: #{custom-call.45} parent=53 // pred_fallthru
          _
        %639 = vnop
      $region54: #{custom-call.45} parent=5 // pred_fallthru
        _
      %p640 = scmp.le.s32.totalorder 2, %s3
      // Predicated region
      $region89: #{custom-call.45} parent=5 // pred_check
        %p641 = pneg %p640
      $region90: #{custom-call.45} parent=5 // pred_check_branch
        %643 = sbr.rel (%p641) target = $region92
      $region91: #{custom-call.45} parent=5 // pred_region
        %s644 = ssub.s32 %s3, 2
        %s645 = sand.u32 %s9, 1
        %s646 = sand.u32 %s9, 1
        %s647 = smul.addr %s646, 16
        %s648 = scalar_lea.vmem [#allocation1], %s647
      $region92: #{custom-call.45} parent=5 // pred_fallthru
        _
    $region6: #{custom-call.45} parent=1 // loop_footer
      %s7 = sadd.s32 1, %s3
    $region7: #{custom-call.45} parent=1 // loop_footer_branch
      %2 = sbr.rel target = $region3
    $region8: #{custom-call.45} parent=1 // loop_exit
      _

// kernel: custom-call.46
$region0: #{custom-call.46}
  %s0 = inlined_call_operand.vmem [shape: f32[2,8,1,16,16], index: 0, kind: input, shape index: {}]
  %s1 = inlined_call_operand.vmem [shape: f32[2,8,1,16,16], index: 1, kind: output, shape index: {}]
  $region1: #{custom-call.46} parent=0
    #allocation0 [shape = 'u8[16384]{0}', space=vmem, size = 0x4000, scoped, tag = 'operand span for operand 0']
    #allocation1 [shape = 'u8[16384]{0}', space=vmem, size = 0x4000, scoped, tag = 'operand span for operand 1']
    loop: start=0, step=1, limit=18
    $region2: #{custom-call.46} parent=1 // loop_pre_header
      _
    $region3: #{custom-call.46} parent=1 // loop_header
      %s3 = sphi 0, %s7
      %p4 = scmp.ge.s32.totalorder %s3, 18
      %s10 = sphi 0, %s43
      %s11 = sphi 0, %s39
      %s12 = sphi 0, %s35
      %s13 = sphi 0, %s31
      %s14 = sphi 0, %s27
      %s15 = sphi 0, %s10
      %s16 = sphi 0, %s11
      %s17 = sphi 0, %s12
      %s18 = sphi 0, %s13
      %s19 = sphi 0, %s14
      %s20 = sphi 0, %s15
      %s21 = sphi 0, %s16
      %s22 = sphi 0, %s17
      %s23 = sphi 0, %s18
      %s24 = sphi 0, %s19
    $region4: #{custom-call.46} parent=1 // loop_header_branch
      %6 = sbr.rel (%p4) target = $region8
    $region5: #{custom-call.46} parent=1 // loop_body
      %s8 = ssub.s32 %s3, 1
      %s9 = ssub.s32 %s3, 2
      %s25 = sadd.s32 1, %s14
      %p26 = scmp.ge.s32.totalorder %s25, 1
      %s27 = scalar_select %p26, 0, %s25
      %s28 = sadd.s32 1, %s13
      %s29 = scalar_select %p26, %s28, %s13
      %p30 = scmp.ge.s32.totalorder %s29, 1
      %s31 = scalar_select %p30, 0, %s29
      %s32 = sadd.s32 1, %s12
      %s33 = scalar_select %p30, %s32, %s12
      %p34 = scmp.ge.s32.totalorder %s33, 1
      %s35 = scalar_select %p34, 0, %s33
      %s36 = sadd.s32 1, %s11
      %s37 = scalar_select %p34, %s36, %s11
      %p38 = scmp.ge.s32.totalorder %s37, 8
      %s39 = scalar_select %p38, 0, %s37
      %s40 = sadd.s32 1, %s10
      %s41 = scalar_select %p38, %s40, %s10
      %p42 = scmp.ge.s32.totalorder %s41, 2
      %s43 = scalar_select %p42, 0, %s41
      %p44 = scmp.le.s32.totalorder 1, %s3
      %p45 = scmp.lt.s32.totalorder %s3, 17
      %p46 = pnand %p44, %p45
      %p47 = pneg %p46
      // Predicated region
      $region9: #{custom-call.46} parent=5 // pred_check
        _
      $region10: #{custom-call.46} parent=5 // pred_check_branch
        %49 = sbr.rel (%p46) target = $region12
      $region11: #{custom-call.46} parent=5 // pred_region
        %s50 = ssub.s32 %s3, 1
      $region12: #{custom-call.46} parent=5 // pred_fallthru
        _
      %p51 = scmp.lt.s32.totalorder %s3, 16
      // Predicated region
      $region13: #{custom-call.46} parent=5 // pred_check
        %p52 = pneg %p51
      $region14: #{custom-call.46} parent=5 // pred_check_branch
        %54 = sbr.rel (%p52) target = $region16
      $region15: #{custom-call.46} parent=5 // pred_region
        %s55 = sand.u32 %s3, 1
        %s56 = sand.u32 %s3, 1
        %s57 = smul.addr %s56, 16
        %s58 = scalar_lea.vmem [#allocation0], %s57
        %s59 = sadd.s32 %s14, %s13
        %s60 = smul.addr %s12, 2
        %s61 = sadd.s32 %s59, %s60
        %s62 = smul.addr %s11, 2
        %s63 = sadd.s32 %s61, %s62
        %s64 = smul.addr %s10, 16
        %s65 = sadd.s32 %s63, %s64
        %s66 = smul.addr %s65, 8
        %s67 = scalar_lea.vmem %s0, %s66
        // Predicated region
        $region17: #{custom-call.46} parent=15 // pred_check
          _
        $region18: #{custom-call.46} parent=15 // pred_check_branch
          %69 = sbr.rel (0) target = $region20
        $region19: #{custom-call.46} parent=15 // pred_region
          // Predicated region
          $region21: #{custom-call.46} parent=19 // pred_check
            _
          $region22: #{custom-call.46} parent=19 // pred_check_branch
            %71 = sbr.rel (0) target = $region24
          $region23: #{custom-call.46} parent=19 // pred_region
            // Predicated region
            $region36: #{custom-call.46} parent=23 // pred_check
              _
            $region37: #{custom-call.46} parent=23 // pred_check_branch
              %89 = sbr.rel (0) target = $region39
            $region38: #{custom-call.46} parent=23 // pred_region
              loop: start=0, step=1, limit=1
              $region40: #{custom-call.46} parent=38 // loop_pre_header
                _
              $region41: #{custom-call.46} parent=38 // loop_header
                %s91 = sphi 0, %s95
                %p92 = scmp.ge.s32.totalorder %s91, 1
                %s96 = sphi %s67, %s67
                %s97 = sphi %s58, %s58
              $region42: #{custom-call.46} parent=38 // loop_header_branch
                %94 = sbr.rel (%p92) target = $region46
              $region43: #{custom-call.46} parent=38 // loop_body
                %v98 = vld [vmem:[%s96] sm:$0xff]
                %99 = vst [vmem:[%s97] sm:$0xff] %v98
                %v100 = vld [vmem:[%s96 + $0x8] sm:$0xff]
                %101 = vst [vmem:[%s97 + $0x8] sm:$0xff] %v100
              $region44: #{custom-call.46} parent=38 // loop_footer
                %s95 = sadd.s32 1, %s91
              $region45: #{custom-call.46} parent=38 // loop_footer_branch
                %90 = sbr.rel target = $region41
              $region46: #{custom-call.46} parent=38 // loop_exit
                _
            $region39: #{custom-call.46} parent=23 // pred_fallthru
              _
            // Predicated region
            $region47: #{custom-call.46} parent=23 // pred_check
              _
            $region48: #{custom-call.46} parent=23 // pred_check_branch
              %103 = sbr.rel target = $region50
            $region49: #{custom-call.46} parent=23 // pred_region
              _
            $region50: #{custom-call.46} parent=23 // pred_fallthru
              _
          $region24: #{custom-call.46} parent=19 // pred_fallthru
            _
          // Predicated region
          $region25: #{custom-call.46} parent=19 // pred_check
            _
          $region26: #{custom-call.46} parent=19 // pred_check_branch
            %73 = sbr.rel target = $region28
          $region27: #{custom-call.46} parent=19 // pred_region
            %s75 = ssub.s32 256, 1
            loop: start=0, step=1, limit=1
            $region29: #{custom-call.46} parent=27 // loop_pre_header
              _
            $region30: #{custom-call.46} parent=27 // loop_header
              %s77 = sphi 0, %s81
              %p78 = scmp.ge.s32.totalorder %s77, 1
              %s82 = sphi %s67, %s67
              %s83 = sphi %s58, %s58
            $region31: #{custom-call.46} parent=27 // loop_header_branch
              %80 = sbr.rel (%p78) target = $region35
            $region32: #{custom-call.46} parent=27 // loop_body
              %v84 = vld [vmem:[%s82] sm:%s75]
              %85 = vst [vmem:[%s83] sm:%s75] %v84
              %v86 = vld [vmem:[%s82 + $0x8] sm:%s75]
              %87 = vst [vmem:[%s83 + $0x8] sm:%s75] %v86
            $region33: #{custom-call.46} parent=27 // loop_footer
              %s81 = sadd.s32 1, %s77
            $region34: #{custom-call.46} parent=27 // loop_footer_branch
              %76 = sbr.rel target = $region30
            $region35: #{custom-call.46} parent=27 // loop_exit
              _
          $region28: #{custom-call.46} parent=19 // pred_fallthru
            _
        $region20: #{custom-call.46} parent=15 // pred_fallthru
          _
        %104 = vnop
      $region16: #{custom-call.46} parent=5 // pred_fallthru
        _
      %p105 = scmp.le.s32.totalorder 1, %s3
      %p106 = scmp.lt.s32.totalorder %s3, 17
      %p107 = pnand %p105, %p106
      %p108 = pneg %p107
      // Predicated region
      $region51: #{custom-call.46} parent=5 // pred_check
        _
      $region52: #{custom-call.46} parent=5 // pred_check_branch
        %110 = sbr.rel (%p107) target = $region54
      $region53: #{custom-call.46} parent=5 // pred_region
        #allocation2 [shape = 'f32[16,16]{1,0}', space=vmem, size = 0x2000, scoped, tag = 'rescaled input a']
        %s111 = ssub.s32 %s3, 1
        %s112 = sand.u32 %s8, 1
        %s113 = sand.u32 %s8, 1
        %s114 = smul.addr %s113, 16
        %s115 = scalar_lea.vmem [#allocation0], %s114
        %s116 = sand.u32 %s8, 1
        %s117 = sand.u32 %s8, 1
        %s118 = smul.addr %s117, 16
        %s119 = scalar_lea.vmem [#allocation0], %s118
        %s120 = sand.u32 %s8, 1
        %s121 = sand.u32 %s8, 1
        %s122 = smul.addr %s121, 16
        %s123 = scalar_lea.vmem [#allocation1], %s122
        %v124 = vlaneseq
        %v125 = vand.u32 %v124, 127
        %vm126 = vcmp.lt.s32.totalorder %v125, 16
        %v127 = vlaneseq
        %v128 = vshrl.u32 %v127, 7
        %vm130 = vcmp.eq.s32.totalorder %v128, %v125
        %v131 = vld [vmem:[%s115] sm:$0xff]
        %v132 = vsel %vm130, %v131, 0.0
        %133 = vadd.xlane.f32.xlu0 %v132
        %v134 = vpop.xlane.xlu0 %133
        %vm135 = vcmp.ge.s32.totalorder %v128, %v125
        %vm136 = vmand %vm135, %vm126
        %v137 = vsel %vm136, %v131, 0.0
        %v138 = vrcp.pop %v134
        %v139 = vmul.f32 %v137, %v138
        %140 = vst [vmem:[#allocation2] sm:$0xff] %v139
        %s141 = scalar_lea.vmem %s115, 8 [#allocation0]
        %s142 = scalar_lea.vmem [#allocation2], 8
        %v143 = vlaneseq
        %v144 = vshrl.u32 %v143, 7
        %v145 = vadd.s32 %v144, 8
        %vm146 = vcmp.eq.s32.totalorder %v145, %v125
        %v147 = vld [vmem:[%s141] sm:$0xff]
        %v148 = vsel %vm146, %v147, 0.0
        %149 = vadd.xlane.f32.xlu0 %v148
        %v150 = vpop.xlane.xlu0 %149
        %vm151 = vcmp.ge.s32.totalorder %v145, %v125
        %vm152 = vmand %vm151, %vm126
        %v153 = vsel %vm152, %v147, 0.0
        %v154 = vrcp.pop %v150
        %v155 = vmul.f32 %v153, %v154
        %156 = vst [vmem:[%s142] sm:$0xff] %v155
        %v157 = vlaneseq
        %v158 = vand.u32 %v157, 127
        %v159 = vlaneseq
        %v160 = vshrl.u32 %v159, 7
        %vm162 = vcmp.eq.s32.totalorder %v158, %v160
        %v163 = vlaneseq
        %v164 = vand.u32 %v163, 127
        %vm165 = vcmp.eq.s32.totalorder %v164, 0
        %v166 = vsel %vm165, 1.0, -1.0
        %v167 = vsel %vm162, %v166, 0.0
        %v168 = vlaneseq
        %v169 = vand.u32 %v168, 127
        %v170 = vlaneseq
        %v171 = vshrl.u32 %v170, 7
        %v172 = vadd.s32 %v171, 8
        %vm173 = vcmp.eq.s32.totalorder %v169, %v172
        %v174 = vsel %vm173, -1.0, 0.0
        %s175 = scalar_lea.vmem [#allocation2], 1
        %v176 = vld [vmem:[%s175] ss:$0 sm:$0xff]
        %v177 = vxor.u32 %v176, 2147483648
        %v178 = vlaneseq
        %v179 = vand.u32 %v178, 127
        %vm180 = vcmp.eq.s32.totalorder %v179, 1
        %v181 = vmul.f32 %v177, %v167
        %182 = vadd.xlane.f32.xlu0 %v181
        %v183 = vpop.xlane.xlu0 %182
        %v184 = vsel %vm180, %v183, %v167
        %s185 = scalar_lea.vmem [#allocation2], 2
        %v186 = vld [vmem:[%s185] ss:$0 sm:$0xff]
        %v187 = vxor.u32 %v186, 2147483648
        %v188 = vlaneseq
        %v189 = vand.u32 %v188, 127
        %vm190 = vcmp.eq.s32.totalorder %v189, 2
        %v191 = vmul.f32 %v187, %v184
        %192 = vadd.xlane.f32.xlu0 %v191
        %v193 = vpop.xlane.xlu0 %192
        %v194 = vsel %vm190, %v193, %v184
        %s195 = scalar_lea.vmem [#allocation2], 3
        %v196 = vld [vmem:[%s195] ss:$0 sm:$0xff]
        %v197 = vxor.u32 %v196, 2147483648
        %v198 = vlaneseq
        %v199 = vand.u32 %v198, 127
        %vm200 = vcmp.eq.s32.totalorder %v199, 3
        %v201 = vmul.f32 %v197, %v194
        %202 = vadd.xlane.f32.xlu0 %v201
        %v203 = vpop.xlane.xlu0 %202
        %v204 = vsel %vm200, %v203, %v194
        %s205 = scalar_lea.vmem [#allocation2], 4
        %v206 = vld [vmem:[%s205] ss:$0 sm:$0xff]
        %v207 = vxor.u32 %v206, 2147483648
        %v208 = vlaneseq
        %v209 = vand.u32 %v208, 127
        %vm210 = vcmp.eq.s32.totalorder %v209, 4
        %v211 = vmul.f32 %v207, %v204
        %212 = vadd.xlane.f32.xlu0 %v211
        %v213 = vpop.xlane.xlu0 %212
        %v214 = vsel %vm210, %v213, %v204
        %s215 = scalar_lea.vmem [#allocation2], 5
        %v216 = vld [vmem:[%s215] ss:$0 sm:$0xff]
        %v217 = vxor.u32 %v216, 2147483648
        %v218 = vlaneseq
        %v219 = vand.u32 %v218, 127
        %vm220 = vcmp.eq.s32.totalorder %v219, 5
        %v221 = vmul.f32 %v217, %v214
        %222 = vadd.xlane.f32.xlu0 %v221
        %v223 = vpop.xlane.xlu0 %222
        %v224 = vsel %vm220, %v223, %v214
        %s225 = scalar_lea.vmem [#allocation2], 6
        %v226 = vld [vmem:[%s225] ss:$0 sm:$0xff]
        %v227 = vxor.u32 %v226, 2147483648
        %v228 = vlaneseq
        %v229 = vand.u32 %v228, 127
        %vm230 = vcmp.eq.s32.totalorder %v229, 6
        %v231 = vmul.f32 %v227, %v224
        %232 = vadd.xlane.f32.xlu0 %v231
        %v233 = vpop.xlane.xlu0 %232
        %v234 = vsel %vm230, %v233, %v224
        %s235 = scalar_lea.vmem [#allocation2], 7
        %v236 = vld [vmem:[%s235] ss:$0 sm:$0xff]
        %v237 = vxor.u32 %v236, 2147483648
        %v238 = vlaneseq
        %v239 = vand.u32 %v238, 127
        %vm240 = vcmp.eq.s32.totalorder %v239, 7
        %v241 = vmul.f32 %v237, %v234
        %242 = vadd.xlane.f32.xlu0 %v241
        %v243 = vpop.xlane.xlu0 %242
        %v244 = vsel %vm240, %v243, %v234
        %s245 = scalar_lea.vmem [#allocation2], 8
        %v246 = vld [vmem:[%s245] ss:$0 sm:$0xff]
        %v247 = vxor.u32 %v246, 2147483648
        %v248 = vlaneseq
        %v249 = vand.u32 %v248, 127
        %vm250 = vcmp.eq.s32.totalorder %v249, 8
        %v251 = vmul.f32 %v247, %v244
        %252 = vadd.xlane.f32.xlu0 %v251
        %v253 = vpop.xlane.xlu0 %252
        %v254 = vsel %vm250, %v253, %v244
        %v255 = vmul.f32 %v247, %v174
        %256 = vadd.xlane.f32.xlu0 %v255
        %v257 = vpop.xlane.xlu0 %256
        %v258 = vsel %vm250, %v257, %v174
        %s259 = scalar_lea.vmem [#allocation2], 9
        %v260 = vld [vmem:[%s259] ss:$0 sm:$0xff]
        %v261 = vxor.u32 %v260, 2147483648
        %v262 = vlaneseq
        %v263 = vand.u32 %v262, 127
        %vm264 = vcmp.eq.s32.totalorder %v263, 9
        %v265 = vmul.f32 %v261, %v254
        %266 = vadd.xlane.f32.xlu0 %v265
        %v267 = vpop.xlane.xlu0 %266
        %v268 = vsel %vm264, %v267, %v254
        %v269 = vmul.f32 %v261, %v258
        %270 = vadd.xlane.f32.xlu0 %v269
        %v271 = vpop.xlane.xlu0 %270
        %v272 = vsel %vm264, %v271, %v258
        %s273 = scalar_lea.vmem [#allocation2], 10
        %v274 = vld [vmem:[%s273] ss:$0 sm:$0xff]
        %v275 = vxor.u32 %v274, 2147483648
        %v276 = vlaneseq
        %v277 = vand.u32 %v276, 127
        %vm278 = vcmp.eq.s32.totalorder %v277, 10
        %v279 = vmul.f32 %v275, %v268
        %280 = vadd.xlane.f32.xlu0 %v279
        %v281 = vpop.xlane.xlu0 %280
        %v282 = vsel %vm278, %v281, %v268
        %v283 = vmul.f32 %v275, %v272
        %284 = vadd.xlane.f32.xlu0 %v283
        %v285 = vpop.xlane.xlu0 %284
        %v286 = vsel %vm278, %v285, %v272
        %s287 = scalar_lea.vmem [#allocation2], 11
        %v288 = vld [vmem:[%s287] ss:$0 sm:$0xff]
        %v289 = vxor.u32 %v288, 2147483648
        %v290 = vlaneseq
        %v291 = vand.u32 %v290, 127
        %vm292 = vcmp.eq.s32.totalorder %v291, 11
        %v293 = vmul.f32 %v289, %v282
        %294 = vadd.xlane.f32.xlu0 %v293
        %v295 = vpop.xlane.xlu0 %294
        %v296 = vsel %vm292, %v295, %v282
        %v297 = vmul.f32 %v289, %v286
        %298 = vadd.xlane.f32.xlu0 %v297
        %v299 = vpop.xlane.xlu0 %298
        %v300 = vsel %vm292, %v299, %v286
        %s301 = scalar_lea.vmem [#allocation2], 12
        %v302 = vld [vmem:[%s301] ss:$0 sm:$0xff]
        %v303 = vxor.u32 %v302, 2147483648
        %v304 = vlaneseq
        %v305 = vand.u32 %v304, 127
        %vm306 = vcmp.eq.s32.totalorder %v305, 12
        %v307 = vmul.f32 %v303, %v296
        %308 = vadd.xlane.f32.xlu0 %v307
        %v309 = vpop.xlane.xlu0 %308
        %v310 = vsel %vm306, %v309, %v296
        %v311 = vmul.f32 %v303, %v300
        %312 = vadd.xlane.f32.xlu0 %v311
        %v313 = vpop.xlane.xlu0 %312
        %v314 = vsel %vm306, %v313, %v300
        %s315 = scalar_lea.vmem [#allocation2], 13
        %v316 = vld [vmem:[%s315] ss:$0 sm:$0xff]
        %v317 = vxor.u32 %v316, 2147483648
        %v318 = vlaneseq
        %v319 = vand.u32 %v318, 127
        %vm320 = vcmp.eq.s32.totalorder %v319, 13
        %v321 = vmul.f32 %v317, %v310
        %322 = vadd.xlane.f32.xlu0 %v321
        %v323 = vpop.xlane.xlu0 %322
        %v324 = vsel %vm320, %v323, %v310
        %v325 = vmul.f32 %v317, %v314
        %326 = vadd.xlane.f32.xlu0 %v325
        %v327 = vpop.xlane.xlu0 %326
        %v328 = vsel %vm320, %v327, %v314
        %s329 = scalar_lea.vmem [#allocation2], 14
        %v330 = vld [vmem:[%s329] ss:$0 sm:$0xff]
        %v331 = vxor.u32 %v330, 2147483648
        %v332 = vlaneseq
        %v333 = vand.u32 %v332, 127
        %vm334 = vcmp.eq.s32.totalorder %v333, 14
        %v335 = vmul.f32 %v331, %v324
        %336 = vadd.xlane.f32.xlu0 %v335
        %v337 = vpop.xlane.xlu0 %336
        %v338 = vsel %vm334, %v337, %v324
        %v339 = vmul.f32 %v331, %v328
        %340 = vadd.xlane.f32.xlu0 %v339
        %v341 = vpop.xlane.xlu0 %340
        %v342 = vsel %vm334, %v341, %v328
        %s343 = scalar_lea.vmem [#allocation2], 15
        %v344 = vld [vmem:[%s343] ss:$0 sm:$0xff]
        %v345 = vxor.u32 %v344, 2147483648
        %v346 = vlaneseq
        %v347 = vand.u32 %v346, 127
        %vm348 = vcmp.eq.s32.totalorder %v347, 15
        %v349 = vmul.f32 %v345, %v338
        %350 = vadd.xlane.f32.xlu0 %v349
        %v351 = vpop.xlane.xlu0 %350
        %v352 = vsel %vm348, %v351, %v338
        %v353 = vmul.f32 %v345, %v342
        %354 = vadd.xlane.f32.xlu0 %v353
        %v355 = vpop.xlane.xlu0 %354
        %v356 = vsel %vm348, %v355, %v342
        %v357 = vrcp.pop %v134
        %v358 = vmul.f32 %v352, %v357
        %vm359 = vweird.f32 %v134
        %v360 = vsel %vm359, %v352, %v358
        %361 = vst [vmem:[%s123] sm:$0xff] %v360
        %v362 = vrcp.pop %v150
        %v363 = vmul.f32 %v356, %v362
        %vm364 = vweird.f32 %v150
        %v365 = vsel %vm364, %v356, %v363
        %s366 = scalar_lea.vmem %s123, 8 [#allocation1]
        %367 = vst [vmem:[%s366] sm:$0xff] %v365
        %s368 = sand.u32 %s8, 1
        %s369 = sand.u32 %s8, 1
        %s370 = smul.addr %s369, 16
        %s371 = scalar_lea.vmem [#allocation1], %s370
        %s372 = sadd.s32 %s19, %s18
        %s373 = smul.addr %s17, 2
        %s374 = sadd.s32 %s372, %s373
        %s375 = smul.addr %s16, 2
        %s376 = sadd.s32 %s374, %s375
        %s377 = smul.addr %s15, 16
        %s378 = sadd.s32 %s376, %s377
        %s379 = smul.addr %s378, 8
        %s380 = scalar_lea.vmem %s1, %s379
        // Predicated region
        $region55: #{custom-call.46} parent=53 // pred_check
          _
        $region56: #{custom-call.46} parent=53 // pred_check_branch
          %382 = sbr.rel (0) target = $region58
        $region57: #{custom-call.46} parent=53 // pred_region
          // Predicated region
          $region59: #{custom-call.46} parent=57 // pred_check
            _
          $region60: #{custom-call.46} parent=57 // pred_check_branch
            %384 = sbr.rel (0) target = $region62
          $region61: #{custom-call.46} parent=57 // pred_region
            // Predicated region
            $region74: #{custom-call.46} parent=61 // pred_check
              _
            $region75: #{custom-call.46} parent=61 // pred_check_branch
              %402 = sbr.rel (0) target = $region77
            $region76: #{custom-call.46} parent=61 // pred_region
              loop: start=0, step=1, limit=1
              $region78: #{custom-call.46} parent=76 // loop_pre_header
                _
              $region79: #{custom-call.46} parent=76 // loop_header
                %s404 = sphi 0, %s408
                %p405 = scmp.ge.s32.totalorder %s404, 1
                %s409 = sphi %s371, %s371
                %s410 = sphi %s380, %s380
              $region80: #{custom-call.46} parent=76 // loop_header_branch
                %407 = sbr.rel (%p405) target = $region84
              $region81: #{custom-call.46} parent=76 // loop_body
                %v411 = vld [vmem:[%s409] sm:$0xff]
                %412 = vst [vmem:[%s410] sm:$0xff] %v411
                %v413 = vld [vmem:[%s409 + $0x8] sm:$0xff]
                %414 = vst [vmem:[%s410 + $0x8] sm:$0xff] %v413
              $region82: #{custom-call.46} parent=76 // loop_footer
                %s408 = sadd.s32 1, %s404
              $region83: #{custom-call.46} parent=76 // loop_footer_branch
                %403 = sbr.rel target = $region79
              $region84: #{custom-call.46} parent=76 // loop_exit
                _
            $region77: #{custom-call.46} parent=61 // pred_fallthru
              _
            // Predicated region
            $region85: #{custom-call.46} parent=61 // pred_check
              _
            $region86: #{custom-call.46} parent=61 // pred_check_branch
              %416 = sbr.rel target = $region88
            $region87: #{custom-call.46} parent=61 // pred_region
              _
            $region88: #{custom-call.46} parent=61 // pred_fallthru
              _
          $region62: #{custom-call.46} parent=57 // pred_fallthru
            _
          // Predicated region
          $region63: #{custom-call.46} parent=57 // pred_check
            _
          $region64: #{custom-call.46} parent=57 // pred_check_branch
            %386 = sbr.rel target = $region66
          $region65: #{custom-call.46} parent=57 // pred_region
            %s388 = ssub.s32 256, 1
            loop: start=0, step=1, limit=1
            $region67: #{custom-call.46} parent=65 // loop_pre_header
              _
            $region68: #{custom-call.46} parent=65 // loop_header
              %s390 = sphi 0, %s394
              %p391 = scmp.ge.s32.totalorder %s390, 1
              %s395 = sphi %s371, %s371
              %s396 = sphi %s380, %s380
            $region69: #{custom-call.46} parent=65 // loop_header_branch
              %393 = sbr.rel (%p391) target = $region73
            $region70: #{custom-call.46} parent=65 // loop_body
              %v397 = vld [vmem:[%s395] sm:%s388]
              %398 = vst [vmem:[%s396] sm:%s388] %v397
              %v399 = vld [vmem:[%s395 + $0x8] sm:%s388]
              %400 = vst [vmem:[%s396 + $0x8] sm:%s388] %v399
            $region71: #{custom-call.46} parent=65 // loop_footer
              %s394 = sadd.s32 1, %s390
            $region72: #{custom-call.46} parent=65 // loop_footer_branch
              %389 = sbr.rel target = $region68
            $region73: #{custom-call.46} parent=65 // loop_exit
              _
          $region66: #{custom-call.46} parent=57 // pred_fallthru
            _
        $region58: #{custom-call.46} parent=53 // pred_fallthru
          _
        %417 = vnop
      $region54: #{custom-call.46} parent=5 // pred_fallthru
        _
      %p418 = scmp.le.s32.totalorder 2, %s3
      // Predicated region
      $region89: #{custom-call.46} parent=5 // pred_check
        %p419 = pneg %p418
      $region90: #{custom-call.46} parent=5 // pred_check_branch
        %421 = sbr.rel (%p419) target = $region92
      $region91: #{custom-call.46} parent=5 // pred_region
        %s422 = ssub.s32 %s3, 2
        %s423 = sand.u32 %s9, 1
        %s424 = sand.u32 %s9, 1
        %s425 = smul.addr %s424, 16
        %s426 = scalar_lea.vmem [#allocation1], %s425
      $region92: #{custom-call.46} parent=5 // pred_fallthru
        _
    $region6: #{custom-call.46} parent=1 // loop_footer
      %s7 = sadd.s32 1, %s3
    $region7: #{custom-call.46} parent=1 // loop_footer_branch
      %2 = sbr.rel target = $region3
    $region8: #{custom-call.46} parent=1 // loop_exit
      _

// kernel: custom-call.16
$region0: #{custom-call.16}
  %s0 = inlined_call_operand.vmem [shape: f32[2,8,8,8], index: 0, kind: input, shape index: {}]
  %s1 = inlined_call_operand.vmem [shape: f32[2,8,8,8], index: 1, kind: input, shape index: {}]
  %s2 = inlined_call_operand.vmem [shape: f32[2,8,8,8], index: 2, kind: input, shape index: {}]
  %s3 = inlined_call_operand.vmem [shape: f32[2,8,8,8], index: 3, kind: input, shape index: {}]
  %s4 = inlined_call_operand.vmem [shape: f32[2,8,8], index: 4, kind: output, shape index: {0}]
  %s5 = inlined_call_operand.vmem [shape: f32[2,8,8], index: 5, kind: output, shape index: {1}]
  %s6 = inlined_call_operand.hbm [shape: f32[2,8,8,8], index: 6, kind: output, shape index: {2}]
  %s7 = inlined_call_operand.hbm [shape: f32[2,8,8,8], index: 7, kind: output, shape index: {3}]
  %s8 = inlined_call_operand.hbm [shape: f32[2,8,8,8], index: 8, kind: output, shape index: {4}]
  %s9 = inlined_call_operand.hbm [shape: f32[2,8,8,8], index: 9, kind: output, shape index: {5}]
  %10 = xla_tuple %s4, %s5, %s6, %s7, %s8, %s9
  $region1: #{custom-call.16} parent=0
    #allocation0 [shape = 'u8[8192]{0}', space=vmem, size = 0x2000, scoped, tag = 'operand span for operand 0']
    #allocation1 [shape = 'u8[8192]{0}', space=vmem, size = 0x2000, scoped, tag = 'operand span for operand 1']
    #allocation2 [shape = 'u8[8192]{0}', space=vmem, size = 0x2000, scoped, tag = 'operand span for operand 2']
    #allocation3 [shape = 'u8[8192]{0}', space=vmem, size = 0x2000, scoped, tag = 'operand span for operand 3']
    #allocation4 [shape = 'u8[8192]{0}', space=vmem, size = 0x2000, scoped, tag = 'operand span for operand 4']
    #allocation5 [shape = 'u8[8192]{0}', space=vmem, size = 0x2000, scoped, tag = 'operand span for operand 5']
    #allocation6 [shape = 'u8[8192]{0}', space=vmem, size = 0x2000, scoped, tag = 'operand span for operand 6']
    #allocation7 [shape = 's32[2]{0}', space=sflag, size = 0x8, scoped, tag = 'scoped memory for custom-call.16']
    #allocation8 [shape = 'u8[8192]{0}', space=vmem, size = 0x2000, scoped, tag = 'operand span for operand 7']
    #allocation9 [shape = 's32[2]{0}', space=sflag, size = 0x8, scoped, tag = 'scoped memory for custom-call.16']
    #allocation10 [shape = 'u8[8192]{0}', space=vmem, size = 0x2000, scoped, tag = 'operand span for operand 8']
    #allocation11 [shape = 'u8[8192]{0}', space=vmem, size = 0x2000, scoped, tag = 'operand span for operand 9']
    #allocation12 [shape = 's32[2]{0}', space=sflag, size = 0x8, scoped, tag = 'scoped memory for custom-call.16']
    %11 = vsyncpa [#allocation7], 0
    %s12 = scalar_lea.sflag [#allocation7], 1
    %13 = vsyncpa %s12, 0
    %14 = vsyncpa [#allocation9], 0
    %s15 = scalar_lea.sflag [#allocation9], 1
    %16 = vsyncpa %s15, 0
    %17 = vsyncpa [#allocation12], 0
    %s18 = scalar_lea.sflag [#allocation12], 1
    %19 = vsyncpa %s18, 0
    loop: start=0, step=1, limit=18
    $region2: #{custom-call.16} parent=1 // loop_pre_header
      _
    $region3: #{custom-call.16} parent=1 // loop_header
      %s21 = sphi 0, %s25
      %p22 = scmp.ge.s32.totalorder %s21, 18
      %s28 = sphi 0, %s40
      %s29 = sphi 0, %s36
      %s30 = sphi 0, %s28
      %s31 = sphi 0, %s29
      %s32 = sphi 0, %s30
      %s33 = sphi 0, %s31
      %s47 = sphi 0, %s49
      %s50 = sphi 0, %s47
      %s51 = sphi 0, %s50
      %s67 = sphi 0, %s51
      %s77 = sphi 0, %s79
      %s80 = sphi 0, %s77
      %s81 = sphi 0, %s80
      %s97 = sphi 0, %s81
    $region4: #{custom-call.16} parent=1 // loop_header_branch
      %24 = sbr.rel (%p22) target = $region8
    $region5: #{custom-call.16} parent=1 // loop_body
      %s26 = ssub.s32 %s21, 1
      %s27 = ssub.s32 %s21, 2
      %s34 = sadd.s32 1, %s29
      %p35 = scmp.ge.s32.totalorder %s34, 8
      %s36 = scalar_select %p35, 0, %s34
      %s37 = sadd.s32 1, %s28
      %s38 = scalar_select %p35, %s37, %s28
      %p39 = scmp.ge.s32.totalorder %s38, 2
      %s40 = scalar_select %p39, 0, %s38
      %s41 = sshrl.u32 %s29, 3
      %s42 = sshrl.u32 %s36, 3
      %s43 = ssub.s32 %s28, %s40
      %s44 = ssub.s32 %s41, %s42
      %s45 = sor.u32 %s43, %s44
      %p46 = scmp.eq.s32.totalorder %s45, 0
      %s48 = sadd.s32 %s47, 1
      %s49 = scalar_select %p46, %s47, %s48
      %p52 = pneg %p46
      %p53 = scmp.eq.s32.totalorder %s21, 15
      %p54 = por %p52, %p53
      %p55 = scmp.ne.s32.totalorder %s47, %s50
      %p56 = scmp.eq.s32.totalorder %s21, 0
      %p57 = por %p55, %p56
      %p58 = scmp.ne.s32.totalorder %s47, %s50
      %p59 = scmp.eq.s32.totalorder %s26, 15
      %p60 = por %p58, %p59
      %p61 = scmp.ne.s32.totalorder %s50, %s51
      %p62 = scmp.eq.s32.totalorder %s26, 0
      %p63 = por %p61, %p62
      %p64 = scmp.ne.s32.totalorder %s50, %s51
      %p65 = scmp.eq.s32.totalorder %s27, 15
      %p66 = por %p64, %p65
      %p68 = scmp.ne.s32.totalorder %s51, %s67
      %p69 = scmp.eq.s32.totalorder %s27, 0
      %p70 = por %p68, %p69
      %s71 = sshrl.u32 %s29, 3
      %s72 = sshrl.u32 %s36, 3
      %s73 = ssub.s32 %s28, %s40
      %s74 = ssub.s32 %s71, %s72
      %s75 = sor.u32 %s73, %s74
      %p76 = scmp.eq.s32.totalorder %s75, 0
      %s78 = sadd.s32 %s77, 1
      %s79 = scalar_select %p76, %s77, %s78
      %p82 = pneg %p76
      %p83 = scmp.eq.s32.totalorder %s21, 15
      %p84 = por %p82, %p83
      %p85 = scmp.ne.s32.totalorder %s77, %s80
      %p86 = scmp.eq.s32.totalorder %s21, 0
      %p87 = por %p85, %p86
      %p88 = scmp.ne.s32.totalorder %s77, %s80
      %p89 = scmp.eq.s32.totalorder %s26, 15
      %p90 = por %p88, %p89
      %p91 = scmp.ne.s32.totalorder %s80, %s81
      %p92 = scmp.eq.s32.totalorder %s26, 0
      %p93 = por %p91, %p92
      %p94 = scmp.ne.s32.totalorder %s80, %s81
      %p95 = scmp.eq.s32.totalorder %s27, 15
      %p96 = por %p94, %p95
      %p98 = scmp.ne.s32.totalorder %s81, %s97
      %p99 = scmp.eq.s32.totalorder %s27, 0
      %p100 = por %p98, %p99
      %p101 = scmp.le.s32.totalorder 1, %s21
      %p102 = scmp.lt.s32.totalorder %s21, 17
      %p103 = pnand %p101, %p102
      %p104 = pneg %p103
      // Predicated region
      $region9: #{custom-call.16} parent=5 // pred_check
        _
      $region10: #{custom-call.16} parent=5 // pred_check_branch
        %106 = sbr.rel (%p103) target = $region12
      $region11: #{custom-call.16} parent=5 // pred_region
        %s107 = ssub.s32 %s21, 1
      $region12: #{custom-call.16} parent=5 // pred_fallthru
        _
      %p108 = scmp.lt.s32.totalorder %s21, 16
      // Predicated region
      $region13: #{custom-call.16} parent=5 // pred_check
        %p109 = pneg %p108
      $region14: #{custom-call.16} parent=5 // pred_check_branch
        %111 = sbr.rel (%p109) target = $region16
      $region15: #{custom-call.16} parent=5 // pred_region
        %s112 = sand.u32 %s21, 1
        %s113 = sand.u32 %s21, 1
        %s114 = smul.addr %s113, 8
        %s115 = scalar_lea.vmem [#allocation0], %s114
        %s116 = smul.addr %s28, 8
        %s117 = sadd.s32 %s29, %s116
        %s118 = smul.addr %s117, 8
        %s119 = scalar_lea.vmem %s0, %s118
        // Predicated region
        $region17: #{custom-call.16} parent=15 // pred_check
          _
        $region18: #{custom-call.16} parent=15 // pred_check_branch
          %121 = sbr.rel (0) target = $region20
        $region19: #{custom-call.16} parent=15 // pred_region
          // Predicated region
          $region21: #{custom-call.16} parent=19 // pred_check
            _
          $region22: #{custom-call.16} parent=19 // pred_check_branch
            %123 = sbr.rel (0) target = $region24
          $region23: #{custom-call.16} parent=19 // pred_region
            // Predicated region
            $region36: #{custom-call.16} parent=23 // pred_check
              _
            $region37: #{custom-call.16} parent=23 // pred_check_branch
              %139 = sbr.rel (0) target = $region39
            $region38: #{custom-call.16} parent=23 // pred_region
              loop: start=0, step=1, limit=1
              $region40: #{custom-call.16} parent=38 // loop_pre_header
                _
              $region41: #{custom-call.16} parent=38 // loop_header
                %s141 = sphi 0, %s145
                %p142 = scmp.ge.s32.totalorder %s141, 1
                %s146 = sphi %s119, %s119
                %s147 = sphi %s115, %s115
              $region42: #{custom-call.16} parent=38 // loop_header_branch
                %144 = sbr.rel (%p142) target = $region46
              $region43: #{custom-call.16} parent=38 // loop_body
                %v148 = vld [vmem:[%s146] sm:$0xff]
                %149 = vst [vmem:[%s147] sm:$0xff] %v148
              $region44: #{custom-call.16} parent=38 // loop_footer
                %s145 = sadd.s32 1, %s141
              $region45: #{custom-call.16} parent=38 // loop_footer_branch
                %140 = sbr.rel target = $region41
              $region46: #{custom-call.16} parent=38 // loop_exit
                _
            $region39: #{custom-call.16} parent=23 // pred_fallthru
              _
            // Predicated region
            $region47: #{custom-call.16} parent=23 // pred_check
              _
            $region48: #{custom-call.16} parent=23 // pred_check_branch
              %151 = sbr.rel target = $region50
            $region49: #{custom-call.16} parent=23 // pred_region
              _
            $region50: #{custom-call.16} parent=23 // pred_fallthru
              _
          $region24: #{custom-call.16} parent=19 // pred_fallthru
            _
          // Predicated region
          $region25: #{custom-call.16} parent=19 // pred_check
            _
          $region26: #{custom-call.16} parent=19 // pred_check_branch
            %125 = sbr.rel target = $region28
          $region27: #{custom-call.16} parent=19 // pred_region
            %s127 = ssub.s32 256, 1
            loop: start=0, step=1, limit=1
            $region29: #{custom-call.16} parent=27 // loop_pre_header
              _
            $region30: #{custom-call.16} parent=27 // loop_header
              %s129 = sphi 0, %s133
              %p130 = scmp.ge.s32.totalorder %s129, 1
              %s134 = sphi %s119, %s119
              %s135 = sphi %s115, %s115
            $region31: #{custom-call.16} parent=27 // loop_header_branch
              %132 = sbr.rel (%p130) target = $region35
            $region32: #{custom-call.16} parent=27 // loop_body
              %v136 = vld [vmem:[%s134] sm:%s127]
              %137 = vst [vmem:[%s135] sm:%s127] %v136
            $region33: #{custom-call.16} parent=27 // loop_footer
              %s133 = sadd.s32 1, %s129
            $region34: #{custom-call.16} parent=27 // loop_footer_branch
              %128 = sbr.rel target = $region30
            $region35: #{custom-call.16} parent=27 // loop_exit
              _
          $region28: #{custom-call.16} parent=19 // pred_fallthru
            _
        $region20: #{custom-call.16} parent=15 // pred_fallthru
          _
        %152 = vnop
        %s153 = sand.u32 %s21, 1
        %s154 = sand.u32 %s21, 1
        %s155 = smul.addr %s154, 8
        %s156 = scalar_lea.vmem [#allocation1], %s155
        %s157 = smul.addr %s28, 8
        %s158 = sadd.s32 %s29, %s157
        %s159 = smul.addr %s158, 8
        %s160 = scalar_lea.vmem %s1, %s159
        // Predicated region
        $region51: #{custom-call.16} parent=15 // pred_check
          _
        $region52: #{custom-call.16} parent=15 // pred_check_branch
          %162 = sbr.rel (0) target = $region54
        $region53: #{custom-call.16} parent=15 // pred_region
          // Predicated region
          $region55: #{custom-call.16} parent=53 // pred_check
            _
          $region56: #{custom-call.16} parent=53 // pred_check_branch
            %164 = sbr.rel (0) target = $region58
          $region57: #{custom-call.16} parent=53 // pred_region
            // Predicated region
            $region70: #{custom-call.16} parent=57 // pred_check
              _
            $region71: #{custom-call.16} parent=57 // pred_check_branch
              %180 = sbr.rel (0) target = $region73
            $region72: #{custom-call.16} parent=57 // pred_region
              loop: start=0, step=1, limit=1
              $region74: #{custom-call.16} parent=72 // loop_pre_header
                _
              $region75: #{custom-call.16} parent=72 // loop_header
                %s182 = sphi 0, %s186
                %p183 = scmp.ge.s32.totalorder %s182, 1
                %s187 = sphi %s160, %s160
                %s188 = sphi %s156, %s156
              $region76: #{custom-call.16} parent=72 // loop_header_branch
                %185 = sbr.rel (%p183) target = $region80
              $region77: #{custom-call.16} parent=72 // loop_body
                %v189 = vld [vmem:[%s187] sm:$0xff]
                %190 = vst [vmem:[%s188] sm:$0xff] %v189
              $region78: #{custom-call.16} parent=72 // loop_footer
                %s186 = sadd.s32 1, %s182
              $region79: #{custom-call.16} parent=72 // loop_footer_branch
                %181 = sbr.rel target = $region75
              $region80: #{custom-call.16} parent=72 // loop_exit
                _
            $region73: #{custom-call.16} parent=57 // pred_fallthru
              _
            // Predicated region
            $region81: #{custom-call.16} parent=57 // pred_check
              _
            $region82: #{custom-call.16} parent=57 // pred_check_branch
              %192 = sbr.rel target = $region84
            $region83: #{custom-call.16} parent=57 // pred_region
              _
            $region84: #{custom-call.16} parent=57 // pred_fallthru
              _
          $region58: #{custom-call.16} parent=53 // pred_fallthru
            _
          // Predicated region
          $region59: #{custom-call.16} parent=53 // pred_check
            _
          $region60: #{custom-call.16} parent=53 // pred_check_branch
            %166 = sbr.rel target = $region62
          $region61: #{custom-call.16} parent=53 // pred_region
            %s168 = ssub.s32 256, 1
            loop: start=0, step=1, limit=1
            $region63: #{custom-call.16} parent=61 // loop_pre_header
              _
            $region64: #{custom-call.16} parent=61 // loop_header
              %s170 = sphi 0, %s174
              %p171 = scmp.ge.s32.totalorder %s170, 1
              %s175 = sphi %s160, %s160
              %s176 = sphi %s156, %s156
            $region65: #{custom-call.16} parent=61 // loop_header_branch
              %173 = sbr.rel (%p171) target = $region69
            $region66: #{custom-call.16} parent=61 // loop_body
              %v177 = vld [vmem:[%s175] sm:%s168]
              %178 = vst [vmem:[%s176] sm:%s168] %v177
            $region67: #{custom-call.16} parent=61 // loop_footer
              %s174 = sadd.s32 1, %s170
            $region68: #{custom-call.16} parent=61 // loop_footer_branch
              %169 = sbr.rel target = $region64
            $region69: #{custom-call.16} parent=61 // loop_exit
              _
          $region62: #{custom-call.16} parent=53 // pred_fallthru
            _
        $region54: #{custom-call.16} parent=15 // pred_fallthru
          _
        %193 = vnop
        %s194 = sand.u32 %s21, 1
        %s195 = sand.u32 %s21, 1
        %s196 = smul.addr %s195, 8
        %s197 = scalar_lea.vmem [#allocation2], %s196
        %s198 = smul.addr %s28, 8
        %s199 = sadd.s32 %s29, %s198
        %s200 = smul.addr %s199, 8
        %s201 = scalar_lea.vmem %s2, %s200
        // Predicated region
        $region85: #{custom-call.16} parent=15 // pred_check
          _
        $region86: #{custom-call.16} parent=15 // pred_check_branch
          %203 = sbr.rel (0) target = $region88
        $region87: #{custom-call.16} parent=15 // pred_region
          // Predicated region
          $region89: #{custom-call.16} parent=87 // pred_check
            _
          $region90: #{custom-call.16} parent=87 // pred_check_branch
            %205 = sbr.rel (0) target = $region92
          $region91: #{custom-call.16} parent=87 // pred_region
            // Predicated region
            $region104: #{custom-call.16} parent=91 // pred_check
              _
            $region105: #{custom-call.16} parent=91 // pred_check_branch
              %221 = sbr.rel (0) target = $region107
            $region106: #{custom-call.16} parent=91 // pred_region
              loop: start=0, step=1, limit=1
              $region108: #{custom-call.16} parent=106 // loop_pre_header
                _
              $region109: #{custom-call.16} parent=106 // loop_header
                %s223 = sphi 0, %s227
                %p224 = scmp.ge.s32.totalorder %s223, 1
                %s228 = sphi %s201, %s201
                %s229 = sphi %s197, %s197
              $region110: #{custom-call.16} parent=106 // loop_header_branch
                %226 = sbr.rel (%p224) target = $region114
              $region111: #{custom-call.16} parent=106 // loop_body
                %v230 = vld [vmem:[%s228] sm:$0xff]
                %231 = vst [vmem:[%s229] sm:$0xff] %v230
              $region112: #{custom-call.16} parent=106 // loop_footer
                %s227 = sadd.s32 1, %s223
              $region113: #{custom-call.16} parent=106 // loop_footer_branch
                %222 = sbr.rel target = $region109
              $region114: #{custom-call.16} parent=106 // loop_exit
                _
            $region107: #{custom-call.16} parent=91 // pred_fallthru
              _
            // Predicated region
            $region115: #{custom-call.16} parent=91 // pred_check
              _
            $region116: #{custom-call.16} parent=91 // pred_check_branch
              %233 = sbr.rel target = $region118
            $region117: #{custom-call.16} parent=91 // pred_region
              _
            $region118: #{custom-call.16} parent=91 // pred_fallthru
              _
          $region92: #{custom-call.16} parent=87 // pred_fallthru
            _
          // Predicated region
          $region93: #{custom-call.16} parent=87 // pred_check
            _
          $region94: #{custom-call.16} parent=87 // pred_check_branch
            %207 = sbr.rel target = $region96
          $region95: #{custom-call.16} parent=87 // pred_region
            %s209 = ssub.s32 256, 1
            loop: start=0, step=1, limit=1
            $region97: #{custom-call.16} parent=95 // loop_pre_header
              _
            $region98: #{custom-call.16} parent=95 // loop_header
              %s211 = sphi 0, %s215
              %p212 = scmp.ge.s32.totalorder %s211, 1
              %s216 = sphi %s201, %s201
              %s217 = sphi %s197, %s197
            $region99: #{custom-call.16} parent=95 // loop_header_branch
              %214 = sbr.rel (%p212) target = $region103
            $region100: #{custom-call.16} parent=95 // loop_body
              %v218 = vld [vmem:[%s216] sm:%s209]
              %219 = vst [vmem:[%s217] sm:%s209] %v218
            $region101: #{custom-call.16} parent=95 // loop_footer
              %s215 = sadd.s32 1, %s211
            $region102: #{custom-call.16} parent=95 // loop_footer_branch
              %210 = sbr.rel target = $region98
            $region103: #{custom-call.16} parent=95 // loop_exit
              _
          $region96: #{custom-call.16} parent=87 // pred_fallthru
            _
        $region88: #{custom-call.16} parent=15 // pred_fallthru
          _
        %234 = vnop
        %s235 = sand.u32 %s21, 1
        %s236 = sand.u32 %s21, 1
        %s237 = smul.addr %s236, 8
        %s238 = scalar_lea.vmem [#allocation3], %s237
        %s239 = smul.addr %s28, 8
        %s240 = sadd.s32 %s29, %s239
        %s241 = smul.addr %s240, 8
        %s242 = scalar_lea.vmem %s3, %s241
        // Predicated region
        $region119: #{custom-call.16} parent=15 // pred_check
          _
        $region120: #{custom-call.16} parent=15 // pred_check_branch
          %244 = sbr.rel (0) target = $region122
        $region121: #{custom-call.16} parent=15 // pred_region
          // Predicated region
          $region123: #{custom-call.16} parent=121 // pred_check
            _
          $region124: #{custom-call.16} parent=121 // pred_check_branch
            %246 = sbr.rel (0) target = $region126
          $region125: #{custom-call.16} parent=121 // pred_region
            // Predicated region
            $region138: #{custom-call.16} parent=125 // pred_check
              _
            $region139: #{custom-call.16} parent=125 // pred_check_branch
              %262 = sbr.rel (0) target = $region141
            $region140: #{custom-call.16} parent=125 // pred_region
              loop: start=0, step=1, limit=1
              $region142: #{custom-call.16} parent=140 // loop_pre_header
                _
              $region143: #{custom-call.16} parent=140 // loop_header
                %s264 = sphi 0, %s268
                %p265 = scmp.ge.s32.totalorder %s264, 1
                %s269 = sphi %s242, %s242
                %s270 = sphi %s238, %s238
              $region144: #{custom-call.16} parent=140 // loop_header_branch
                %267 = sbr.rel (%p265) target = $region148
              $region145: #{custom-call.16} parent=140 // loop_body
                %v271 = vld [vmem:[%s269] sm:$0xff]
                %272 = vst [vmem:[%s270] sm:$0xff] %v271
              $region146: #{custom-call.16} parent=140 // loop_footer
                %s268 = sadd.s32 1, %s264
              $region147: #{custom-call.16} parent=140 // loop_footer_branch
                %263 = sbr.rel target = $region143
              $region148: #{custom-call.16} parent=140 // loop_exit
                _
            $region141: #{custom-call.16} parent=125 // pred_fallthru
              _
            // Predicated region
            $region149: #{custom-call.16} parent=125 // pred_check
              _
            $region150: #{custom-call.16} parent=125 // pred_check_branch
              %274 = sbr.rel target = $region152
            $region151: #{custom-call.16} parent=125 // pred_region
              _
            $region152: #{custom-call.16} parent=125 // pred_fallthru
              _
          $region126: #{custom-call.16} parent=121 // pred_fallthru
            _
          // Predicated region
          $region127: #{custom-call.16} parent=121 // pred_check
            _
          $region128: #{custom-call.16} parent=121 // pred_check_branch
            %248 = sbr.rel target = $region130
          $region129: #{custom-call.16} parent=121 // pred_region
            %s250 = ssub.s32 256, 1
            loop: start=0, step=1, limit=1
            $region131: #{custom-call.16} parent=129 // loop_pre_header
              _
            $region132: #{custom-call.16} parent=129 // loop_header
              %s252 = sphi 0, %s256
              %p253 = scmp.ge.s32.totalorder %s252, 1
              %s257 = sphi %s242, %s242
              %s258 = sphi %s238, %s238
            $region133: #{custom-call.16} parent=129 // loop_header_branch
              %255 = sbr.rel (%p253) target = $region137
            $region134: #{custom-call.16} parent=129 // loop_body
              %v259 = vld [vmem:[%s257] sm:%s250]
              %260 = vst [vmem:[%s258] sm:%s250] %v259
            $region135: #{custom-call.16} parent=129 // loop_footer
              %s256 = sadd.s32 1, %s252
            $region136: #{custom-call.16} parent=129 // loop_footer_branch
              %251 = sbr.rel target = $region132
            $region137: #{custom-call.16} parent=129 // loop_exit
              _
          $region130: #{custom-call.16} parent=121 // pred_fallthru
            _
        $region122: #{custom-call.16} parent=15 // pred_fallthru
          _
        %275 = vnop
      $region16: #{custom-call.16} parent=5 // pred_fallthru
        _
      %p276 = scmp.le.s32.totalorder 1, %s21
      %p277 = scmp.lt.s32.totalorder %s21, 17
      %p278 = pnand %p276, %p277
      %p279 = pneg %p278
      // Predicated region
      $region153: #{custom-call.16} parent=5 // pred_check
        _
      $region154: #{custom-call.16} parent=5 // pred_check_branch
        %281 = sbr.rel (%p278) target = $region156
      $region155: #{custom-call.16} parent=5 // pred_region
        #allocation13 [shape = 'f32[8,8]{1,0}', space=vmem, size = 0x1000, scoped, tag = 'a top-left matrix']
        #allocation14 [shape = 'f32[8,8]{1,0}', space=vmem, size = 0x1000, scoped, tag = 'a top-right matrix']
        #allocation15 [shape = 'f32[8,8]{1,0}', space=vmem, size = 0x1000, scoped, tag = 'a bottom-left matrix']
        #allocation16 [shape = 'f32[8,8]{1,0}', space=vmem, size = 0x1000, scoped, tag = 'a bottom-right matrix']
        %s282 = ssub.s32 %s21, 1
        %s283 = sand.u32 %s26, 1
        %s284 = sand.u32 %s26, 1
        %s285 = smul.addr %s284, 8
        %s286 = scalar_lea.vmem [#allocation0], %s285
        %s287 = sand.u32 %s26, 1
        %s288 = sand.u32 %s26, 1
        %s289 = smul.addr %s288, 8
        %s290 = scalar_lea.vmem [#allocation1], %s289
        %s291 = sand.u32 %s26, 1
        %s292 = sand.u32 %s26, 1
        %s293 = smul.addr %s292, 8
        %s294 = scalar_lea.vmem [#allocation2], %s293
        %s295 = sand.u32 %s26, 1
        %s296 = sand.u32 %s26, 1
        %s297 = smul.addr %s296, 8
        %s298 = scalar_lea.vmem [#allocation3], %s297
        %s299 = sand.u32 %s26, 1
        %s300 = sand.u32 %s26, 1
        %s301 = smul.addr %s300, 8
        %s302 = scalar_lea.vmem [#allocation0], %s301
        %s303 = sand.u32 %s26, 1
        %s304 = sand.u32 %s26, 1
        %s305 = smul.addr %s304, 8
        %s306 = scalar_lea.vmem [#allocation1], %s305
        %s307 = sand.u32 %s26, 1
        %s308 = sand.u32 %s26, 1
        %s309 = smul.addr %s308, 8
        %s310 = scalar_lea.vmem [#allocation2], %s309
        %s311 = sand.u32 %s26, 1
        %s312 = sand.u32 %s26, 1
        %s313 = smul.addr %s312, 8
        %s314 = scalar_lea.vmem [#allocation3], %s313
        %p315 = pneg %p63
        %p316 = pneg %p60
        %s317 = sand.u32 %s50, 1
        %s318 = sand.u32 %s50, 1
        %s319 = smul.addr %s318, 8
        %s320 = scalar_lea.vmem [#allocation4], %s319
        %p321 = pneg %p93
        %p322 = pneg %p90
        %s323 = sand.u32 %s80, 1
        %s324 = sand.u32 %s80, 1
        %s325 = smul.addr %s324, 8
        %s326 = scalar_lea.vmem [#allocation5], %s325
        %s327 = sand.u32 %s26, 1
        %s328 = scalar_lea.sflag [#allocation7], %s327
        %s329 = sand.u32 %s26, 1
        %s330 = smul.addr %s329, 8
        %s331 = scalar_lea.vmem [#allocation6], %s330
        %s332 = sand.u32 %s26, 1
        %s333 = scalar_lea.sflag [#allocation9], %s332
        %s334 = sand.u32 %s26, 1
        %s335 = smul.addr %s334, 8
        %s336 = scalar_lea.vmem [#allocation8], %s335
        %s337 = sand.u32 %s26, 1
        %s338 = scalar_lea.sflag [#allocation9], %s337
        %s339 = sand.u32 %s26, 1
        %s340 = smul.addr %s339, 8
        %s341 = scalar_lea.vmem [#allocation10], %s340
        %s342 = sand.u32 %s26, 1
        %s343 = scalar_lea.sflag [#allocation12], %s342
        %s344 = sand.u32 %s26, 1
        %s345 = smul.addr %s344, 8
        %s346 = scalar_lea.vmem [#allocation11], %s345
        %s347 = sshrl.u32 %s31, 3
        %s348 = sshrl.u32 %s31, 3
        %s349 = smov [#allocation13]
        %v350 = vld [vmem:[%s286] sm:$0xff]
        %351 = vst [vmem:[%s349] sm:$0xff] %v350
        %s352 = smov [#allocation14]
        %v353 = vld [vmem:[%s290] sm:$0xff]
        %354 = vst [vmem:[%s352] sm:$0xff] %v353
        %s355 = smov [#allocation15]
        %v356 = vld [vmem:[%s294] sm:$0xff]
        %357 = vst [vmem:[%s355] sm:$0xff] %v356
        %s358 = smov [#allocation16]
        %v359 = vld [vmem:[%s298] sm:$0xff]
        %360 = vst [vmem:[%s358] sm:$0xff] %v359
        %361 = vst [vmem:[%s331] sm:$0xff] 0.0
        %362 = vst [vmem:[%s336] sm:$0xff] 0.0
        %363 = vst [vmem:[%s341] sm:$0xff] 0.0
        %364 = vst [vmem:[%s346] sm:$0xff] 0.0
        %s365 = smov %s331
        %v366 = vlaneseq
        %v367 = vand.u32 %v366, 127
        %v368 = vmov %v367
        %v369 = vlaneseq
        %v370 = vshrl.u32 %v369, 7
        %v371 = vmov %v370
        %v372 = vld [vmem:[%s365] sm:$0xff]
        %vm375 = vcmp.eq.s32.totalorder %v371, %v368
        %v376 = vsel %vm375, 1.0, %v372
        %377 = vst [vmem:[%s365] sm:$0xff] %v376
        %s378 = smov %s346
        %v379 = vlaneseq
        %v380 = vand.u32 %v379, 127
        %v381 = vmov %v380
        %v382 = vlaneseq
        %v383 = vshrl.u32 %v382, 7
        %v384 = vmov %v383
        %v385 = vld [vmem:[%s378] sm:$0xff]
        %vm388 = vcmp.eq.s32.totalorder %v384, %v381
        %v389 = vsel %vm388, 1.0, %v385
        %390 = vst [vmem:[%s378] sm:$0xff] %v389
        // While loop
        $region157: #{custom-call.16} parent=155 // loop_pre_header
          _
        $region158: #{custom-call.16} parent=155 // loop_header
          %s392 = sphi 0, %s934
          %v393 = vlaneseq
          %v394 = vand.u32 %v393, 127
          %v395 = vmov %v394
          %v396 = vlaneseq
          %v397 = vshrl.u32 %v396, 7
          %v398 = vmov %v397
          %s399 = smov [#allocation13]
          %v400 = vlaneseq
          %v401 = vand.u32 %v400, 127
          %vm402 = vcmp.ge.s32.totalorder %v401, 0
          %vm403 = vcmp.lt.s32.totalorder %v401, 8
          %vm404 = vmand %vm402, %vm403
          %v405 = vld [vmem:[%s399] sm:$0xff]
          %v406 = vsel %vm404, %v405, 0.0
          %v407 = vmul.f32 %v406, %v406
          %vm410 = vcmp.eq.s32.totalorder %v398, %v395
          %v411 = vsel %vm410, 0.0, %v407
          %v412 = vlaneseq
          %v413 = vand.u32 %v412, 127
          %v414 = vmov %v413
          %v415 = vlaneseq
          %v416 = vshrl.u32 %v415, 7
          %v417 = vmov %v416
          %s418 = smov [#allocation14]
          %v419 = vlaneseq
          %v420 = vand.u32 %v419, 127
          %vm421 = vcmp.ge.s32.totalorder %v420, 0
          %vm422 = vcmp.lt.s32.totalorder %v420, 8
          %vm423 = vmand %vm421, %vm422
          %v424 = vld [vmem:[%s418] sm:$0xff]
          %v425 = vsel %vm423, %v424, 0.0
          %v426 = vmul.f32 %v425, %v425
          %v427 = vadd.f32 %v411, %v426
          %v428 = vadd.f32 %v407, %v426
          %v429 = vlaneseq
          %v430 = vand.u32 %v429, 127
          %v431 = vmov %v430
          %v432 = vlaneseq
          %v433 = vshrl.u32 %v432, 7
          %v434 = vmov %v433
          %s435 = smov [#allocation15]
          %v436 = vlaneseq
          %v437 = vand.u32 %v436, 127
          %vm438 = vcmp.ge.s32.totalorder %v437, 0
          %vm439 = vcmp.lt.s32.totalorder %v437, 8
          %vm440 = vmand %vm438, %vm439
          %v441 = vld [vmem:[%s435] sm:$0xff]
          %v442 = vsel %vm440, %v441, 0.0
          %v443 = vmul.f32 %v442, %v442
          %v444 = vadd.f32 %v427, %v443
          %v445 = vadd.f32 %v428, %v443
          %v446 = vlaneseq
          %v447 = vand.u32 %v446, 127
          %v448 = vmov %v447
          %v449 = vlaneseq
          %v450 = vshrl.u32 %v449, 7
          %v451 = vmov %v450
          %s452 = smov [#allocation16]
          %v453 = vlaneseq
          %v454 = vand.u32 %v453, 127
          %vm455 = vcmp.ge.s32.totalorder %v454, 0
          %vm456 = vcmp.lt.s32.totalorder %v454, 8
          %vm457 = vmand %vm455, %vm456
          %v458 = vld [vmem:[%s452] sm:$0xff]
          %v459 = vsel %vm457, %v458, 0.0
          %v460 = vmul.f32 %v459, %v459
          %vm463 = vcmp.eq.s32.totalorder %v451, %v448
          %v464 = vsel %vm463, 0.0, %v460
          %v465 = vadd.f32 %v444, %v464
          %v466 = vadd.f32 %v445, %v460
          %467 = vadd.xlane.f32.xlu0 %v466
          %v468 = vpop.xlane.xlu0 %467
          %v469 = vrot.slane %v468, 4
          %v470 = vadd.f32 %v468, %v469
          %v471 = vrot.slane %v470, 2
          %v472 = vadd.f32 %v470, %v471
          %v473 = vrot.slane %v472, 1
          %v474 = vadd.f32 %v472, %v473
          %475 = vadd.xlane.f32.xlu0 %v465
          %v476 = vpop.xlane.xlu0 %475
          %v477 = vrot.slane %v476, 4
          %v478 = vadd.f32 %v476, %v477
          %v479 = vrot.slane %v478, 2
          %v480 = vadd.f32 %v478, %v479
          %v481 = vrot.slane %v480, 1
          %v482 = vadd.f32 %v480, %v481
          %s483 = vtos %v482
          %s484 = vtos %v474
          %s485 = smul.f32 1e-10, %s484
          %p486 = scmp.le.f32.partialorder %s483, %s485
          %p487 = scmp.ge.s32.totalorder %s392, 15
          %p488 = por %p486, %p487
        $region159: #{custom-call.16} parent=155 // loop_header_branch
          %936 = sbr.rel (%p488) target = $region163
        $region160: #{custom-call.16} parent=155 // loop_body
          loop: start=0, step=1, limit=15
          $region164: #{custom-call.16} parent=160 // loop_pre_header
            _
          $region165: #{custom-call.16} parent=160 // loop_header
            %s490 = sphi 0, %s494
            %p491 = scmp.ge.s32.totalorder %s490, 15
          $region166: #{custom-call.16} parent=160 // loop_header_branch
            %493 = sbr.rel (%p491) target = $region170
          $region167: #{custom-call.16} parent=160 // loop_body
            #allocation17 [shape = 'f32[1024]{0}', space=vmem, size = 0x1000, scoped, tag = 'a_tl_diag vmem']
            #allocation18 [shape = 'f32[1024]{0}', space=vmem, size = 0x1000, scoped, tag = 'a_tr_diag vmem']
            #allocation19 [shape = 'f32[1024]{0}', space=vmem, size = 0x1000, scoped, tag = 'a_br_diag vmem']
            #allocation20 [shape = 'f32[1024]{0}', space=vmem, size = 0x1000, scoped, tag = 'rt1 vmem']
            #allocation21 [shape = 'f32[1024]{0}', space=vmem, size = 0x1000, scoped, tag = 'rt2 vmem']
            #allocation22 [shape = 'f32[1024]{0}', space=vmem, size = 0x1000, scoped, tag = 'c vmem']
            #allocation23 [shape = 'f32[1024]{0}', space=vmem, size = 0x1000, scoped, tag = 's vmem']
            #allocation24 [shape = 'f32[4096]{0}', space=vmem, size = 0x4000, scoped, tag = 'c broadcast']
            #allocation25 [shape = 'f32[4096]{0}', space=vmem, size = 0x4000, scoped, tag = 's broadcast']
            %s495 = smov [#allocation13]
            %s496 = smov [#allocation17]
            %v497 = vlaneseq
            %v498 = vand.u32 %v497, 127
            %v499 = vmov %v498
            %v500 = vlaneseq
            %v501 = vshrl.u32 %v500, 7
            %v502 = vmov %v501
            %v503 = vld [vmem:[%s495] sm:$0xff]
            %vm506 = vcmp.eq.s32.totalorder %v502, %v499
            %v507 = vsel %vm506, %v503, 0.0
            %v508 = vrot.slane %v507, 4
            %v509 = vadd.f32 %v507, %v508
            %v510 = vrot.slane %v509, 2
            %v511 = vadd.f32 %v509, %v510
            %v512 = vrot.slane %v511, 1
            %v513 = vadd.f32 %v511, %v512
            %514 = vst [vmem:[%s496] sm:$0x1] %v513
            %s515 = smov [#allocation14]
            %s516 = smov [#allocation18]
            %v517 = vlaneseq
            %v518 = vand.u32 %v517, 127
            %v519 = vmov %v518
            %v520 = vlaneseq
            %v521 = vshrl.u32 %v520, 7
            %v522 = vmov %v521
            %v523 = vld [vmem:[%s515] sm:$0xff]
            %vm526 = vcmp.eq.s32.totalorder %v522, %v519
            %v527 = vsel %vm526, %v523, 0.0
            %v528 = vrot.slane %v527, 4
            %v529 = vadd.f32 %v527, %v528
            %v530 = vrot.slane %v529, 2
            %v531 = vadd.f32 %v529, %v530
            %v532 = vrot.slane %v531, 1
            %v533 = vadd.f32 %v531, %v532
            %534 = vst [vmem:[%s516] sm:$0x1] %v533
            %s535 = smov [#allocation16]
            %s536 = smov [#allocation19]
            %v537 = vlaneseq
            %v538 = vand.u32 %v537, 127
            %v539 = vmov %v538
            %v540 = vlaneseq
            %v541 = vshrl.u32 %v540, 7
            %v542 = vmov %v541
            %v543 = vld [vmem:[%s535] sm:$0xff]
            %vm546 = vcmp.eq.s32.totalorder %v542, %v539
            %v547 = vsel %vm546, %v543, 0.0
            %v548 = vrot.slane %v547, 4
            %v549 = vadd.f32 %v547, %v548
            %v550 = vrot.slane %v549, 2
            %v551 = vadd.f32 %v549, %v550
            %v552 = vrot.slane %v551, 1
            %v553 = vadd.f32 %v551, %v552
            %554 = vst [vmem:[%s536] sm:$0x1] %v553
            %s555 = smov [#allocation22]
            %s556 = smov [#allocation23]
            %s557 = smov [#allocation17]
            %v558 = vld [vmem:[%s557] sm:$0xff]
            %s559 = smov [#allocation18]
            %v560 = vld [vmem:[%s559] sm:$0xff]
            %s561 = smov [#allocation19]
            %v562 = vld [vmem:[%s561] sm:$0xff]
            %v563 = vsub.f32 %v562, %v558
            %v564 = vmul.f32 2.0, %v560
            %v565 = vrcp.pop %v564
            %v566 = vmul.f32 %v563, %v565
            %vm567 = vcmp.ge.f32.partialorder %v566, 0.0
            %v568 = vmul.f32 %v566, %v566
            %v569 = vadd.f32 1.0, %v568
            %v570 = vrsqrt.pop %v569
            %v571 = vmul.f32 %v569, %v570
            %vm572 = vcmp.eq.f32.partialorder %v569, inf
            %v573 = vsel %vm572, %v569, %v571
            %vm574 = vcmp.eq.f32.partialorder %v569, 0.0
            %v575 = vand.u32 %v569, 2147483648
            %v576 = vsel %vm574, %v575, %v573
            %v577 = vxor.u32 %v576, 2147483648
            %v578 = vsel %vm567, %v576, %v577
            %v579 = vadd.f32 %v566, %v578
            %v580 = vrcp.pop %v579
            %v581 = vand.u32 2147483647, %v558
            %v582 = vand.u32 2147483647, %v560
            %v583 = vand.u32 2147483647, %v562
            %v584 = vmin.f32 %v581, %v583
            %v585 = vmul.f32 1.1920929e-08, %v584
            %vm586 = vcmp.le.f32.partialorder %v582, %v585
            %v587 = vsel %vm586, 0.0, %v580
            %v588 = vmul.f32 %v587, %v587
            %v589 = vadd.f32 1.0, %v588
            %v590 = vrsqrt.pop %v589
            %v591 = vmul.f32 %v587, %v590
            %v592 = vmul.f32 %v587, %v560
            %v593 = vsub.f32 %v558, %v592
            %v594 = vmul.f32 %v587, %v560
            %v595 = vadd.f32 %v562, %v594
            %s596 = smov [#allocation20]
            %597 = vst [vmem:[%s596] sm:$0xff] %v593
            %s598 = smov [#allocation21]
            %599 = vst [vmem:[%s598] sm:$0xff] %v595
            %s600 = smov %s555
            %601 = vst [vmem:[%s600] sm:$0xff] %v590
            %s602 = smov %s556
            %603 = vst [vmem:[%s602] sm:$0xff] %v591
            %s604 = smov [#allocation22]
            %v605 = vld [vmem:[%s604] ss:$0 sm:$0xff]
            %v606 = vlaneseq
            %v607 = vand.u32 %v606, 127
            %v608 = vmov %v607
            %v609 = vlaneseq
            %v610 = vshrl.u32 %v609, 7
            %v611 = vmov %v610
            %vm613 = vcmp.eq.s32.totalorder %v611, %v608
            %v614 = vsel %vm613, %v605, 0.0
            %615 = vadd.xlane.f32.xlu0 %v614
            %v616 = vpop.xlane.xlu0 %615
            %s617 = smov [#allocation24]
            %618 = vst [vmem:[%s617] sm:$0xff] %v616
            %s619 = smov [#allocation23]
            %v620 = vld [vmem:[%s619] ss:$0 sm:$0xff]
            %v621 = vlaneseq
            %v622 = vand.u32 %v621, 127
            %v623 = vmov %v622
            %v624 = vlaneseq
            %v625 = vshrl.u32 %v624, 7
            %v626 = vmov %v625
            %vm628 = vcmp.eq.s32.totalorder %v626, %v623
            %v629 = vsel %vm628, %v620, 0.0
            %630 = vadd.xlane.f32.xlu0 %v629
            %v631 = vpop.xlane.xlu0 %630
            %s632 = smov [#allocation25]
            %633 = vst [vmem:[%s632] sm:$0xff] %v631
            %s634 = smov [#allocation24]
            %v635 = vld [vmem:[%s634] sm:$0xff]
            %s636 = smov [#allocation25]
            %v637 = vld [vmem:[%s636] sm:$0xff]
            %s638 = smov [#allocation13]
            %s639 = smov [#allocation14]
            %s640 = smov [#allocation15]
            %s641 = smov [#allocation16]
            %v642 = vld [vmem:[%s638] sm:$0xff]
            %v643 = vld [vmem:[%s639] sm:$0xff]
            %v644 = vld [vmem:[%s640] sm:$0xff]
            %v645 = vld [vmem:[%s641] sm:$0xff]
            %v646 = vmul.f32 %v635, %v642
            %v647 = vmul.f32 %v637, %v644
            %v648 = vsub.f32 %v646, %v647
            %v649 = vmul.f32 %v635, %v643
            %v650 = vmul.f32 %v637, %v645
            %v651 = vsub.f32 %v649, %v650
            %v652 = vmul.f32 %v637, %v642
            %v653 = vmul.f32 %v635, %v644
            %v654 = vadd.f32 %v652, %v653
            %v655 = vmul.f32 %v637, %v643
            %v656 = vmul.f32 %v635, %v645
            %v657 = vadd.f32 %v655, %v656
            %658 = vst [vmem:[%s638] sm:$0xff] %v648
            %659 = vst [vmem:[%s639] sm:$0xff] %v651
            %660 = vst [vmem:[%s640] sm:$0xff] %v654
            %661 = vst [vmem:[%s641] sm:$0xff] %v657
            %s662 = smov [#allocation22]
            %v663 = vld [vmem:[%s662] ss:$0 sm:$0xff]
            %s664 = smov [#allocation23]
            %v665 = vld [vmem:[%s664] ss:$0 sm:$0xff]
            %s666 = smov [#allocation13]
            %s667 = smov [#allocation14]
            %s668 = smov [#allocation15]
            %s669 = smov [#allocation16]
            %v670 = vld [vmem:[%s666] sm:$0xff]
            %v671 = vld [vmem:[%s667] sm:$0xff]
            %v672 = vld [vmem:[%s668] sm:$0xff]
            %v673 = vld [vmem:[%s669] sm:$0xff]
            %v674 = vmul.f32 %v663, %v670
            %v675 = vmul.f32 %v665, %v671
            %v676 = vsub.f32 %v674, %v675
            %v677 = vmul.f32 %v665, %v670
            %v678 = vmul.f32 %v663, %v671
            %v679 = vadd.f32 %v677, %v678
            %v680 = vmul.f32 %v663, %v672
            %v681 = vmul.f32 %v665, %v673
            %v682 = vsub.f32 %v680, %v681
            %v683 = vmul.f32 %v665, %v672
            %v684 = vmul.f32 %v663, %v673
            %v685 = vadd.f32 %v683, %v684
            %686 = vst [vmem:[%s666] sm:$0xff] %v676
            %687 = vst [vmem:[%s667] sm:$0xff] %v679
            %688 = vst [vmem:[%s668] sm:$0xff] %v682
            %689 = vst [vmem:[%s669] sm:$0xff] %v685
            %s690 = smov [#allocation13]
            %s691 = smov [#allocation20]
            %v692 = vlaneseq
            %v693 = vand.u32 %v692, 127
            %v694 = vmov %v693
            %v695 = vlaneseq
            %v696 = vshrl.u32 %v695, 7
            %v697 = vmov %v696
            %v698 = vld [vmem:[%s691] ss:$0 sm:$0xff]
            %v699 = vld [vmem:[%s690] sm:$0xff]
            %vm702 = vcmp.eq.s32.totalorder %v697, %v694
            %v703 = vsel %vm702, %v698, %v699
            %704 = vst [vmem:[%s690] sm:$0xff] %v703
            %s705 = smov [#allocation14]
            %v706 = vlaneseq
            %v707 = vand.u32 %v706, 127
            %v708 = vmov %v707
            %v709 = vlaneseq
            %v710 = vshrl.u32 %v709, 7
            %v711 = vmov %v710
            %v712 = vld [vmem:[%s705] sm:$0xff]
            %vm715 = vcmp.eq.s32.totalorder %v711, %v708
            %v716 = vsel %vm715, 0.0, %v712
            %717 = vst [vmem:[%s705] sm:$0xff] %v716
            %s718 = smov [#allocation15]
            %v719 = vlaneseq
            %v720 = vand.u32 %v719, 127
            %v721 = vmov %v720
            %v722 = vlaneseq
            %v723 = vshrl.u32 %v722, 7
            %v724 = vmov %v723
            %v725 = vld [vmem:[%s718] sm:$0xff]
            %vm728 = vcmp.eq.s32.totalorder %v724, %v721
            %v729 = vsel %vm728, 0.0, %v725
            %730 = vst [vmem:[%s718] sm:$0xff] %v729
            %s731 = smov [#allocation16]
            %s732 = smov [#allocation21]
            %v733 = vlaneseq
            %v734 = vand.u32 %v733, 127
            %v735 = vmov %v734
            %v736 = vlaneseq
            %v737 = vshrl.u32 %v736, 7
            %v738 = vmov %v737
            %v739 = vld [vmem:[%s732] ss:$0 sm:$0xff]
            %v740 = vld [vmem:[%s731] sm:$0xff]
            %vm743 = vcmp.eq.s32.totalorder %v738, %v735
            %v744 = vsel %vm743, %v739, %v740
            %745 = vst [vmem:[%s731] sm:$0xff] %v744
            %s746 = smov [#allocation13]
            %s747 = smov [#allocation14]
            %v748 = vld [vmem:[%s747] sm:$0xff]
            %749 = vrot.lane.b32.xlu0 %v748, 1
            %v750 = vpop.permute.xlu0 %749
            %v751 = vld [vmem:[%s746] sm:$0xff]
            %v752 = vld [vmem:[%s746] sm:$0xff]
            %753 = vrot.lane.b32.xlu0 %v752, 1
            %v754 = vpop.permute.xlu0 %753
            %v755 = vlaneseq
            %v756 = vand.u32 %v755, 127
            %vm757 = vcmp.eq.s32.totalorder %v756, 0
            %v758 = vsel %vm757, %v752, %v754
            %v759 = vlaneseq
            %v760 = vand.u32 %v759, 127
            %vm761 = vcmp.eq.s32.totalorder %v760, 1
            %v762 = vsel %vm761, %v750, %v758
            %v763 = vlaneseq
            %v764 = vand.u32 %v763, 127
            %vm765 = vcmp.ge.s32.totalorder %v764, 0
            %vm766 = vcmp.lt.s32.totalorder %v764, 8
            %vm767 = vmand %vm765, %vm766
            %v768 = vsel %vm767, %v762, 0.0
            %v769 = vld [vmem:[%s747] sm:$0xff]
            %770 = vrot.lane.b32.xlu0 %v769, 127
            %v771 = vpop.permute.xlu0 %770
            %v772 = vlaneseq
            %v773 = vand.u32 %v772, 127
            %vm774 = vcmp.eq.s32.totalorder %v773, 7
            %v775 = vsel %vm774, %v751, %v771
            %776 = vst [vmem:[%s746] sm:$0xff] %v768
            %777 = vst [vmem:[%s747] sm:$0xff] %v775
            %s778 = smov [#allocation15]
            %s779 = smov [#allocation16]
            %v780 = vld [vmem:[%s779] sm:$0xff]
            %781 = vrot.lane.b32.xlu0 %v780, 1
            %v782 = vpop.permute.xlu0 %781
            %v783 = vld [vmem:[%s778] sm:$0xff]
            %v784 = vld [vmem:[%s778] sm:$0xff]
            %785 = vrot.lane.b32.xlu0 %v784, 1
            %v786 = vpop.permute.xlu0 %785
            %v787 = vlaneseq
            %v788 = vand.u32 %v787, 127
            %vm789 = vcmp.eq.s32.totalorder %v788, 0
            %v790 = vsel %vm789, %v784, %v786
            %v791 = vlaneseq
            %v792 = vand.u32 %v791, 127
            %vm793 = vcmp.eq.s32.totalorder %v792, 1
            %v794 = vsel %vm793, %v782, %v790
            %v795 = vlaneseq
            %v796 = vand.u32 %v795, 127
            %vm797 = vcmp.ge.s32.totalorder %v796, 0
            %vm798 = vcmp.lt.s32.totalorder %v796, 8
            %vm799 = vmand %vm797, %vm798
            %v800 = vsel %vm799, %v794, 0.0
            %v801 = vld [vmem:[%s779] sm:$0xff]
            %802 = vrot.lane.b32.xlu0 %v801, 127
            %v803 = vpop.permute.xlu0 %802
            %v804 = vlaneseq
            %v805 = vand.u32 %v804, 127
            %vm806 = vcmp.eq.s32.totalorder %v805, 7
            %v807 = vsel %vm806, %v783, %v803
            %808 = vst [vmem:[%s778] sm:$0xff] %v800
            %809 = vst [vmem:[%s779] sm:$0xff] %v807
            %s810 = smov [#allocation13]
            %s811 = smov [#allocation15]
            %v812 = vld [vmem:[%s810] ss:$0 sm:$0xff]
            %s814 = scalar_lea.vmem %s810, 4294967295
            %v815 = vld [vmem:[%s814] sm:$0xfe]
            %v816 = vlaneseq
            %v817 = vshrl.u32 %v816, 7
            %vm818 = vcmp.eq.s32.totalorder %v817, 0
            %v819 = vsel %vm818, %v812, %v815
            %s820 = scalar_lea.vmem %s810, 7
            %v821 = vld [vmem:[%s820] ss:$0 sm:$0xff]
            %822 = vst [vmem:[%s810] sm:$0xff] %v819
            %v823 = vld [vmem:[%s811] ss:$0 sm:$0xff]
            %s824 = scalar_lea.vmem %s810, 1
            %825 = vst [vmem:[%s824] sm:$0x1] %v823
            %s826 = scalar_lea.vmem %s811, 1
            %v827 = vld [vmem:[%s826] sm:$0x7f]
            %v828 = vlaneseq
            %v829 = vshrl.u32 %v828, 7
            %vm830 = vcmp.eq.s32.totalorder %v829, 7
            %v831 = vsel %vm830, %v821, %v827
            %v832 = vld [vmem:[%s811] ss:$0 sm:$0xff]
            %833 = vst [vmem:[%s811] sm:$0xff] %v831
            %s834 = smov [#allocation14]
            %s835 = smov [#allocation16]
            %v836 = vld [vmem:[%s834] ss:$0 sm:$0xff]
            %s838 = scalar_lea.vmem %s834, 4294967295
            %v839 = vld [vmem:[%s838] sm:$0xfe]
            %v840 = vlaneseq
            %v841 = vshrl.u32 %v840, 7
            %vm842 = vcmp.eq.s32.totalorder %v841, 0
            %v843 = vsel %vm842, %v836, %v839
            %s844 = scalar_lea.vmem %s834, 7
            %v845 = vld [vmem:[%s844] ss:$0 sm:$0xff]
            %846 = vst [vmem:[%s834] sm:$0xff] %v843
            %v847 = vld [vmem:[%s835] ss:$0 sm:$0xff]
            %s848 = scalar_lea.vmem %s834, 1
            %849 = vst [vmem:[%s848] sm:$0x1] %v847
            %s850 = scalar_lea.vmem %s835, 1
            %v851 = vld [vmem:[%s850] sm:$0x7f]
            %v852 = vlaneseq
            %v853 = vshrl.u32 %v852, 7
            %vm854 = vcmp.eq.s32.totalorder %v853, 7
            %v855 = vsel %vm854, %v845, %v851
            %v856 = vld [vmem:[%s835] ss:$0 sm:$0xff]
            %857 = vst [vmem:[%s835] sm:$0xff] %v855
            %s858 = smov [#allocation24]
            %v859 = vld [vmem:[%s858] sm:$0xff]
            %s860 = smov [#allocation25]
            %v861 = vld [vmem:[%s860] sm:$0xff]
            %s862 = smov %s331
            %s863 = smov %s336
            %s864 = smov %s341
            %s865 = smov %s346
            %v866 = vld [vmem:[%s862] sm:$0xff]
            %v867 = vld [vmem:[%s863] sm:$0xff]
            %v868 = vld [vmem:[%s864] sm:$0xff]
            %v869 = vld [vmem:[%s865] sm:$0xff]
            %v870 = vmul.f32 %v859, %v866
            %v871 = vmul.f32 %v861, %v868
            %v872 = vsub.f32 %v870, %v871
            %v873 = vmul.f32 %v859, %v867
            %v874 = vmul.f32 %v861, %v869
            %v875 = vsub.f32 %v873, %v874
            %v876 = vmul.f32 %v861, %v866
            %v877 = vmul.f32 %v859, %v868
            %v878 = vadd.f32 %v876, %v877
            %v879 = vmul.f32 %v861, %v867
            %v880 = vmul.f32 %v859, %v869
            %v881 = vadd.f32 %v879, %v880
            %882 = vst [vmem:[%s862] sm:$0xff] %v872
            %883 = vst [vmem:[%s863] sm:$0xff] %v875
            %884 = vst [vmem:[%s864] sm:$0xff] %v878
            %885 = vst [vmem:[%s865] sm:$0xff] %v881
            %s886 = smov %s331
            %s887 = smov %s341
            %v888 = vld [vmem:[%s886] ss:$0 sm:$0xff]
            %s890 = scalar_lea.vmem %s886, 4294967295
            %v891 = vld [vmem:[%s890] sm:$0xfe]
            %v892 = vlaneseq
            %v893 = vshrl.u32 %v892, 7
            %vm894 = vcmp.eq.s32.totalorder %v893, 0
            %v895 = vsel %vm894, %v888, %v891
            %s896 = scalar_lea.vmem %s886, 7
            %v897 = vld [vmem:[%s896] ss:$0 sm:$0xff]
            %898 = vst [vmem:[%s886] sm:$0xff] %v895
            %v899 = vld [vmem:[%s887] ss:$0 sm:$0xff]
            %s900 = scalar_lea.vmem %s886, 1
            %901 = vst [vmem:[%s900] sm:$0x1] %v899
            %s902 = scalar_lea.vmem %s887, 1
            %v903 = vld [vmem:[%s902] sm:$0x7f]
            %v904 = vlaneseq
            %v905 = vshrl.u32 %v904, 7
            %vm906 = vcmp.eq.s32.totalorder %v905, 7
            %v907 = vsel %vm906, %v897, %v903
            %v908 = vld [vmem:[%s887] ss:$0 sm:$0xff]
            %909 = vst [vmem:[%s887] sm:$0xff] %v907
            %s910 = smov %s336
            %s911 = smov %s346
            %v912 = vld [vmem:[%s910] ss:$0 sm:$0xff]
            %s914 = scalar_lea.vmem %s910, 4294967295
            %v915 = vld [vmem:[%s914] sm:$0xfe]
            %v916 = vlaneseq
            %v917 = vshrl.u32 %v916, 7
            %vm918 = vcmp.eq.s32.totalorder %v917, 0
            %v919 = vsel %vm918, %v912, %v915
            %s920 = scalar_lea.vmem %s910, 7
            %v921 = vld [vmem:[%s920] ss:$0 sm:$0xff]
            %922 = vst [vmem:[%s910] sm:$0xff] %v919
            %v923 = vld [vmem:[%s911] ss:$0 sm:$0xff]
            %s924 = scalar_lea.vmem %s910, 1
            %925 = vst [vmem:[%s924] sm:$0x1] %v923
            %s926 = scalar_lea.vmem %s911, 1
            %v927 = vld [vmem:[%s926] sm:$0x7f]
            %v928 = vlaneseq
            %v929 = vshrl.u32 %v928, 7
            %vm930 = vcmp.eq.s32.totalorder %v929, 7
            %v931 = vsel %vm930, %v921, %v927
            %v932 = vld [vmem:[%s911] ss:$0 sm:$0xff]
            %933 = vst [vmem:[%s911] sm:$0xff] %v931
          $region168: #{custom-call.16} parent=160 // loop_footer
            %s494 = sadd.s32 1, %s490
          $region169: #{custom-call.16} parent=160 // loop_footer_branch
            %489 = sbr.rel target = $region165
          $region170: #{custom-call.16} parent=160 // loop_exit
            _
          %s934 = sadd.s32 %s392, 1
        $region161: #{custom-call.16} parent=155 // loop_footer
          _
        $region162: #{custom-call.16} parent=155 // loop_footer_branch
          %391 = sbr.rel target = $region158
        $region163: #{custom-call.16} parent=155 // loop_exit
          _
        %s937 = sand.u32 %s31, 7
        %s938 = scalar_lea.vmem %s320, %s937 [#allocation4]
        %s939 = sand.u32 %s31, 7
        %s940 = scalar_lea.vmem %s326, %s939 [#allocation5]
        %s941 = smov [#allocation13]
        %s942 = smov %s938
        %v943 = vlaneseq
        %v944 = vand.u32 %v943, 127
        %v945 = vmov %v944
        %v946 = vlaneseq
        %v947 = vshrl.u32 %v946, 7
        %v948 = vmov %v947
        %v949 = vld [vmem:[%s941] sm:$0xff]
        %vm952 = vcmp.eq.s32.totalorder %v948, %v945
        %v953 = vsel %vm952, %v949, 0.0
        %v954 = vrot.slane %v953, 4
        %v955 = vadd.f32 %v953, %v954
        %v956 = vrot.slane %v955, 2
        %v957 = vadd.f32 %v955, %v956
        %v958 = vrot.slane %v957, 1
        %v959 = vadd.f32 %v957, %v958
        %960 = vst [vmem:[%s942] sm:$0x1] %v959
        %s961 = smov [#allocation16]
        %s962 = smov %s940
        %v963 = vlaneseq
        %v964 = vand.u32 %v963, 127
        %v965 = vmov %v964
        %v966 = vlaneseq
        %v967 = vshrl.u32 %v966, 7
        %v968 = vmov %v967
        %v969 = vld [vmem:[%s961] sm:$0xff]
        %vm972 = vcmp.eq.s32.totalorder %v968, %v965
        %v973 = vsel %vm972, %v969, 0.0
        %v974 = vrot.slane %v973, 4
        %v975 = vadd.f32 %v973, %v974
        %v976 = vrot.slane %v975, 2
        %v977 = vadd.f32 %v975, %v976
        %v978 = vrot.slane %v977, 1
        %v979 = vadd.f32 %v977, %v978
        %980 = vst [vmem:[%s962] sm:$0x1] %v979
        %s981 = sand.u32 %s50, 1
        %s982 = sand.u32 %s50, 1
        %s983 = smul.addr %s982, 8
        %s984 = scalar_lea.vmem [#allocation4], %s983
        %s985 = sand.u32 %s80, 1
        %s986 = sand.u32 %s80, 1
        %s987 = smul.addr %s986, 8
        %s988 = scalar_lea.vmem [#allocation5], %s987
        %s989 = sand.u32 %s26, 1
        %s990 = scalar_lea.sflag [#allocation7], %s989
        %s991 = sand.u32 %s26, 1
        %s992 = smul.addr %s991, 8
        %s993 = scalar_lea.vmem [#allocation6], %s992
        %s994 = sand.u32 %s26, 1
        %s995 = scalar_lea.sflag [#allocation9], %s994
        %s996 = sand.u32 %s26, 1
        %s997 = smul.addr %s996, 8
        %s998 = scalar_lea.vmem [#allocation8], %s997
        %s999 = sand.u32 %s26, 1
        %s1000 = scalar_lea.sflag [#allocation9], %s999
        %s1001 = sand.u32 %s26, 1
        %s1002 = smul.addr %s1001, 8
        %s1003 = scalar_lea.vmem [#allocation10], %s1002
        %s1004 = sand.u32 %s26, 1
        %s1005 = scalar_lea.sflag [#allocation12], %s1004
        %s1006 = sand.u32 %s26, 1
        %s1007 = smul.addr %s1006, 8
        %s1008 = scalar_lea.vmem [#allocation11], %s1007
        // Predicated region
        $region171: #{custom-call.16} parent=155 // pred_check
          %p1009 = pneg %p60
        $region172: #{custom-call.16} parent=155 // pred_check_branch
          %1011 = sbr.rel (%p1009) target = $region174
        $region173: #{custom-call.16} parent=155 // pred_region
          %s1012 = sshrl.u32 %s31, 3
          %s1013 = sadd.s32 %s1012, %s30
          %s1014 = smul.addr %s1013, 8
          %s1015 = scalar_lea.vmem %s4, %s1014
          // Predicated region
          $region175: #{custom-call.16} parent=173 // pred_check
            _
          $region176: #{custom-call.16} parent=173 // pred_check_branch
            %1017 = sbr.rel (0) target = $region178
          $region177: #{custom-call.16} parent=173 // pred_region
            // Predicated region
            $region179: #{custom-call.16} parent=177 // pred_check
              _
            $region180: #{custom-call.16} parent=177 // pred_check_branch
              %1019 = sbr.rel (0) target = $region182
            $region181: #{custom-call.16} parent=177 // pred_region
              // Predicated region
              $region194: #{custom-call.16} parent=181 // pred_check
                _
              $region195: #{custom-call.16} parent=181 // pred_check_branch
                %1035 = sbr.rel (0) target = $region197
              $region196: #{custom-call.16} parent=181 // pred_region
                loop: start=0, step=1, limit=1
                $region198: #{custom-call.16} parent=196 // loop_pre_header
                  _
                $region199: #{custom-call.16} parent=196 // loop_header
                  %s1037 = sphi 0, %s1041
                  %p1038 = scmp.ge.s32.totalorder %s1037, 1
                  %s1042 = sphi %s984, %s984
                  %s1043 = sphi %s1015, %s1015
                $region200: #{custom-call.16} parent=196 // loop_header_branch
                  %1040 = sbr.rel (%p1038) target = $region204
                $region201: #{custom-call.16} parent=196 // loop_body
                  %v1044 = vld [vmem:[%s1042] sm:$0xff]
                  %1045 = vst [vmem:[%s1043] sm:$0xff] %v1044
                $region202: #{custom-call.16} parent=196 // loop_footer
                  %s1041 = sadd.s32 1, %s1037
                $region203: #{custom-call.16} parent=196 // loop_footer_branch
                  %1036 = sbr.rel target = $region199
                $region204: #{custom-call.16} parent=196 // loop_exit
                  _
              $region197: #{custom-call.16} parent=181 // pred_fallthru
                _
              // Predicated region
              $region205: #{custom-call.16} parent=181 // pred_check
                _
              $region206: #{custom-call.16} parent=181 // pred_check_branch
                %1047 = sbr.rel target = $region208
              $region207: #{custom-call.16} parent=181 // pred_region
                _
              $region208: #{custom-call.16} parent=181 // pred_fallthru
                _
            $region182: #{custom-call.16} parent=177 // pred_fallthru
              _
            // Predicated region
            $region183: #{custom-call.16} parent=177 // pred_check
              _
            $region184: #{custom-call.16} parent=177 // pred_check_branch
              %1021 = sbr.rel target = $region186
            $region185: #{custom-call.16} parent=177 // pred_region
              %s1023 = ssub.s32 256, 1
              loop: start=0, step=1, limit=1
              $region187: #{custom-call.16} parent=185 // loop_pre_header
                _
              $region188: #{custom-call.16} parent=185 // loop_header
                %s1025 = sphi 0, %s1029
                %p1026 = scmp.ge.s32.totalorder %s1025, 1
                %s1030 = sphi %s984, %s984
                %s1031 = sphi %s1015, %s1015
              $region189: #{custom-call.16} parent=185 // loop_header_branch
                %1028 = sbr.rel (%p1026) target = $region193
              $region190: #{custom-call.16} parent=185 // loop_body
                %v1032 = vld [vmem:[%s1030] sm:%s1023]
                %1033 = vst [vmem:[%s1031] sm:%s1023] %v1032
              $region191: #{custom-call.16} parent=185 // loop_footer
                %s1029 = sadd.s32 1, %s1025
              $region192: #{custom-call.16} parent=185 // loop_footer_branch
                %1024 = sbr.rel target = $region188
              $region193: #{custom-call.16} parent=185 // loop_exit
                _
            $region186: #{custom-call.16} parent=177 // pred_fallthru
              _
          $region178: #{custom-call.16} parent=173 // pred_fallthru
            _
          %1048 = vnop
        $region174: #{custom-call.16} parent=155 // pred_fallthru
          _
        // Predicated region
        $region209: #{custom-call.16} parent=155 // pred_check
          %p1049 = pneg %p90
        $region210: #{custom-call.16} parent=155 // pred_check_branch
          %1051 = sbr.rel (%p1049) target = $region212
        $region211: #{custom-call.16} parent=155 // pred_region
          %s1052 = sshrl.u32 %s31, 3
          %s1053 = sadd.s32 %s1052, %s30
          %s1054 = smul.addr %s1053, 8
          %s1055 = scalar_lea.vmem %s5, %s1054
          // Predicated region
          $region213: #{custom-call.16} parent=211 // pred_check
            _
          $region214: #{custom-call.16} parent=211 // pred_check_branch
            %1057 = sbr.rel (0) target = $region216
          $region215: #{custom-call.16} parent=211 // pred_region
            // Predicated region
            $region217: #{custom-call.16} parent=215 // pred_check
              _
            $region218: #{custom-call.16} parent=215 // pred_check_branch
              %1059 = sbr.rel (0) target = $region220
            $region219: #{custom-call.16} parent=215 // pred_region
              // Predicated region
              $region232: #{custom-call.16} parent=219 // pred_check
                _
              $region233: #{custom-call.16} parent=219 // pred_check_branch
                %1075 = sbr.rel (0) target = $region235
              $region234: #{custom-call.16} parent=219 // pred_region
                loop: start=0, step=1, limit=1
                $region236: #{custom-call.16} parent=234 // loop_pre_header
                  _
                $region237: #{custom-call.16} parent=234 // loop_header
                  %s1077 = sphi 0, %s1081
                  %p1078 = scmp.ge.s32.totalorder %s1077, 1
                  %s1082 = sphi %s988, %s988
                  %s1083 = sphi %s1055, %s1055
                $region238: #{custom-call.16} parent=234 // loop_header_branch
                  %1080 = sbr.rel (%p1078) target = $region242
                $region239: #{custom-call.16} parent=234 // loop_body
                  %v1084 = vld [vmem:[%s1082] sm:$0xff]
                  %1085 = vst [vmem:[%s1083] sm:$0xff] %v1084
                $region240: #{custom-call.16} parent=234 // loop_footer
                  %s1081 = sadd.s32 1, %s1077
                $region241: #{custom-call.16} parent=234 // loop_footer_branch
                  %1076 = sbr.rel target = $region237
                $region242: #{custom-call.16} parent=234 // loop_exit
                  _
              $region235: #{custom-call.16} parent=219 // pred_fallthru
                _
              // Predicated region
              $region243: #{custom-call.16} parent=219 // pred_check
                _
              $region244: #{custom-call.16} parent=219 // pred_check_branch
                %1087 = sbr.rel target = $region246
              $region245: #{custom-call.16} parent=219 // pred_region
                _
              $region246: #{custom-call.16} parent=219 // pred_fallthru
                _
            $region220: #{custom-call.16} parent=215 // pred_fallthru
              _
            // Predicated region
            $region221: #{custom-call.16} parent=215 // pred_check
              _
            $region222: #{custom-call.16} parent=215 // pred_check_branch
              %1061 = sbr.rel target = $region224
            $region223: #{custom-call.16} parent=215 // pred_region
              %s1063 = ssub.s32 256, 1
              loop: start=0, step=1, limit=1
              $region225: #{custom-call.16} parent=223 // loop_pre_header
                _
              $region226: #{custom-call.16} parent=223 // loop_header
                %s1065 = sphi 0, %s1069
                %p1066 = scmp.ge.s32.totalorder %s1065, 1
                %s1070 = sphi %s988, %s988
                %s1071 = sphi %s1055, %s1055
              $region227: #{custom-call.16} parent=223 // loop_header_branch
                %1068 = sbr.rel (%p1066) target = $region231
              $region228: #{custom-call.16} parent=223 // loop_body
                %v1072 = vld [vmem:[%s1070] sm:%s1063]
                %1073 = vst [vmem:[%s1071] sm:%s1063] %v1072
              $region229: #{custom-call.16} parent=223 // loop_footer
                %s1069 = sadd.s32 1, %s1065
              $region230: #{custom-call.16} parent=223 // loop_footer_branch
                %1064 = sbr.rel target = $region226
              $region231: #{custom-call.16} parent=223 // loop_exit
                _
            $region224: #{custom-call.16} parent=215 // pred_fallthru
              _
          $region216: #{custom-call.16} parent=211 // pred_fallthru
            _
          %1088 = vnop
        $region212: #{custom-call.16} parent=155 // pred_fallthru
          _
        %s1090 = ssub.s32 128, 128
        %1091 = vsyncadd %s990, %s1090
        %s1092 = smul.addr %s30, 8
        %s1093 = sadd.s32 %s31, %s1092
        %s1094 = smul.addr %s1093, 128
        %s1095 = scalar_lea.hbm %s6, %s1094
        %s1097 = sshll.u32 %s993, 4
        %s1098 = int_to_ptr.vmem [resolvable:$true] %s1097
        %1100 = dma.vmem_to_hbm [thread:$0]  %s1098, 128, %s1095, %s990
        %s1102 = ssub.s32 128, 128
        %1103 = vsyncadd %s995, %s1102
        %s1104 = smul.addr %s30, 8
        %s1105 = sadd.s32 %s31, %s1104
        %s1106 = smul.addr %s1105, 128
        %s1107 = scalar_lea.hbm %s7, %s1106
        %s1109 = sshll.u32 %s998, 4
        %s1110 = int_to_ptr.vmem [resolvable:$true] %s1109
        %1112 = dma.vmem_to_hbm [thread:$0]  %s1110, 128, %s1107, %s995
        %s1114 = ssub.s32 128, 128
        %1115 = vsyncadd %s1000, %s1114
        %s1116 = smul.addr %s30, 8
        %s1117 = sadd.s32 %s31, %s1116
        %s1118 = smul.addr %s1117, 128
        %s1119 = scalar_lea.hbm %s8, %s1118
        %s1121 = sshll.u32 %s1003, 4
        %s1122 = int_to_ptr.vmem [resolvable:$true] %s1121
        %1124 = dma.vmem_to_hbm [thread:$0]  %s1122, 128, %s1119, %s1000
        %s1126 = ssub.s32 128, 128
        %1127 = vsyncadd %s1005, %s1126
        %s1128 = smul.addr %s30, 8
        %s1129 = sadd.s32 %s31, %s1128
        %s1130 = smul.addr %s1129, 128
        %s1131 = scalar_lea.hbm %s9, %s1130
        %s1133 = sshll.u32 %s1008, 4
        %s1134 = int_to_ptr.vmem [resolvable:$true] %s1133
        %1136 = dma.vmem_to_hbm [thread:$0]  %s1134, 128, %s1131, %s1005
      $region156: #{custom-call.16} parent=5 // pred_fallthru
        _
      %p1137 = scmp.le.s32.totalorder 2, %s21
      // Predicated region
      $region247: #{custom-call.16} parent=5 // pred_check
        %p1138 = pneg %p1137
      $region248: #{custom-call.16} parent=5 // pred_check_branch
        %1140 = sbr.rel (%p1138) target = $region250
      $region249: #{custom-call.16} parent=5 // pred_region
        %s1141 = ssub.s32 %s21, 2
        // Predicated region
        $region251: #{custom-call.16} parent=249 // pred_check
          %p1142 = pneg %p66
        $region252: #{custom-call.16} parent=249 // pred_check_branch
          %1144 = sbr.rel (%p1142) target = $region254
        $region253: #{custom-call.16} parent=249 // pred_region
          %s1145 = sand.u32 %s51, 1
          %s1146 = sand.u32 %s51, 1
          %s1147 = smul.addr %s1146, 8
          %s1148 = scalar_lea.vmem [#allocation4], %s1147
        $region254: #{custom-call.16} parent=249 // pred_fallthru
          _
        // Predicated region
        $region255: #{custom-call.16} parent=249 // pred_check
          %p1149 = pneg %p96
        $region256: #{custom-call.16} parent=249 // pred_check_branch
          %1151 = sbr.rel (%p1149) target = $region258
        $region257: #{custom-call.16} parent=249 // pred_region
          %s1152 = sand.u32 %s81, 1
          %s1153 = sand.u32 %s81, 1
          %s1154 = smul.addr %s1153, 8
          %s1155 = scalar_lea.vmem [#allocation5], %s1154
        $region258: #{custom-call.16} parent=249 // pred_fallthru
          _
        %s1156 = sand.u32 %s27, 1
        %s1157 = scalar_lea.sflag [#allocation7], %s1156
        %s1158 = sand.u32 %s27, 1
        %s1159 = smul.addr %s1158, 8
        %s1160 = scalar_lea.vmem [#allocation6], %s1159
        %1161 = dma.done %s1157, 128
        %s1162 = sand.u32 %s27, 1
        %s1163 = scalar_lea.sflag [#allocation9], %s1162
        %s1164 = sand.u32 %s27, 1
        %s1165 = smul.addr %s1164, 8
        %s1166 = scalar_lea.vmem [#allocation8], %s1165
        %1167 = dma.done %s1163, 128
        %s1168 = sand.u32 %s27, 1
        %s1169 = scalar_lea.sflag [#allocation9], %s1168
        %s1170 = sand.u32 %s27, 1
        %s1171 = smul.addr %s1170, 8
        %s1172 = scalar_lea.vmem [#allocation10], %s1171
        %1173 = dma.done %s1169, 128
        %s1174 = sand.u32 %s27, 1
        %s1175 = scalar_lea.sflag [#allocation12], %s1174
        %s1176 = sand.u32 %s27, 1
        %s1177 = smul.addr %s1176, 8
        %s1178 = scalar_lea.vmem [#allocation11], %s1177
        %1179 = dma.done %s1175, 128
      $region250: #{custom-call.16} parent=5 // pred_fallthru
        _
    $region6: #{custom-call.16} parent=1 // loop_footer
      %s25 = sadd.s32 1, %s21
    $region7: #{custom-call.16} parent=1 // loop_footer_branch
      %20 = sbr.rel target = $region3
    $region8: #{custom-call.16} parent=1 // loop_exit
      _
    %1180 = vsyncpa [#allocation7], 1
    %s1181 = scalar_lea.sflag [#allocation7], 1
    %1182 = vsyncpa %s1181, 1
    %1183 = vsyncpa [#allocation9], 1
    %s1184 = scalar_lea.sflag [#allocation9], 1
    %1185 = vsyncpa %s1184, 1
    %1186 = vsyncpa [#allocation12], 1
    %s1187 = scalar_lea.sflag [#allocation12], 1
    %1188 = vsyncpa %s1187, 1

// kernel: reverse
$region0: #{reverse}
  %s0 = inlined_call_operand.vmem [shape: f32[2,8,16], index: 0, kind: input, shape index: {}]
  %s1 = inlined_call_operand.vmem [shape: f32[2,8,16], index: 1, kind: output, shape index: {}]
  %v2 = vlaneseq
  %v3 = vsub.s32 15, %v2
  %4 = vset.pattern.permute.xlu0 %v3
  $region1: #{reverse} parent=0
    #allocation0 [shape = 'u8[8192]{0}', space=vmem, size = 0x2000, scoped, tag = 'operand span for operand 0']
    #allocation1 [shape = 'u8[8192]{0}', space=vmem, size = 0x2000, scoped, tag = 'operand span for operand 1']
    // Predicated region
    $region2: #{reverse} parent=1 // pred_check
      _
    $region3: #{reverse} parent=1 // pred_check_branch
      %6 = sbr.rel (0) target = $region5
    $region4: #{reverse} parent=1 // pred_region
      // Predicated region
      $region6: #{reverse} parent=4 // pred_check
        _
      $region7: #{reverse} parent=4 // pred_check_branch
        %8 = sbr.rel (0) target = $region9
      $region8: #{reverse} parent=4 // pred_region
        // Predicated region
        $region21: #{reverse} parent=8 // pred_check
          _
        $region22: #{reverse} parent=8 // pred_check_branch
          %26 = sbr.rel (0) target = $region24
        $region23: #{reverse} parent=8 // pred_region
          loop: start=0, step=1, limit=1
          $region25: #{reverse} parent=23 // loop_pre_header
            _
          $region26: #{reverse} parent=23 // loop_header
            %s28 = sphi 0, %s32
            %p29 = scmp.ge.s32.totalorder %s28, 1
            %s33 = sphi %s0, %s0
            %s34 = sphi [#allocation0], [#allocation0]
          $region27: #{reverse} parent=23 // loop_header_branch
            %31 = sbr.rel (%p29) target = $region31
          $region28: #{reverse} parent=23 // loop_body
            %v35 = vld [vmem:[%s33] sm:$0xff]
            %36 = vst [vmem:[%s34] sm:$0xff] %v35
            %v37 = vld [vmem:[%s33 + $0x8] sm:$0xff]
            %38 = vst [vmem:[%s34 + $0x8] sm:$0xff] %v37
          $region29: #{reverse} parent=23 // loop_footer
            %s32 = sadd.s32 1, %s28
          $region30: #{reverse} parent=23 // loop_footer_branch
            %27 = sbr.rel target = $region26
          $region31: #{reverse} parent=23 // loop_exit
            _
        $region24: #{reverse} parent=8 // pred_fallthru
          _
        // Predicated region
        $region32: #{reverse} parent=8 // pred_check
          _
        $region33: #{reverse} parent=8 // pred_check_branch
          %40 = sbr.rel target = $region35
        $region34: #{reverse} parent=8 // pred_region
          _
        $region35: #{reverse} parent=8 // pred_fallthru
          _
      $region9: #{reverse} parent=4 // pred_fallthru
        _
      // Predicated region
      $region10: #{reverse} parent=4 // pred_check
        _
      $region11: #{reverse} parent=4 // pred_check_branch
        %10 = sbr.rel target = $region13
      $region12: #{reverse} parent=4 // pred_region
        %s12 = ssub.s32 256, 1
        loop: start=0, step=1, limit=1
        $region14: #{reverse} parent=12 // loop_pre_header
          _
        $region15: #{reverse} parent=12 // loop_header
          %s14 = sphi 0, %s18
          %p15 = scmp.ge.s32.totalorder %s14, 1
          %s19 = sphi %s0, %s0
          %s20 = sphi [#allocation0], [#allocation0]
        $region16: #{reverse} parent=12 // loop_header_branch
          %17 = sbr.rel (%p15) target = $region20
        $region17: #{reverse} parent=12 // loop_body
          %v21 = vld [vmem:[%s19] sm:%s12]
          %22 = vst [vmem:[%s20] sm:%s12] %v21
          %v23 = vld [vmem:[%s19 + $0x8] sm:%s12]
          %24 = vst [vmem:[%s20 + $0x8] sm:%s12] %v23
        $region18: #{reverse} parent=12 // loop_footer
          %s18 = sadd.s32 1, %s14
        $region19: #{reverse} parent=12 // loop_footer_branch
          %13 = sbr.rel target = $region15
        $region20: #{reverse} parent=12 // loop_exit
          _
      $region13: #{reverse} parent=4 // pred_fallthru
        _
    $region5: #{reverse} parent=1 // pred_fallthru
      _
    %41 = vnop
    %v42 = vld [vmem:[#allocation0] sm:$0xff]
    %43 = vperm.xlu0 %4, %v42
    %v44 = vpop.permute.xlu0 %43
    %45 = vst [vmem:[#allocation1] sm:$0xff] %v44
    %s46 = scalar_lea.vmem [#allocation1], 8
    %s47 = scalar_lea.vmem [#allocation0], 8
    %v48 = vld [vmem:[%s47] sm:$0xff]
    %49 = vperm.xlu0 %4, %v48
    %v50 = vpop.permute.xlu0 %49
    %51 = vst [vmem:[%s46] sm:$0xff] %v50
    // Predicated region
    $region36: #{reverse} parent=1 // pred_check
      _
    $region37: #{reverse} parent=1 // pred_check_branch
      %53 = sbr.rel (0) target = $region39
    $region38: #{reverse} parent=1 // pred_region
      // Predicated region
      $region40: #{reverse} parent=38 // pred_check
        _
      $region41: #{reverse} parent=38 // pred_check_branch
        %55 = sbr.rel (0) target = $region43
      $region42: #{reverse} parent=38 // pred_region
        // Predicated region
        $region55: #{reverse} parent=42 // pred_check
          _
        $region56: #{reverse} parent=42 // pred_check_branch
          %73 = sbr.rel (0) target = $region58
        $region57: #{reverse} parent=42 // pred_region
          loop: start=0, step=1, limit=1
          $region59: #{reverse} parent=57 // loop_pre_header
            _
          $region60: #{reverse} parent=57 // loop_header
            %s75 = sphi 0, %s79
            %p76 = scmp.ge.s32.totalorder %s75, 1
            %s80 = sphi [#allocation1], [#allocation1]
            %s81 = sphi %s1, %s1
          $region61: #{reverse} parent=57 // loop_header_branch
            %78 = sbr.rel (%p76) target = $region65
          $region62: #{reverse} parent=57 // loop_body
            %v82 = vld [vmem:[%s80] sm:$0xff]
            %83 = vst [vmem:[%s81] sm:$0xff] %v82
            %v84 = vld [vmem:[%s80 + $0x8] sm:$0xff]
            %85 = vst [vmem:[%s81 + $0x8] sm:$0xff] %v84
          $region63: #{reverse} parent=57 // loop_footer
            %s79 = sadd.s32 1, %s75
          $region64: #{reverse} parent=57 // loop_footer_branch
            %74 = sbr.rel target = $region60
          $region65: #{reverse} parent=57 // loop_exit
            _
        $region58: #{reverse} parent=42 // pred_fallthru
          _
        // Predicated region
        $region66: #{reverse} parent=42 // pred_check
          _
        $region67: #{reverse} parent=42 // pred_check_branch
          %87 = sbr.rel target = $region69
        $region68: #{reverse} parent=42 // pred_region
          _
        $region69: #{reverse} parent=42 // pred_fallthru
          _
      $region43: #{reverse} parent=38 // pred_fallthru
        _
      // Predicated region
      $region44: #{reverse} parent=38 // pred_check
        _
      $region45: #{reverse} parent=38 // pred_check_branch
        %57 = sbr.rel target = $region47
      $region46: #{reverse} parent=38 // pred_region
        %s59 = ssub.s32 256, 1
        loop: start=0, step=1, limit=1
        $region48: #{reverse} parent=46 // loop_pre_header
          _
        $region49: #{reverse} parent=46 // loop_header
          %s61 = sphi 0, %s65
          %p62 = scmp.ge.s32.totalorder %s61, 1
          %s66 = sphi [#allocation1], [#allocation1]
          %s67 = sphi %s1, %s1
        $region50: #{reverse} parent=46 // loop_header_branch
          %64 = sbr.rel (%p62) target = $region54
        $region51: #{reverse} parent=46 // loop_body
          %v68 = vld [vmem:[%s66] sm:%s59]
          %69 = vst [vmem:[%s67] sm:%s59] %v68
          %v70 = vld [vmem:[%s66 + $0x8] sm:%s59]
          %71 = vst [vmem:[%s67 + $0x8] sm:%s59] %v70
        $region52: #{reverse} parent=46 // loop_footer
          %s65 = sadd.s32 1, %s61
        $region53: #{reverse} parent=46 // loop_footer_branch
          %60 = sbr.rel target = $region49
        $region54: #{reverse} parent=46 // loop_exit
          _
      $region47: #{reverse} parent=38 // pred_fallthru
        _
    $region39: #{reverse} parent=1 // pred_fallthru
      _
    %88 = vnop

</llo_original>
